<compile_context>
chip_gen: v6e
topology: v6e:2x2x1
jax: 0.10.0
libtpu: 0.0.40
codegen_flags: <defaults>
</compile_context>

<pallas_src>
import numpy as np
import jax
import jax.numpy as jnp
from jax.experimental import pallas as pl
from jax.experimental.pallas import tpu as pltpu

BATCH = 2
IN_H = IN_W = 32
BN_EPS = 1e-5


# ---------------------------------------------------------------------------
# Static (geometry-only) gather indices for block 1, built once with numpy.
# ---------------------------------------------------------------------------

def _build_block1_patch_index():
    """Composed conv1->conv2 im2col gather (per sample).

    Returns int32 (64, 90): for each conv2 output position (hh,ww) in the 8x8 grid and each
    conv2 tap t2 (9 taps), the 9 raw-input pixels feeding the conv1 output at the tapped
    16x16 position, followed by a 'valid' flag slot.  Indices address a per-sample augmented
    flat input of length 32*32+2 where slot 1024 holds 0.0 (zero padding) and slot 1025
    holds 1.0 (valid flag -> enables conv1 bias; 0 gives relu(0)=0 == conv2 zero padding).
    """
    ZERO, ONE = IN_H * IN_W, IN_H * IN_W + 1
    idx = np.full((64, 90), ZERO, np.int32)
    for hh in range(8):
        for ww in range(8):
            ro = hh * 8 + ww
            for ki2 in range(3):
                for kj2 in range(3):
                    t2 = ki2 * 3 + kj2
                    h1, w1 = 2 * hh + ki2 - 1, 2 * ww + kj2 - 1     # conv1-output coords
                    if not (0 <= h1 < 16 and 0 <= w1 < 16):
                        continue                                     # conv2 zero padding tap
                    idx[ro, t2 * 10 + 9] = ONE                       # enable conv1 bias
                    for ki1 in range(3):
                        for kj1 in range(3):
                            hi, wi = 2 * h1 + ki1 - 1, 2 * w1 + kj1 - 1
                            if 0 <= hi < IN_H and 0 <= wi < IN_W:    # conv1 zero padding
                                idx[ro, t2 * 10 + ki1 * 3 + kj1] = hi * IN_W + wi
    return idx


_PATCH_IDX = _build_block1_patch_index()                                      # (64, 90)
# conv_skip1: 1x1 kernel, stride 4, no padding -> input pixels (4i, 4j), i,j in [0,8)
_SKIP1_IDX = np.array([(4 * i) * IN_W + 4 * j for i in range(8) for j in range(8)],
                      np.int32)                                               # (64,)


# ---------------------------------------------------------------------------
# Host-side one-hot selection matrices for the tiny 4x4 / 2x2 stages.
# ---------------------------------------------------------------------------

def _conv_tap_selection(n, h, w, stride, ho, wo):
    """Stacked one-hot (9*Rout, Rin): row t*Rout+ro selects the input row feeding 3x3-tap t
    (padding=1) of output position ro; all-zero rows encode the padding."""
    r_in, r_out = n * h * w, n * ho * wo
    s = np.zeros((9 * r_out, r_in), np.float32)
    for ni in range(n):
        for hh in range(ho):
            for ww in range(wo):
                ro = ni * ho * wo + hh * wo + ww
                for ki in range(3):
                    for kj in range(3):
                        hi = hh * stride + ki - 1
                        wi = ww * stride + kj - 1
                        if 0 <= hi < h and 0 <= wi < w:
                            s[(ki * 3 + kj) * r_out + ro, ni * h * w + hi * w + wi] = 1.0
    return jnp.asarray(s)


def _pool_selection(n, h, w):
    """Stacked one-hot (4*Rout, Rin) for 2x2/stride-2 max pool (4 window positions)."""
    ho, wo = h // 2, w // 2
    r_in, r_out = n * h * w, n * ho * wo
    s = np.zeros((4 * r_out, r_in), np.float32)
    for ni in range(n):
        for hh in range(ho):
            for ww in range(wo):
                ro = ni * ho * wo + hh * wo + ww
                for pi in range(2):
                    for pj in range(2):
                        s[(pi * 2 + pj) * r_out + ro,
                          ni * h * w + (2 * hh + pi) * w + (2 * ww + pj)] = 1.0
    return jnp.asarray(s)


def _gap_matrix(n, hw):
    """(N, N*HW) averaging matrix: global average pool per image."""
    g = np.zeros((n, n * hw), np.float32)
    for ni in range(n):
        g[ni, ni * hw:(ni + 1) * hw] = 1.0 / hw
    return jnp.asarray(g)


# ---------------------------------------------------------------------------
# Parameters (deterministic synthetic init; shapes match Model_binary_bn, classifier=1)
# ---------------------------------------------------------------------------

def init_params(key):
    def xavier(k, shape, fan_in, fan_out):
        bound = (6.0 / (fan_in + fan_out)) ** 0.5
        return jax.random.uniform(k, shape, jnp.float32, -bound, bound)

    def conv(k, cout, cin, ksz):
        kw_, kb_ = jax.random.split(k)
        fan_in, fan_out = cin * ksz * ksz, cout * ksz * ksz
        w = xavier(kw_, (cout, cin, ksz, ksz), fan_in, fan_out)
        bb = 1.0 / (fan_in ** 0.5)
        b = jax.random.uniform(kb_, (cout,), jnp.float32, -bb, bb)
        return w, b

    def bn(k, c):
        k1, k2, k3, k4 = jax.random.split(k, 4)
        gamma = 1.0 + 0.1 * jax.random.normal(k1, (c,), jnp.float32)
        beta = 0.05 * jax.random.normal(k2, (c,), jnp.float32)
        mean = 0.1 * jax.random.normal(k3, (c,), jnp.float32)
        var = jax.random.uniform(k4, (c,), jnp.float32, 0.5, 1.5)
        return gamma, beta, mean, var

    def lin(k, fin, fout):
        kw_, kb_ = jax.random.split(k)
        w = xavier(kw_, (fout, fin), fin, fout)
        bb = 1.0 / (fin ** 0.5)
        b = jax.random.uniform(kb_, (fout,), jnp.float32, -bb, bb)
        return w, b

    ks = jax.random.split(key, 20)
    return {
        "conv1": conv(ks[0], 16, 1, 3),   "bn1": bn(ks[1], 16),
        "conv2": conv(ks[2], 16, 16, 3),  "bn2": bn(ks[3], 16),
        "skip1": conv(ks[4], 16, 1, 1),   "bn_skip1": bn(ks[5], 16),
        "conv3": conv(ks[6], 32, 16, 3),  "bn3": bn(ks[7], 32),
        "conv4": conv(ks[8], 32, 32, 3),  "bn4": bn(ks[9], 32),
        "skip2": conv(ks[10], 32, 16, 1), "bn_skip2": bn(ks[11], 32),
        "conv5": conv(ks[12], 64, 32, 3), "bn5": bn(ks[13], 64),
        "conv6": conv(ks[14], 64, 64, 3), "bn6": bn(ks[15], 64),
        "skip3": conv(ks[16], 64, 32, 1), "bn_skip3": bn(ks[17], 64),
        "fc1": lin(ks[18], 64, 32),
        "fc2": lin(ks[19], 32, 2),
    }


def build_kernel_consts(params, batch):
    """Fold BN (eval mode, running stats) into conv weights/biases and build all kernel
    constants.  MXU operands (weights + 0/1 selection matrices) are bf16; biases stay f32."""
    f32, bf16 = jnp.float32, jnp.bfloat16

    def fold(conv_name, bn_name):
        w, b = params[conv_name]
        gamma, beta, mean, var = params[bn_name]
        scale = gamma / jnp.sqrt(var + BN_EPS)
        return w * scale[:, None, None, None], (b - mean) * scale + beta

    def wmat(w):  # (Cout,Cin,kh,kw) -> (kh*kw*Cin, Cout); rows tap-major, cin-minor
        cout, cin, kh, kw = w.shape
        return jnp.transpose(w, (2, 3, 1, 0)).reshape(kh * kw * cin, cout)

    def brow(b):
        return b.reshape(1, -1).astype(f32)

    w1, b1 = fold("conv1", "bn1")
    w2, b2 = fold("conv2", "bn2")
    wsk1, bsk1 = fold("skip1", "bn_skip1")
    w3, b3 = fold("conv3", "bn3")
    w4, b4 = fold("conv4", "bn4")
    wsk2, bsk2 = fold("skip2", "bn_skip2")
    w5, b5 = fold("conv5", "bn5")
    w6, b6 = fold("conv6", "bn6")
    wsk3, bsk3 = fold("skip3", "bn_skip3")
    fc1w, fc1b = params["fc1"]
    fc2w, fc2b = params["fc2"]

    # Block 1: conv1 (+ bias via the 'valid' flag column) replicated block-diagonally over
    # the 9 conv2 taps -> one (128,90)x(90,144) dot yields conv2's im2col directly.
    w1_aug = jnp.concatenate([wmat(w1), b1.reshape(1, -1)], axis=0)        # (10, 16)
    w1_bd = jnp.kron(jnp.eye(9, dtype=f32), w1_aug)                        # (90, 144)

    # Head: eval-mode dropout is identity and the reference has no nonlinearity between
    # fc1 and fc2, so the two Linears fold exactly into one (64 -> 2) affine map.
    whead = jnp.transpose(fc1w) @ jnp.transpose(fc2w)                      # (64, 2)
    bhead = fc1b @ jnp.transpose(fc2w) + fc2b                              # (2,)

    n = batch
    return (
        w1_bd.astype(bf16),                       # conv1 block-diag (90,144)
        wmat(w2).astype(bf16), brow(b2),          # conv2 (144,16)
        wmat(wsk1).astype(f32), brow(bsk1),       # skip1 1x1 (VPU broadcast) (1,16)
        _pool_selection(n, 8, 8).astype(bf16),    # pool1 (128,128)
        _conv_tap_selection(n, 4, 4, 1, 4, 4).astype(bf16),   # sel44 (288,32)
        wmat(w3).astype(bf16), brow(b3),          # conv3 (144,32)
        wmat(w4).astype(bf16), brow(b4),          # conv4 (288,32)
        wmat(wsk2).astype(bf16), brow(bsk2),      # skip2 1x1 (16,32)
        _pool_selection(n, 4, 4).astype(bf16),    # pool2 (32,32)
        _conv_tap_selection(n, 2, 2, 1, 2, 2).astype(bf16),   # sel22 (72,8)
        wmat(w5).astype(bf16), brow(b5),          # conv5 (288,64)
        wmat(w6).astype(bf16), brow(b6),          # conv6 (576,64)
        wmat(wsk3).astype(bf16), brow(bsk3),      # skip3 1x1 (32,64)
        _gap_matrix(n, 4).astype(bf16),           # GAP (N, N*4)
        whead.astype(bf16), bhead.reshape(1, -1).astype(f32),  # folded fc1+fc2
    )


# ---------------------------------------------------------------------------
# The single fused Pallas kernel (everything VMEM-resident, gridless)
# ---------------------------------------------------------------------------

def _net_kernel(patches_ref, skip1_ref,
                w1bd_ref, w2_ref, b2_ref, wsk1_ref, bsk1_ref,
                pool1_ref, sel44_ref, w3_ref, b3_ref, w4_ref, b4_ref,
                wsk2_ref, bsk2_ref, pool2_ref, sel22_ref,
                w5_ref, b5_ref, w6_ref, b6_ref, wsk3_ref, bsk3_ref,
                gap_ref, whead_ref, bhead_ref,
                o_ref):
    f32, bf16 = jnp.float32, jnp.bfloat16

    def bdot(a, b):  # bf16 MXU operands, f32 accumulation
        return jnp.dot(a.astype(bf16), b.astype(bf16), preferred_element_type=f32)

    def conv3x3(x, sel, w, b, r_out, cin):
        # Stacked one-hot tap gather (9*r_out, cin) then per-tap weight dots accumulated in
        # f32.  Only used for the tiny 4x4 / 2x2 stages (r_out = 32 / 8 rows).
        xs = bdot(sel, x)
        acc = b
        for t in range(9):
            acc = acc + bdot(xs[t * r_out:(t + 1) * r_out, :],
                             w[t * cin:(t + 1) * cin, :])
        return jnp.maximum(acc, 0.0)

    def maxpool(x, sel, r_out):
        xs = bdot(sel, x)                                        # (4*r_out, C)
        return jnp.maximum(jnp.maximum(xs[:r_out], xs[r_out:2 * r_out]),
                           jnp.maximum(xs[2 * r_out:3 * r_out], xs[3 * r_out:]))

    # ---- block 1: conv1 + conv2 as two single large-K dots -----------------
    # patches rows = conv2 output positions (n, hh, ww); cols = 9 conv2 taps x (9 input
    # pixels + valid flag).  w1bd = blockdiag(9 x [W1; b1]) -> relu gives conv2's im2col
    # (zeros at conv2-padding taps because their whole patch group, incl. flag, is zero).
    h1 = jnp.maximum(bdot(patches_ref[...], w1bd_ref[...]), 0.0)           # (128, 144)
    x = jnp.maximum(bdot(h1, w2_ref[...]) + b2_ref[...], 0.0)              # (128, 16)
    # conv_skip1: 1x1, Cin=1, stride 4 -> VPU broadcast multiply (no MXU round-trip)
    sk = jnp.maximum(skip1_ref[...] * wsk1_ref[...] + bsk1_ref[...], 0.0)  # (128, 16)
    x = x + sk
    x = maxpool(x, pool1_ref[...], 32)                                     # (32, 16)

    # ---- block 2 ------------------------------------------------------------
    res = x
    x = conv3x3(x, sel44_ref[...], w3_ref[...], b3_ref[...], 32, 16)       # (32, 32)
    x = conv3x3(x, sel44_ref[...], w4_ref[...], b4_ref[...], 32, 32)       # (32, 32)
    sk = jnp.maximum(bdot(res, wsk2_ref[...]) + bsk2_ref[...], 0.0)
    x = x + sk
    x = maxpool(x, pool2_ref[...], 8)                                      # (8, 32)

    # ---- block 3 ------------------------------------------------------------
    res = x
    x = conv3x3(x, sel22_ref[...], w5_ref[...], b5_ref[...], 8, 32)        # (8, 64)
    x = conv3x3(x, sel22_ref[...], w6_ref[...], b6_ref[...], 8, 64)        # (8, 64)
    sk = jnp.maximum(bdot(res, wsk3_ref[...]) + bsk3_ref[...], 0.0)
    x = x + sk                                                             # (8, 64)

    # ---- head: GAP + folded fc1/fc2 (dropout = identity in eval) + log_softmax
    g = bdot(gap_ref[...], x)                                              # (N, 64)
    z = bdot(g, whead_ref[...]) + bhead_ref[...]                           # (N, 2)
    zs = z - jnp.max(z, axis=-1, keepdims=True)
    o_ref[...] = zs - jnp.log(jnp.sum(jnp.exp(zs), axis=-1, keepdims=True))


# ---------------------------------------------------------------------------
# Forward wrapper: two static gathers on the raw 8 KB input, then one pallas_call.
# ---------------------------------------------------------------------------

def _forward_impl(consts, x_nchw):
    n = x_nchw.shape[0]
    x_flat = x_nchw.astype(jnp.float32).reshape(n, IN_H * IN_W)            # NCHW, C=1
    aug = jnp.concatenate([x_flat,
                           jnp.zeros((n, 1), jnp.float32),                 # slot 1024 = 0
                           jnp.ones((n, 1), jnp.float32)], axis=1)         # slot 1025 = 1
    patches = aug[:, _PATCH_IDX].reshape(n * 64, 90)     # composed conv1->conv2 im2col
    skip1_in = x_flat[:, _SKIP1_IDX].reshape(n * 64, 1)  # conv_skip1 stride-4 taps

    args = (patches, skip1_in) + tuple(consts)
    return pl.pallas_call(
        _net_kernel,
        out_shape=jax.ShapeDtypeStruct((n, 2), jnp.float32),
        in_specs=[pl.BlockSpec(memory_space=pltpu.MemorySpace.VMEM)] * len(args),
        out_specs=pl.BlockSpec(memory_space=pltpu.MemorySpace.VMEM),
        compiler_params=pltpu.CompilerParams(vmem_limit_bytes=16 * 1024 * 1024),
    )(*args)


forward = jax.jit(_forward_impl)


if __name__ == "__main__":
    key = jax.random.PRNGKey(0)
    pkey, xkey = jax.random.split(key)
    params = init_params(pkey)
    consts = build_kernel_consts(params, BATCH)
    # Input shaped like PyTorch: (batch=2, channels=1, H=32, W=32) -> NCHW
    x = jax.random.normal(xkey, (BATCH, 1, IN_H, IN_W), jnp.float32)
    out = forward(consts, x)
    jax.block_until_ready(out)
    assert out.shape == (BATCH, 2)
    assert bool(jnp.all(jnp.isfinite(out)))
    # log_softmax rows must exponentiate-sum to ~1
    assert bool(jnp.all(jnp.abs(jnp.sum(jnp.exp(out), axis=-1) - 1.0) < 1e-3))
    print("KERNEL_OK")
</pallas_src>

<mosaic_0001>
module attributes {stable_mosaic.version = 11 : i64} {
  func.func @_net_kernel(%arg0: memref<128x90xf32, #tpu.memory_space<vmem>>, %arg1: memref<128x1xf32, #tpu.memory_space<vmem>>, %arg2: memref<90x144xbf16, #tpu.memory_space<vmem>>, %arg3: memref<144x16xbf16, #tpu.memory_space<vmem>>, %arg4: memref<1x16xf32, #tpu.memory_space<vmem>>, %arg5: memref<1x16xf32, #tpu.memory_space<vmem>>, %arg6: memref<1x16xf32, #tpu.memory_space<vmem>>, %arg7: memref<128x128xbf16, #tpu.memory_space<vmem>>, %arg8: memref<288x32xbf16, #tpu.memory_space<vmem>>, %arg9: memref<144x32xbf16, #tpu.memory_space<vmem>>, %arg10: memref<1x32xf32, #tpu.memory_space<vmem>>, %arg11: memref<288x32xbf16, #tpu.memory_space<vmem>>, %arg12: memref<1x32xf32, #tpu.memory_space<vmem>>, %arg13: memref<16x32xbf16, #tpu.memory_space<vmem>>, %arg14: memref<1x32xf32, #tpu.memory_space<vmem>>, %arg15: memref<32x32xbf16, #tpu.memory_space<vmem>>, %arg16: memref<72x8xbf16, #tpu.memory_space<vmem>>, %arg17: memref<288x64xbf16, #tpu.memory_space<vmem>>, %arg18: memref<1x64xf32, #tpu.memory_space<vmem>>, %arg19: memref<576x64xbf16, #tpu.memory_space<vmem>>, %arg20: memref<1x64xf32, #tpu.memory_space<vmem>>, %arg21: memref<32x64xbf16, #tpu.memory_space<vmem>>, %arg22: memref<1x64xf32, #tpu.memory_space<vmem>>, %arg23: memref<2x8xbf16, #tpu.memory_space<vmem>>, %arg24: memref<64x2xbf16, #tpu.memory_space<vmem>>, %arg25: memref<1x2xf32, #tpu.memory_space<vmem>>, %arg26: memref<2x2xf32, #tpu.memory_space<vmem>>) attributes {dimension_semantics = [], scalar_prefetch = 0 : i64, scratch_operands = 0 : i64, tpu.core_type = #tpu.core_type<tc>} {
    %c0 = arith.constant 0 : index
    %c0_0 = arith.constant 0 : index
    %0 = vector.load %arg0[%c0, %c0_0] : memref<128x90xf32, #tpu.memory_space<vmem>>, vector<128x90xf32>
    %c0_1 = arith.constant 0 : index
    %c0_2 = arith.constant 0 : index
    %1 = vector.load %arg2[%c0_1, %c0_2] : memref<90x144xbf16, #tpu.memory_space<vmem>>, vector<90x144xbf16>
    %2 = arith.truncf %0 : vector<128x90xf32> to vector<128x90xbf16>
    %cst = arith.constant dense<0.000000e+00> : vector<128x144xf32>
    %3 = tpu.matmul %2, %1, %cst {dimension_numbers = #tpu.dot_dimension_numbers<[1], [0], [0], [1], [0, 0, 1, 1], [], []>} : vector<128x90xbf16>, vector<90x144xbf16>, vector<128x144xf32> -> vector<128x144xf32>
    %cst_3 = arith.constant 0.000000e+00 : f32
    %4 = vector.broadcast %cst_3 : f32 to vector<128x144xf32>
    %5 = arith.maximumf %3, %4 : vector<128x144xf32>
    %c0_4 = arith.constant 0 : index
    %c0_5 = arith.constant 0 : index
    %6 = vector.load %arg3[%c0_4, %c0_5] : memref<144x16xbf16, #tpu.memory_space<vmem>>, vector<144x16xbf16>
    %7 = arith.truncf %5 : vector<128x144xf32> to vector<128x144xbf16>
    %cst_6 = arith.constant dense<0.000000e+00> : vector<128x16xf32>
    %8 = tpu.matmul %7, %6, %cst_6 {dimension_numbers = #tpu.dot_dimension_numbers<[1], [0], [0], [1], [0, 0, 1, 1], [], []>} : vector<128x144xbf16>, vector<144x16xbf16>, vector<128x16xf32> -> vector<128x16xf32>
    %c0_7 = arith.constant 0 : index
    %c0_8 = arith.constant 0 : index
    %9 = vector.load %arg4[%c0_7, %c0_8] : memref<1x16xf32, #tpu.memory_space<vmem>>, vector<1x16xf32>
    %10 = vector.broadcast %9 : vector<1x16xf32> to vector<128x16xf32>
    %11 = arith.addf %8, %10 : vector<128x16xf32>
    %cst_9 = arith.constant 0.000000e+00 : f32
    %12 = vector.broadcast %cst_9 : f32 to vector<128x16xf32>
    %13 = arith.maximumf %11, %12 : vector<128x16xf32>
    %c0_10 = arith.constant 0 : index
    %c0_11 = arith.constant 0 : index
    %14 = vector.load %arg1[%c0_10, %c0_11] : memref<128x1xf32, #tpu.memory_space<vmem>>, vector<128x1xf32>
    %c0_12 = arith.constant 0 : index
    %c0_13 = arith.constant 0 : index
    %15 = vector.load %arg5[%c0_12, %c0_13] : memref<1x16xf32, #tpu.memory_space<vmem>>, vector<1x16xf32>
    %16 = vector.broadcast %14 : vector<128x1xf32> to vector<128x16xf32>
    %17 = vector.broadcast %15 : vector<1x16xf32> to vector<128x16xf32>
    %18 = arith.mulf %16, %17 : vector<128x16xf32>
    %c0_14 = arith.constant 0 : index
    %c0_15 = arith.constant 0 : index
    %19 = vector.load %arg6[%c0_14, %c0_15] : memref<1x16xf32, #tpu.memory_space<vmem>>, vector<1x16xf32>
    %20 = vector.broadcast %19 : vector<1x16xf32> to vector<128x16xf32>
    %21 = arith.addf %18, %20 : vector<128x16xf32>
    %cst_16 = arith.constant 0.000000e+00 : f32
    %22 = vector.broadcast %cst_16 : f32 to vector<128x16xf32>
    %23 = arith.maximumf %21, %22 : vector<128x16xf32>
    %24 = arith.addf %13, %23 : vector<128x16xf32>
    %c0_17 = arith.constant 0 : index
    %c0_18 = arith.constant 0 : index
    %25 = vector.load %arg7[%c0_17, %c0_18] : memref<128x128xbf16, #tpu.memory_space<vmem>>, vector<128x128xbf16>
    %26 = arith.truncf %24 : vector<128x16xf32> to vector<128x16xbf16>
    %cst_19 = arith.constant dense<0.000000e+00> : vector<128x16xf32>
    %27 = tpu.matmul %25, %26, %cst_19 {dimension_numbers = #tpu.dot_dimension_numbers<[1], [0], [0], [1], [0, 0, 1, 1], [], []>} : vector<128x128xbf16>, vector<128x16xbf16>, vector<128x16xf32> -> vector<128x16xf32>
    %28 = vector.extract_strided_slice %27 {offsets = [0, 0], sizes = [32, 16], strides = [1, 1]} : vector<128x16xf32> to vector<32x16xf32>
    %29 = vector.extract_strided_slice %27 {offsets = [32, 0], sizes = [32, 16], strides = [1, 1]} : vector<128x16xf32> to vector<32x16xf32>
    %30 = arith.maximumf %28, %29 : vector<32x16xf32>
    %31 = vector.extract_strided_slice %27 {offsets = [64, 0], sizes = [32, 16], strides = [1, 1]} : vector<128x16xf32> to vector<32x16xf32>
    %32 = vector.extract_strided_slice %27 {offsets = [96, 0], sizes = [32, 16], strides = [1, 1]} : vector<128x16xf32> to vector<32x16xf32>
    %33 = arith.maximumf %31, %32 : vector<32x16xf32>
    %34 = arith.maximumf %30, %33 : vector<32x16xf32>
    %c0_20 = arith.constant 0 : index
    %c0_21 = arith.constant 0 : index
    %35 = vector.load %arg8[%c0_20, %c0_21] : memref<288x32xbf16, #tpu.memory_space<vmem>>, vector<288x32xbf16>
    %c0_22 = arith.constant 0 : index
    %c0_23 = arith.constant 0 : index
    %36 = vector.load %arg9[%c0_22, %c0_23] : memref<144x32xbf16, #tpu.memory_space<vmem>>, vector<144x32xbf16>
    %c0_24 = arith.constant 0 : index
    %c0_25 = arith.constant 0 : index
    %37 = vector.load %arg10[%c0_24, %c0_25] : memref<1x32xf32, #tpu.memory_space<vmem>>, vector<1x32xf32>
    %38 = arith.truncf %34 : vector<32x16xf32> to vector<32x16xbf16>
    %cst_26 = arith.constant dense<0.000000e+00> : vector<288x16xf32>
    %39 = tpu.matmul %35, %38, %cst_26 {dimension_numbers = #tpu.dot_dimension_numbers<[1], [0], [0], [1], [0, 0, 1, 1], [], []>} : vector<288x32xbf16>, vector<32x16xbf16>, vector<288x16xf32> -> vector<288x16xf32>
    %40 = vector.extract_strided_slice %39 {offsets = [0, 0], sizes = [32, 16], strides = [1, 1]} : vector<288x16xf32> to vector<32x16xf32>
    %41 = vector.extract_strided_slice %36 {offsets = [0, 0], sizes = [16, 32], strides = [1, 1]} : vector<144x32xbf16> to vector<16x32xbf16>
    %42 = arith.truncf %40 : vector<32x16xf32> to vector<32x16xbf16>
    %cst_27 = arith.constant dense<0.000000e+00> : vector<32x32xf32>
    %43 = tpu.matmul %42, %41, %cst_27 {dimension_numbers = #tpu.dot_dimension_numbers<[1], [0], [0], [1], [0, 0, 1, 1], [], []>} : vector<32x16xbf16>, vector<16x32xbf16>, vector<32x32xf32> -> vector<32x32xf32>
    %44 = vector.broadcast %37 : vector<1x32xf32> to vector<32x32xf32>
    %45 = arith.addf %44, %43 : vector<32x32xf32>
    %46 = vector.extract_strided_slice %39 {offsets = [32, 0], sizes = [32, 16], strides = [1, 1]} : vector<288x16xf32> to vector<32x16xf32>
    %47 = vector.extract_strided_slice %36 {offsets = [16, 0], sizes = [16, 32], strides = [1, 1]} : vector<144x32xbf16> to vector<16x32xbf16>
    %48 = arith.truncf %46 : vector<32x16xf32> to vector<32x16xbf16>
    %cst_28 = arith.constant dense<0.000000e+00> : vector<32x32xf32>
    %49 = tpu.matmul %48, %47, %cst_28 {dimension_numbers = #tpu.dot_dimension_numbers<[1], [0], [0], [1], [0, 0, 1, 1], [], []>} : vector<32x16xbf16>, vector<16x32xbf16>, vector<32x32xf32> -> vector<32x32xf32>
    %50 = arith.addf %45, %49 : vector<32x32xf32>
    %51 = vector.extract_strided_slice %39 {offsets = [64, 0], sizes = [32, 16], strides = [1, 1]} : vector<288x16xf32> to vector<32x16xf32>
    %52 = vector.extract_strided_slice %36 {offsets = [32, 0], sizes = [16, 32], strides = [1, 1]} : vector<144x32xbf16> to vector<16x32xbf16>
    %53 = arith.truncf %51 : vector<32x16xf32> to vector<32x16xbf16>
    %cst_29 = arith.constant dense<0.000000e+00> : vector<32x32xf32>
    %54 = tpu.matmul %53, %52, %cst_29 {dimension_numbers = #tpu.dot_dimension_numbers<[1], [0], [0], [1], [0, 0, 1, 1], [], []>} : vector<32x16xbf16>, vector<16x32xbf16>, vector<32x32xf32> -> vector<32x32xf32>
    %55 = arith.addf %50, %54 : vector<32x32xf32>
    %56 = vector.extract_strided_slice %39 {offsets = [96, 0], sizes = [32, 16], strides = [1, 1]} : vector<288x16xf32> to vector<32x16xf32>
    %57 = vector.extract_strided_slice %36 {offsets = [48, 0], sizes = [16, 32], strides = [1, 1]} : vector<144x32xbf16> to vector<16x32xbf16>
    %58 = arith.truncf %56 : vector<32x16xf32> to vector<32x16xbf16>
    %cst_30 = arith.constant dense<0.000000e+00> : vector<32x32xf32>
    %59 = tpu.matmul %58, %57, %cst_30 {dimension_numbers = #tpu.dot_dimension_numbers<[1], [0], [0], [1], [0, 0, 1, 1], [], []>} : vector<32x16xbf16>, vector<16x32xbf16>, vector<32x32xf32> -> vector<32x32xf32>
    %60 = arith.addf %55, %59 : vector<32x32xf32>
    %61 = vector.extract_strided_slice %39 {offsets = [128, 0], sizes = [32, 16], strides = [1, 1]} : vector<288x16xf32> to vector<32x16xf32>
    %62 = vector.extract_strided_slice %36 {offsets = [64, 0], sizes = [16, 32], strides = [1, 1]} : vector<144x32xbf16> to vector<16x32xbf16>
    %63 = arith.truncf %61 : vector<32x16xf32> to vector<32x16xbf16>
    %cst_31 = arith.constant dense<0.000000e+00> : vector<32x32xf32>
    %64 = tpu.matmul %63, %62, %cst_31 {dimension_numbers = #tpu.dot_dimension_numbers<[1], [0], [0], [1], [0, 0, 1, 1], [], []>} : vector<32x16xbf16>, vector<16x32xbf16>, vector<32x32xf32> -> vector<32x32xf32>
    %65 = arith.addf %60, %64 : vector<32x32xf32>
    %66 = vector.extract_strided_slice %39 {offsets = [160, 0], sizes = [32, 16], strides = [1, 1]} : vector<288x16xf32> to vector<32x16xf32>
    %67 = vector.extract_strided_slice %36 {offsets = [80, 0], sizes = [16, 32], strides = [1, 1]} : vector<144x32xbf16> to vector<16x32xbf16>
    %68 = arith.truncf %66 : vector<32x16xf32> to vector<32x16xbf16>
    %cst_32 = arith.constant dense<0.000000e+00> : vector<32x32xf32>
    %69 = tpu.matmul %68, %67, %cst_32 {dimension_numbers = #tpu.dot_dimension_numbers<[1], [0], [0], [1], [0, 0, 1, 1], [], []>} : vector<32x16xbf16>, vector<16x32xbf16>, vector<32x32xf32> -> vector<32x32xf32>
    %70 = arith.addf %65, %69 : vector<32x32xf32>
    %71 = vector.extract_strided_slice %39 {offsets = [192, 0], sizes = [32, 16], strides = [1, 1]} : vector<288x16xf32> to vector<32x16xf32>
    %72 = vector.extract_strided_slice %36 {offsets = [96, 0], sizes = [16, 32], strides = [1, 1]} : vector<144x32xbf16> to vector<16x32xbf16>
    %73 = arith.truncf %71 : vector<32x16xf32> to vector<32x16xbf16>
    %cst_33 = arith.constant dense<0.000000e+00> : vector<32x32xf32>
    %74 = tpu.matmul %73, %72, %cst_33 {dimension_numbers = #tpu.dot_dimension_numbers<[1], [0], [0], [1], [0, 0, 1, 1], [], []>} : vector<32x16xbf16>, vector<16x32xbf16>, vector<32x32xf32> -> vector<32x32xf32>
    %75 = arith.addf %70, %74 : vector<32x32xf32>
    %76 = vector.extract_strided_slice %39 {offsets = [224, 0], sizes = [32, 16], strides = [1, 1]} : vector<288x16xf32> to vector<32x16xf32>
    %77 = vector.extract_strided_slice %36 {offsets = [112, 0], sizes = [16, 32], strides = [1, 1]} : vector<144x32xbf16> to vector<16x32xbf16>
    %78 = arith.truncf %76 : vector<32x16xf32> to vector<32x16xbf16>
    %cst_34 = arith.constant dense<0.000000e+00> : vector<32x32xf32>
    %79 = tpu.matmul %78, %77, %cst_34 {dimension_numbers = #tpu.dot_dimension_numbers<[1], [0], [0], [1], [0, 0, 1, 1], [], []>} : vector<32x16xbf16>, vector<16x32xbf16>, vector<32x32xf32> -> vector<32x32xf32>
    %80 = arith.addf %75, %79 : vector<32x32xf32>
    %81 = vector.extract_strided_slice %39 {offsets = [256, 0], sizes = [32, 16], strides = [1, 1]} : vector<288x16xf32> to vector<32x16xf32>
    %82 = vector.extract_strided_slice %36 {offsets = [128, 0], sizes = [16, 32], strides = [1, 1]} : vector<144x32xbf16> to vector<16x32xbf16>
    %83 = arith.truncf %81 : vector<32x16xf32> to vector<32x16xbf16>
    %cst_35 = arith.constant dense<0.000000e+00> : vector<32x32xf32>
    %84 = tpu.matmul %83, %82, %cst_35 {dimension_numbers = #tpu.dot_dimension_numbers<[1], [0], [0], [1], [0, 0, 1, 1], [], []>} : vector<32x16xbf16>, vector<16x32xbf16>, vector<32x32xf32> -> vector<32x32xf32>
    %85 = arith.addf %80, %84 : vector<32x32xf32>
    %cst_36 = arith.constant 0.000000e+00 : f32
    %86 = vector.broadcast %cst_36 : f32 to vector<32x32xf32>
    %87 = arith.maximumf %85, %86 : vector<32x32xf32>
    %c0_37 = arith.constant 0 : index
    %c0_38 = arith.constant 0 : index
    %88 = vector.load %arg8[%c0_37, %c0_38] : memref<288x32xbf16, #tpu.memory_space<vmem>>, vector<288x32xbf16>
    %c0_39 = arith.constant 0 : index
    %c0_40 = arith.constant 0 : index
    %89 = vector.load %arg11[%c0_39, %c0_40] : memref<288x32xbf16, #tpu.memory_space<vmem>>, vector<288x32xbf16>
    %c0_41 = arith.constant 0 : index
    %c0_42 = arith.constant 0 : index
    %90 = vector.load %arg12[%c0_41, %c0_42] : memref<1x32xf32, #tpu.memory_space<vmem>>, vector<1x32xf32>
    %91 = arith.truncf %87 : vector<32x32xf32> to vector<32x32xbf16>
    %cst_43 = arith.constant dense<0.000000e+00> : vector<288x32xf32>
    %92 = tpu.matmul %88, %91, %cst_43 {dimension_numbers = #tpu.dot_dimension_numbers<[1], [0], [0], [1], [0, 0, 1, 1], [], []>} : vector<288x32xbf16>, vector<32x32xbf16>, vector<288x32xf32> -> vector<288x32xf32>
    %93 = vector.extract_strided_slice %92 {offsets = [0, 0], sizes = [32, 32], strides = [1, 1]} : vector<288x32xf32> to vector<32x32xf32>
    %94 = vector.extract_strided_slice %89 {offsets = [0, 0], sizes = [32, 32], strides = [1, 1]} : vector<288x32xbf16> to vector<32x32xbf16>
    %95 = arith.truncf %93 : vector<32x32xf32> to vector<32x32xbf16>
    %cst_44 = arith.constant dense<0.000000e+00> : vector<32x32xf32>
    %96 = tpu.matmul %95, %94, %cst_44 {dimension_numbers = #tpu.dot_dimension_numbers<[1], [0], [0], [1], [0, 0, 1, 1], [], []>} : vector<32x32xbf16>, vector<32x32xbf16>, vector<32x32xf32> -> vector<32x32xf32>
    %97 = vector.broadcast %90 : vector<1x32xf32> to vector<32x32xf32>
    %98 = arith.addf %97, %96 : vector<32x32xf32>
    %99 = vector.extract_strided_slice %92 {offsets = [32, 0], sizes = [32, 32], strides = [1, 1]} : vector<288x32xf32> to vector<32x32xf32>
    %100 = vector.extract_strided_slice %89 {offsets = [32, 0], sizes = [32, 32], strides = [1, 1]} : vector<288x32xbf16> to vector<32x32xbf16>
    %101 = arith.truncf %99 : vector<32x32xf32> to vector<32x32xbf16>
    %cst_45 = arith.constant dense<0.000000e+00> : vector<32x32xf32>
    %102 = tpu.matmul %101, %100, %cst_45 {dimension_numbers = #tpu.dot_dimension_numbers<[1], [0], [0], [1], [0, 0, 1, 1], [], []>} : vector<32x32xbf16>, vector<32x32xbf16>, vector<32x32xf32> -> vector<32x32xf32>
    %103 = arith.addf %98, %102 : vector<32x32xf32>
    %104 = vector.extract_strided_slice %92 {offsets = [64, 0], sizes = [32, 32], strides = [1, 1]} : vector<288x32xf32> to vector<32x32xf32>
    %105 = vector.extract_strided_slice %89 {offsets = [64, 0], sizes = [32, 32], strides = [1, 1]} : vector<288x32xbf16> to vector<32x32xbf16>
    %106 = arith.truncf %104 : vector<32x32xf32> to vector<32x32xbf16>
    %cst_46 = arith.constant dense<0.000000e+00> : vector<32x32xf32>
    %107 = tpu.matmul %106, %105, %cst_46 {dimension_numbers = #tpu.dot_dimension_numbers<[1], [0], [0], [1], [0, 0, 1, 1], [], []>} : vector<32x32xbf16>, vector<32x32xbf16>, vector<32x32xf32> -> vector<32x32xf32>
    %108 = arith.addf %103, %107 : vector<32x32xf32>
    %109 = vector.extract_strided_slice %92 {offsets = [96, 0], sizes = [32, 32], strides = [1, 1]} : vector<288x32xf32> to vector<32x32xf32>
    %110 = vector.extract_strided_slice %89 {offsets = [96, 0], sizes = [32, 32], strides = [1, 1]} : vector<288x32xbf16> to vector<32x32xbf16>
    %111 = arith.truncf %109 : vector<32x32xf32> to vector<32x32xbf16>
    %cst_47 = arith.constant dense<0.000000e+00> : vector<32x32xf32>
    %112 = tpu.matmul %111, %110, %cst_47 {dimension_numbers = #tpu.dot_dimension_numbers<[1], [0], [0], [1], [0, 0, 1, 1], [], []>} : vector<32x32xbf16>, vector<32x32xbf16>, vector<32x32xf32> -> vector<32x32xf32>
    %113 = arith.addf %108, %112 : vector<32x32xf32>
    %114 = vector.extract_strided_slice %92 {offsets = [128, 0], sizes = [32, 32], strides = [1, 1]} : vector<288x32xf32> to vector<32x32xf32>
    %115 = vector.extract_strided_slice %89 {offsets = [128, 0], sizes = [32, 32], strides = [1, 1]} : vector<288x32xbf16> to vector<32x32xbf16>
    %116 = arith.truncf %114 : vector<32x32xf32> to vector<32x32xbf16>
    %cst_48 = arith.constant dense<0.000000e+00> : vector<32x32xf32>
    %117 = tpu.matmul %116, %115, %cst_48 {dimension_numbers = #tpu.dot_dimension_numbers<[1], [0], [0], [1], [0, 0, 1, 1], [], []>} : vector<32x32xbf16>, vector<32x32xbf16>, vector<32x32xf32> -> vector<32x32xf32>
    %118 = arith.addf %113, %117 : vector<32x32xf32>
    %119 = vector.extract_strided_slice %92 {offsets = [160, 0], sizes = [32, 32], strides = [1, 1]} : vector<288x32xf32> to vector<32x32xf32>
    %120 = vector.extract_strided_slice %89 {offsets = [160, 0], sizes = [32, 32], strides = [1, 1]} : vector<288x32xbf16> to vector<32x32xbf16>
    %121 = arith.truncf %119 : vector<32x32xf32> to vector<32x32xbf16>
    %cst_49 = arith.constant dense<0.000000e+00> : vector<32x32xf32>
    %122 = tpu.matmul %121, %120, %cst_49 {dimension_numbers = #tpu.dot_dimension_numbers<[1], [0], [0], [1], [0, 0, 1, 1], [], []>} : vector<32x32xbf16>, vector<32x32xbf16>, vector<32x32xf32> -> vector<32x32xf32>
    %123 = arith.addf %118, %122 : vector<32x32xf32>
    %124 = vector.extract_strided_slice %92 {offsets = [192, 0], sizes = [32, 32], strides = [1, 1]} : vector<288x32xf32> to vector<32x32xf32>
    %125 = vector.extract_strided_slice %89 {offsets = [192, 0], sizes = [32, 32], strides = [1, 1]} : vector<288x32xbf16> to vector<32x32xbf16>
    %126 = arith.truncf %124 : vector<32x32xf32> to vector<32x32xbf16>
    %cst_50 = arith.constant dense<0.000000e+00> : vector<32x32xf32>
    %127 = tpu.matmul %126, %125, %cst_50 {dimension_numbers = #tpu.dot_dimension_numbers<[1], [0], [0], [1], [0, 0, 1, 1], [], []>} : vector<32x32xbf16>, vector<32x32xbf16>, vector<32x32xf32> -> vector<32x32xf32>
    %128 = arith.addf %123, %127 : vector<32x32xf32>
    %129 = vector.extract_strided_slice %92 {offsets = [224, 0], sizes = [32, 32], strides = [1, 1]} : vector<288x32xf32> to vector<32x32xf32>
    %130 = vector.extract_strided_slice %89 {offsets = [224, 0], sizes = [32, 32], strides = [1, 1]} : vector<288x32xbf16> to vector<32x32xbf16>
    %131 = arith.truncf %129 : vector<32x32xf32> to vector<32x32xbf16>
    %cst_51 = arith.constant dense<0.000000e+00> : vector<32x32xf32>
    %132 = tpu.matmul %131, %130, %cst_51 {dimension_numbers = #tpu.dot_dimension_numbers<[1], [0], [0], [1], [0, 0, 1, 1], [], []>} : vector<32x32xbf16>, vector<32x32xbf16>, vector<32x32xf32> -> vector<32x32xf32>
    %133 = arith.addf %128, %132 : vector<32x32xf32>
    %134 = vector.extract_strided_slice %92 {offsets = [256, 0], sizes = [32, 32], strides = [1, 1]} : vector<288x32xf32> to vector<32x32xf32>
    %135 = vector.extract_strided_slice %89 {offsets = [256, 0], sizes = [32, 32], strides = [1, 1]} : vector<288x32xbf16> to vector<32x32xbf16>
    %136 = arith.truncf %134 : vector<32x32xf32> to vector<32x32xbf16>
    %cst_52 = arith.constant dense<0.000000e+00> : vector<32x32xf32>
    %137 = tpu.matmul %136, %135, %cst_52 {dimension_numbers = #tpu.dot_dimension_numbers<[1], [0], [0], [1], [0, 0, 1, 1], [], []>} : vector<32x32xbf16>, vector<32x32xbf16>, vector<32x32xf32> -> vector<32x32xf32>
    %138 = arith.addf %133, %137 : vector<32x32xf32>
    %cst_53 = arith.constant 0.000000e+00 : f32
    %139 = vector.broadcast %cst_53 : f32 to vector<32x32xf32>
    %140 = arith.maximumf %138, %139 : vector<32x32xf32>
    %c0_54 = arith.constant 0 : index
    %c0_55 = arith.constant 0 : index
    %141 = vector.load %arg13[%c0_54, %c0_55] : memref<16x32xbf16, #tpu.memory_space<vmem>>, vector<16x32xbf16>
    %142 = arith.truncf %34 : vector<32x16xf32> to vector<32x16xbf16>
    %cst_56 = arith.constant dense<0.000000e+00> : vector<32x32xf32>
    %143 = tpu.matmul %142, %141, %cst_56 {dimension_numbers = #tpu.dot_dimension_numbers<[1], [0], [0], [1], [0, 0, 1, 1], [], []>} : vector<32x16xbf16>, vector<16x32xbf16>, vector<32x32xf32> -> vector<32x32xf32>
    %c0_57 = arith.constant 0 : index
    %c0_58 = arith.constant 0 : index
    %144 = vector.load %arg14[%c0_57, %c0_58] : memref<1x32xf32, #tpu.memory_space<vmem>>, vector<1x32xf32>
    %145 = vector.broadcast %144 : vector<1x32xf32> to vector<32x32xf32>
    %146 = arith.addf %143, %145 : vector<32x32xf32>
    %cst_59 = arith.constant 0.000000e+00 : f32
    %147 = vector.broadcast %cst_59 : f32 to vector<32x32xf32>
    %148 = arith.maximumf %146, %147 : vector<32x32xf32>
    %149 = arith.addf %140, %148 : vector<32x32xf32>
    %c0_60 = arith.constant 0 : index
    %c0_61 = arith.constant 0 : index
    %150 = vector.load %arg15[%c0_60, %c0_61] : memref<32x32xbf16, #tpu.memory_space<vmem>>, vector<32x32xbf16>
    %151 = arith.truncf %149 : vector<32x32xf32> to vector<32x32xbf16>
    %cst_62 = arith.constant dense<0.000000e+00> : vector<32x32xf32>
    %152 = tpu.matmul %150, %151, %cst_62 {dimension_numbers = #tpu.dot_dimension_numbers<[1], [0], [0], [1], [0, 0, 1, 1], [], []>} : vector<32x32xbf16>, vector<32x32xbf16>, vector<32x32xf32> -> vector<32x32xf32>
    %153 = vector.extract_strided_slice %152 {offsets = [0, 0], sizes = [8, 32], strides = [1, 1]} : vector<32x32xf32> to vector<8x32xf32>
    %154 = vector.extract_strided_slice %152 {offsets = [8, 0], sizes = [8, 32], strides = [1, 1]} : vector<32x32xf32> to vector<8x32xf32>
    %155 = arith.maximumf %153, %154 : vector<8x32xf32>
    %156 = vector.extract_strided_slice %152 {offsets = [16, 0], sizes = [8, 32], strides = [1, 1]} : vector<32x32xf32> to vector<8x32xf32>
    %157 = vector.extract_strided_slice %152 {offsets = [24, 0], sizes = [8, 32], strides = [1, 1]} : vector<32x32xf32> to vector<8x32xf32>
    %158 = arith.maximumf %156, %157 : vector<8x32xf32>
    %159 = arith.maximumf %155, %158 : vector<8x32xf32>
    %c0_63 = arith.constant 0 : index
    %c0_64 = arith.constant 0 : index
    %160 = vector.load %arg16[%c0_63, %c0_64] : memref<72x8xbf16, #tpu.memory_space<vmem>>, vector<72x8xbf16>
    %c0_65 = arith.constant 0 : index
    %c0_66 = arith.constant 0 : index
    %161 = vector.load %arg17[%c0_65, %c0_66] : memref<288x64xbf16, #tpu.memory_space<vmem>>, vector<288x64xbf16>
    %c0_67 = arith.constant 0 : index
    %c0_68 = arith.constant 0 : index
    %162 = vector.load %arg18[%c0_67, %c0_68] : memref<1x64xf32, #tpu.memory_space<vmem>>, vector<1x64xf32>
    %163 = arith.truncf %159 : vector<8x32xf32> to vector<8x32xbf16>
    %cst_69 = arith.constant dense<0.000000e+00> : vector<72x32xf32>
    %164 = tpu.matmul %160, %163, %cst_69 {dimension_numbers = #tpu.dot_dimension_numbers<[1], [0], [0], [1], [0, 0, 1, 1], [], []>} : vector<72x8xbf16>, vector<8x32xbf16>, vector<72x32xf32> -> vector<72x32xf32>
    %165 = vector.extract_strided_slice %164 {offsets = [0, 0], sizes = [8, 32], strides = [1, 1]} : vector<72x32xf32> to vector<8x32xf32>
    %166 = vector.extract_strided_slice %161 {offsets = [0, 0], sizes = [32, 64], strides = [1, 1]} : vector<288x64xbf16> to vector<32x64xbf16>
    %167 = arith.truncf %165 : vector<8x32xf32> to vector<8x32xbf16>
    %cst_70 = arith.constant dense<0.000000e+00> : vector<8x64xf32>
    %168 = tpu.matmul %167, %166, %cst_70 {dimension_numbers = #tpu.dot_dimension_numbers<[1], [0], [0], [1], [0, 0, 1, 1], [], []>} : vector<8x32xbf16>, vector<32x64xbf16>, vector<8x64xf32> -> vector<8x64xf32>
    %169 = vector.broadcast %162 : vector<1x64xf32> to vector<8x64xf32>
    %170 = arith.addf %169, %168 : vector<8x64xf32>
    %171 = vector.extract_strided_slice %164 {offsets = [8, 0], sizes = [8, 32], strides = [1, 1]} : vector<72x32xf32> to vector<8x32xf32>
    %172 = vector.extract_strided_slice %161 {offsets = [32, 0], sizes = [32, 64], strides = [1, 1]} : vector<288x64xbf16> to vector<32x64xbf16>
    %173 = arith.truncf %171 : vector<8x32xf32> to vector<8x32xbf16>
    %cst_71 = arith.constant dense<0.000000e+00> : vector<8x64xf32>
    %174 = tpu.matmul %173, %172, %cst_71 {dimension_numbers = #tpu.dot_dimension_numbers<[1], [0], [0], [1], [0, 0, 1, 1], [], []>} : vector<8x32xbf16>, vector<32x64xbf16>, vector<8x64xf32> -> vector<8x64xf32>
    %175 = arith.addf %170, %174 : vector<8x64xf32>
    %176 = vector.extract_strided_slice %164 {offsets = [16, 0], sizes = [8, 32], strides = [1, 1]} : vector<72x32xf32> to vector<8x32xf32>
    %177 = vector.extract_strided_slice %161 {offsets = [64, 0], sizes = [32, 64], strides = [1, 1]} : vector<288x64xbf16> to vector<32x64xbf16>
    %178 = arith.truncf %176 : vector<8x32xf32> to vector<8x32xbf16>
    %cst_72 = arith.constant dense<0.000000e+00> : vector<8x64xf32>
    %179 = tpu.matmul %178, %177, %cst_72 {dimension_numbers = #tpu.dot_dimension_numbers<[1], [0], [0], [1], [0, 0, 1, 1], [], []>} : vector<8x32xbf16>, vector<32x64xbf16>, vector<8x64xf32> -> vector<8x64xf32>
    %180 = arith.addf %175, %179 : vector<8x64xf32>
    %181 = vector.extract_strided_slice %164 {offsets = [24, 0], sizes = [8, 32], strides = [1, 1]} : vector<72x32xf32> to vector<8x32xf32>
    %182 = vector.extract_strided_slice %161 {offsets = [96, 0], sizes = [32, 64], strides = [1, 1]} : vector<288x64xbf16> to vector<32x64xbf16>
    %183 = arith.truncf %181 : vector<8x32xf32> to vector<8x32xbf16>
    %cst_73 = arith.constant dense<0.000000e+00> : vector<8x64xf32>
    %184 = tpu.matmul %183, %182, %cst_73 {dimension_numbers = #tpu.dot_dimension_numbers<[1], [0], [0], [1], [0, 0, 1, 1], [], []>} : vector<8x32xbf16>, vector<32x64xbf16>, vector<8x64xf32> -> vector<8x64xf32>
    %185 = arith.addf %180, %184 : vector<8x64xf32>
    %186 = vector.extract_strided_slice %164 {offsets = [32, 0], sizes = [8, 32], strides = [1, 1]} : vector<72x32xf32> to vector<8x32xf32>
    %187 = vector.extract_strided_slice %161 {offsets = [128, 0], sizes = [32, 64], strides = [1, 1]} : vector<288x64xbf16> to vector<32x64xbf16>
    %188 = arith.truncf %186 : vector<8x32xf32> to vector<8x32xbf16>
    %cst_74 = arith.constant dense<0.000000e+00> : vector<8x64xf32>
    %189 = tpu.matmul %188, %187, %cst_74 {dimension_numbers = #tpu.dot_dimension_numbers<[1], [0], [0], [1], [0, 0, 1, 1], [], []>} : vector<8x32xbf16>, vector<32x64xbf16>, vector<8x64xf32> -> vector<8x64xf32>
    %190 = arith.addf %185, %189 : vector<8x64xf32>
    %191 = vector.extract_strided_slice %164 {offsets = [40, 0], sizes = [8, 32], strides = [1, 1]} : vector<72x32xf32> to vector<8x32xf32>
    %192 = vector.extract_strided_slice %161 {offsets = [160, 0], sizes = [32, 64], strides = [1, 1]} : vector<288x64xbf16> to vector<32x64xbf16>
    %193 = arith.truncf %191 : vector<8x32xf32> to vector<8x32xbf16>
    %cst_75 = arith.constant dense<0.000000e+00> : vector<8x64xf32>
    %194 = tpu.matmul %193, %192, %cst_75 {dimension_numbers = #tpu.dot_dimension_numbers<[1], [0], [0], [1], [0, 0, 1, 1], [], []>} : vector<8x32xbf16>, vector<32x64xbf16>, vector<8x64xf32> -> vector<8x64xf32>
    %195 = arith.addf %190, %194 : vector<8x64xf32>
    %196 = vector.extract_strided_slice %164 {offsets = [48, 0], sizes = [8, 32], strides = [1, 1]} : vector<72x32xf32> to vector<8x32xf32>
    %197 = vector.extract_strided_slice %161 {offsets = [192, 0], sizes = [32, 64], strides = [1, 1]} : vector<288x64xbf16> to vector<32x64xbf16>
    %198 = arith.truncf %196 : vector<8x32xf32> to vector<8x32xbf16>
    %cst_76 = arith.constant dense<0.000000e+00> : vector<8x64xf32>
    %199 = tpu.matmul %198, %197, %cst_76 {dimension_numbers = #tpu.dot_dimension_numbers<[1], [0], [0], [1], [0, 0, 1, 1], [], []>} : vector<8x32xbf16>, vector<32x64xbf16>, vector<8x64xf32> -> vector<8x64xf32>
    %200 = arith.addf %195, %199 : vector<8x64xf32>
    %201 = vector.extract_strided_slice %164 {offsets = [56, 0], sizes = [8, 32], strides = [1, 1]} : vector<72x32xf32> to vector<8x32xf32>
    %202 = vector.extract_strided_slice %161 {offsets = [224, 0], sizes = [32, 64], strides = [1, 1]} : vector<288x64xbf16> to vector<32x64xbf16>
    %203 = arith.truncf %201 : vector<8x32xf32> to vector<8x32xbf16>
    %cst_77 = arith.constant dense<0.000000e+00> : vector<8x64xf32>
    %204 = tpu.matmul %203, %202, %cst_77 {dimension_numbers = #tpu.dot_dimension_numbers<[1], [0], [0], [1], [0, 0, 1, 1], [], []>} : vector<8x32xbf16>, vector<32x64xbf16>, vector<8x64xf32> -> vector<8x64xf32>
    %205 = arith.addf %200, %204 : vector<8x64xf32>
    %206 = vector.extract_strided_slice %164 {offsets = [64, 0], sizes = [8, 32], strides = [1, 1]} : vector<72x32xf32> to vector<8x32xf32>
    %207 = vector.extract_strided_slice %161 {offsets = [256, 0], sizes = [32, 64], strides = [1, 1]} : vector<288x64xbf16> to vector<32x64xbf16>
    %208 = arith.truncf %206 : vector<8x32xf32> to vector<8x32xbf16>
    %cst_78 = arith.constant dense<0.000000e+00> : vector<8x64xf32>
    %209 = tpu.matmul %208, %207, %cst_78 {dimension_numbers = #tpu.dot_dimension_numbers<[1], [0], [0], [1], [0, 0, 1, 1], [], []>} : vector<8x32xbf16>, vector<32x64xbf16>, vector<8x64xf32> -> vector<8x64xf32>
    %210 = arith.addf %205, %209 : vector<8x64xf32>
    %cst_79 = arith.constant 0.000000e+00 : f32
    %211 = vector.broadcast %cst_79 : f32 to vector<8x64xf32>
    %212 = arith.maximumf %210, %211 : vector<8x64xf32>
    %c0_80 = arith.constant 0 : index
    %c0_81 = arith.constant 0 : index
    %213 = vector.load %arg16[%c0_80, %c0_81] : memref<72x8xbf16, #tpu.memory_space<vmem>>, vector<72x8xbf16>
    %c0_82 = arith.constant 0 : index
    %c0_83 = arith.constant 0 : index
    %214 = vector.load %arg19[%c0_82, %c0_83] : memref<576x64xbf16, #tpu.memory_space<vmem>>, vector<576x64xbf16>
    %c0_84 = arith.constant 0 : index
    %c0_85 = arith.constant 0 : index
    %215 = vector.load %arg20[%c0_84, %c0_85] : memref<1x64xf32, #tpu.memory_space<vmem>>, vector<1x64xf32>
    %216 = arith.truncf %212 : vector<8x64xf32> to vector<8x64xbf16>
    %cst_86 = arith.constant dense<0.000000e+00> : vector<72x64xf32>
    %217 = tpu.matmul %213, %216, %cst_86 {dimension_numbers = #tpu.dot_dimension_numbers<[1], [0], [0], [1], [0, 0, 1, 1], [], []>} : vector<72x8xbf16>, vector<8x64xbf16>, vector<72x64xf32> -> vector<72x64xf32>
    %218 = vector.extract_strided_slice %217 {offsets = [0, 0], sizes = [8, 64], strides = [1, 1]} : vector<72x64xf32> to vector<8x64xf32>
    %219 = vector.extract_strided_slice %214 {offsets = [0, 0], sizes = [64, 64], strides = [1, 1]} : vector<576x64xbf16> to vector<64x64xbf16>
    %220 = arith.truncf %218 : vector<8x64xf32> to vector<8x64xbf16>
    %cst_87 = arith.constant dense<0.000000e+00> : vector<8x64xf32>
    %221 = tpu.matmul %220, %219, %cst_87 {dimension_numbers = #tpu.dot_dimension_numbers<[1], [0], [0], [1], [0, 0, 1, 1], [], []>} : vector<8x64xbf16>, vector<64x64xbf16>, vector<8x64xf32> -> vector<8x64xf32>
    %222 = vector.broadcast %215 : vector<1x64xf32> to vector<8x64xf32>
    %223 = arith.addf %222, %221 : vector<8x64xf32>
    %224 = vector.extract_strided_slice %217 {offsets = [8, 0], sizes = [8, 64], strides = [1, 1]} : vector<72x64xf32> to vector<8x64xf32>
    %225 = vector.extract_strided_slice %214 {offsets = [64, 0], sizes = [64, 64], strides = [1, 1]} : vector<576x64xbf16> to vector<64x64xbf16>
    %226 = arith.truncf %224 : vector<8x64xf32> to vector<8x64xbf16>
    %cst_88 = arith.constant dense<0.000000e+00> : vector<8x64xf32>
    %227 = tpu.matmul %226, %225, %cst_88 {dimension_numbers = #tpu.dot_dimension_numbers<[1], [0], [0], [1], [0, 0, 1, 1], [], []>} : vector<8x64xbf16>, vector<64x64xbf16>, vector<8x64xf32> -> vector<8x64xf32>
    %228 = arith.addf %223, %227 : vector<8x64xf32>
    %229 = vector.extract_strided_slice %217 {offsets = [16, 0], sizes = [8, 64], strides = [1, 1]} : vector<72x64xf32> to vector<8x64xf32>
    %230 = vector.extract_strided_slice %214 {offsets = [128, 0], sizes = [64, 64], strides = [1, 1]} : vector<576x64xbf16> to vector<64x64xbf16>
    %231 = arith.truncf %229 : vector<8x64xf32> to vector<8x64xbf16>
    %cst_89 = arith.constant dense<0.000000e+00> : vector<8x64xf32>
    %232 = tpu.matmul %231, %230, %cst_89 {dimension_numbers = #tpu.dot_dimension_numbers<[1], [0], [0], [1], [0, 0, 1, 1], [], []>} : vector<8x64xbf16>, vector<64x64xbf16>, vector<8x64xf32> -> vector<8x64xf32>
    %233 = arith.addf %228, %232 : vector<8x64xf32>
    %234 = vector.extract_strided_slice %217 {offsets = [24, 0], sizes = [8, 64], strides = [1, 1]} : vector<72x64xf32> to vector<8x64xf32>
    %235 = vector.extract_strided_slice %214 {offsets = [192, 0], sizes = [64, 64], strides = [1, 1]} : vector<576x64xbf16> to vector<64x64xbf16>
    %236 = arith.truncf %234 : vector<8x64xf32> to vector<8x64xbf16>
    %cst_90 = arith.constant dense<0.000000e+00> : vector<8x64xf32>
    %237 = tpu.matmul %236, %235, %cst_90 {dimension_numbers = #tpu.dot_dimension_numbers<[1], [0], [0], [1], [0, 0, 1, 1], [], []>} : vector<8x64xbf16>, vector<64x64xbf16>, vector<8x64xf32> -> vector<8x64xf32>
    %238 = arith.addf %233, %237 : vector<8x64xf32>
    %239 = vector.extract_strided_slice %217 {offsets = [32, 0], sizes = [8, 64], strides = [1, 1]} : vector<72x64xf32> to vector<8x64xf32>
    %240 = vector.extract_strided_slice %214 {offsets = [256, 0], sizes = [64, 64], strides = [1, 1]} : vector<576x64xbf16> to vector<64x64xbf16>
    %241 = arith.truncf %239 : vector<8x64xf32> to vector<8x64xbf16>
    %cst_91 = arith.constant dense<0.000000e+00> : vector<8x64xf32>
    %242 = tpu.matmul %241, %240, %cst_91 {dimension_numbers = #tpu.dot_dimension_numbers<[1], [0], [0], [1], [0, 0, 1, 1], [], []>} : vector<8x64xbf16>, vector<64x64xbf16>, vector<8x64xf32> -> vector<8x64xf32>
    %243 = arith.addf %238, %242 : vector<8x64xf32>
    %244 = vector.extract_strided_slice %217 {offsets = [40, 0], sizes = [8, 64], strides = [1, 1]} : vector<72x64xf32> to vector<8x64xf32>
    %245 = vector.extract_strided_slice %214 {offsets = [320, 0], sizes = [64, 64], strides = [1, 1]} : vector<576x64xbf16> to vector<64x64xbf16>
    %246 = arith.truncf %244 : vector<8x64xf32> to vector<8x64xbf16>
    %cst_92 = arith.constant dense<0.000000e+00> : vector<8x64xf32>
    %247 = tpu.matmul %246, %245, %cst_92 {dimension_numbers = #tpu.dot_dimension_numbers<[1], [0], [0], [1], [0, 0, 1, 1], [], []>} : vector<8x64xbf16>, vector<64x64xbf16>, vector<8x64xf32> -> vector<8x64xf32>
    %248 = arith.addf %243, %247 : vector<8x64xf32>
    %249 = vector.extract_strided_slice %217 {offsets = [48, 0], sizes = [8, 64], strides = [1, 1]} : vector<72x64xf32> to vector<8x64xf32>
    %250 = vector.extract_strided_slice %214 {offsets = [384, 0], sizes = [64, 64], strides = [1, 1]} : vector<576x64xbf16> to vector<64x64xbf16>
    %251 = arith.truncf %249 : vector<8x64xf32> to vector<8x64xbf16>
    %cst_93 = arith.constant dense<0.000000e+00> : vector<8x64xf32>
    %252 = tpu.matmul %251, %250, %cst_93 {dimension_numbers = #tpu.dot_dimension_numbers<[1], [0], [0], [1], [0, 0, 1, 1], [], []>} : vector<8x64xbf16>, vector<64x64xbf16>, vector<8x64xf32> -> vector<8x64xf32>
    %253 = arith.addf %248, %252 : vector<8x64xf32>
    %254 = vector.extract_strided_slice %217 {offsets = [56, 0], sizes = [8, 64], strides = [1, 1]} : vector<72x64xf32> to vector<8x64xf32>
    %255 = vector.extract_strided_slice %214 {offsets = [448, 0], sizes = [64, 64], strides = [1, 1]} : vector<576x64xbf16> to vector<64x64xbf16>
    %256 = arith.truncf %254 : vector<8x64xf32> to vector<8x64xbf16>
    %cst_94 = arith.constant dense<0.000000e+00> : vector<8x64xf32>
    %257 = tpu.matmul %256, %255, %cst_94 {dimension_numbers = #tpu.dot_dimension_numbers<[1], [0], [0], [1], [0, 0, 1, 1], [], []>} : vector<8x64xbf16>, vector<64x64xbf16>, vector<8x64xf32> -> vector<8x64xf32>
    %258 = arith.addf %253, %257 : vector<8x64xf32>
    %259 = vector.extract_strided_slice %217 {offsets = [64, 0], sizes = [8, 64], strides = [1, 1]} : vector<72x64xf32> to vector<8x64xf32>
    %260 = vector.extract_strided_slice %214 {offsets = [512, 0], sizes = [64, 64], strides = [1, 1]} : vector<576x64xbf16> to vector<64x64xbf16>
    %261 = arith.truncf %259 : vector<8x64xf32> to vector<8x64xbf16>
    %cst_95 = arith.constant dense<0.000000e+00> : vector<8x64xf32>
    %262 = tpu.matmul %261, %260, %cst_95 {dimension_numbers = #tpu.dot_dimension_numbers<[1], [0], [0], [1], [0, 0, 1, 1], [], []>} : vector<8x64xbf16>, vector<64x64xbf16>, vector<8x64xf32> -> vector<8x64xf32>
    %263 = arith.addf %258, %262 : vector<8x64xf32>
    %cst_96 = arith.constant 0.000000e+00 : f32
    %264 = vector.broadcast %cst_96 : f32 to vector<8x64xf32>
    %265 = arith.maximumf %263, %264 : vector<8x64xf32>
    %c0_97 = arith.constant 0 : index
    %c0_98 = arith.constant 0 : index
    %266 = vector.load %arg21[%c0_97, %c0_98] : memref<32x64xbf16, #tpu.memory_space<vmem>>, vector<32x64xbf16>
    %267 = arith.truncf %159 : vector<8x32xf32> to vector<8x32xbf16>
    %cst_99 = arith.constant dense<0.000000e+00> : vector<8x64xf32>
    %268 = tpu.matmul %267, %266, %cst_99 {dimension_numbers = #tpu.dot_dimension_numbers<[1], [0], [0], [1], [0, 0, 1, 1], [], []>} : vector<8x32xbf16>, vector<32x64xbf16>, vector<8x64xf32> -> vector<8x64xf32>
    %c0_100 = arith.constant 0 : index
    %c0_101 = arith.constant 0 : index
    %269 = vector.load %arg22[%c0_100, %c0_101] : memref<1x64xf32, #tpu.memory_space<vmem>>, vector<1x64xf32>
    %270 = vector.broadcast %269 : vector<1x64xf32> to vector<8x64xf32>
    %271 = arith.addf %268, %270 : vector<8x64xf32>
    %cst_102 = arith.constant 0.000000e+00 : f32
    %272 = vector.broadcast %cst_102 : f32 to vector<8x64xf32>
    %273 = arith.maximumf %271, %272 : vector<8x64xf32>
    %274 = arith.addf %265, %273 : vector<8x64xf32>
    %c0_103 = arith.constant 0 : index
    %c0_104 = arith.constant 0 : index
    %275 = vector.load %arg23[%c0_103, %c0_104] : memref<2x8xbf16, #tpu.memory_space<vmem>>, vector<2x8xbf16>
    %276 = arith.truncf %274 : vector<8x64xf32> to vector<8x64xbf16>
    %cst_105 = arith.constant dense<0.000000e+00> : vector<2x64xf32>
    %277 = tpu.matmul %275, %276, %cst_105 {dimension_numbers = #tpu.dot_dimension_numbers<[1], [0], [0], [1], [0, 0, 1, 1], [], []>} : vector<2x8xbf16>, vector<8x64xbf16>, vector<2x64xf32> -> vector<2x64xf32>
    %c0_106 = arith.constant 0 : index
    %c0_107 = arith.constant 0 : index
    %278 = vector.load %arg24[%c0_106, %c0_107] : memref<64x2xbf16, #tpu.memory_space<vmem>>, vector<64x2xbf16>
    %279 = arith.truncf %277 : vector<2x64xf32> to vector<2x64xbf16>
    %cst_108 = arith.constant dense<0.000000e+00> : vector<2x2xf32>
    %280 = tpu.matmul %279, %278, %cst_108 {dimension_numbers = #tpu.dot_dimension_numbers<[1], [0], [0], [1], [0, 0, 1, 1], [], []>} : vector<2x64xbf16>, vector<64x2xbf16>, vector<2x2xf32> -> vector<2x2xf32>
    %c0_109 = arith.constant 0 : index
    %c0_110 = arith.constant 0 : index
    %281 = vector.load %arg25[%c0_109, %c0_110] : memref<1x2xf32, #tpu.memory_space<vmem>>, vector<1x2xf32>
    %282 = vector.broadcast %281 : vector<1x2xf32> to vector<2x2xf32>
    %283 = arith.addf %280, %282 : vector<2x2xf32>
    %cst_111 = arith.constant dense<0xFF800000> : vector<2xf32>
    %284 = vector.multi_reduction <maximumf>, %283, %cst_111 [1] : vector<2x2xf32> to vector<2xf32>
    %285 = vector.shape_cast %284 : vector<2xf32> to vector<2x1xf32>
    %286 = vector.broadcast %285 : vector<2x1xf32> to vector<2x2xf32>
    %287 = arith.subf %283, %286 : vector<2x2xf32>
    %288 = math.exp %287 : vector<2x2xf32>
    %cst_112 = arith.constant dense<0.000000e+00> : vector<2xf32>
    %289 = vector.multi_reduction <add>, %288, %cst_112 [1] : vector<2x2xf32> to vector<2xf32>
    %290 = vector.shape_cast %289 : vector<2xf32> to vector<2x1xf32>
    %291 = math.log %290 : vector<2x1xf32>
    %292 = vector.broadcast %291 : vector<2x1xf32> to vector<2x2xf32>
    %293 = arith.subf %287, %292 : vector<2x2xf32>
    %c0_113 = arith.constant 0 : index
    %c0_114 = arith.constant 0 : index
    %294 = vector.load %arg26[%c0_113, %c0_114] : memref<2x2xf32, #tpu.memory_space<vmem>>, vector<2x2xf32>
    tpu.vector_store %arg26[%c0_113, %c0_114], %293 {strides = array<i32>} : memref<2x2xf32, #tpu.memory_space<vmem>>, vector<2x2xf32>,
    return
  }
}

</mosaic_0001>

<llo_original>
// kernel: _forward_impl.1
$region0: #{_forward_impl.1}
  #allocation0 [shape = 'u32[]', space=smem, size = 0x4, offset = 0x4, fixed_abs, tag = 'smem constant byte address 0x4 - core index']
  #allocation1 [shape = 'u32[144,128]{1,0:T(1,128)}', space=vmem, size = 0x12000, scoped, tag = 'internal scratch']
  %s0 = inlined_call_operand.vmem [shape: f32[128,90], index: 0, kind: input, shape index: {}]
  %s1 = inlined_call_operand.vmem [shape: f32[128,1], index: 1, kind: input, shape index: {}]
  %s2 = inlined_call_operand.vmem [shape: bf16[90,144], index: 2, kind: input, shape index: {}]
  %s3 = inlined_call_operand.vmem [shape: bf16[144,16], index: 3, kind: input, shape index: {}]
  %s4 = inlined_call_operand.vmem [shape: f32[1,16], index: 4, kind: input, shape index: {}]
  %s5 = inlined_call_operand.vmem [shape: f32[1,16], index: 5, kind: input, shape index: {}]
  %s6 = inlined_call_operand.vmem [shape: f32[1,16], index: 6, kind: input, shape index: {}]
  %s7 = inlined_call_operand.vmem [shape: bf16[128,128], index: 7, kind: input, shape index: {}]
  %s8 = inlined_call_operand.vmem [shape: bf16[288,32], index: 8, kind: input, shape index: {}]
  %s9 = inlined_call_operand.vmem [shape: bf16[144,32], index: 9, kind: input, shape index: {}]
  %s10 = inlined_call_operand.vmem [shape: f32[1,32], index: 10, kind: input, shape index: {}]
  %s11 = inlined_call_operand.vmem [shape: bf16[288,32], index: 11, kind: input, shape index: {}]
  %s12 = inlined_call_operand.vmem [shape: f32[1,32], index: 12, kind: input, shape index: {}]
  %s13 = inlined_call_operand.vmem [shape: bf16[16,32], index: 13, kind: input, shape index: {}]
  %s14 = inlined_call_operand.vmem [shape: f32[1,32], index: 14, kind: input, shape index: {}]
  %s15 = inlined_call_operand.vmem [shape: bf16[32,32], index: 15, kind: input, shape index: {}]
  %s16 = inlined_call_operand.vmem [shape: bf16[72,8], index: 16, kind: input, shape index: {}]
  %s17 = inlined_call_operand.vmem [shape: bf16[288,64], index: 17, kind: input, shape index: {}]
  %s18 = inlined_call_operand.vmem [shape: f32[1,64], index: 18, kind: input, shape index: {}]
  %s19 = inlined_call_operand.vmem [shape: bf16[576,64], index: 19, kind: input, shape index: {}]
  %s20 = inlined_call_operand.vmem [shape: f32[1,64], index: 20, kind: input, shape index: {}]
  %s21 = inlined_call_operand.vmem [shape: bf16[32,64], index: 21, kind: input, shape index: {}]
  %s22 = inlined_call_operand.vmem [shape: f32[1,64], index: 22, kind: input, shape index: {}]
  %s23 = inlined_call_operand.vmem [shape: bf16[2,8], index: 23, kind: input, shape index: {}]
  %s24 = inlined_call_operand.vmem [shape: bf16[64,2], index: 24, kind: input, shape index: {}]
  %s25 = inlined_call_operand.vmem [shape: f32[1,2], index: 25, kind: input, shape index: {}]
  %s26 = inlined_call_operand.hbm [shape: f32[2,2], index: 26, kind: output, shape index: {}]
  %s27 = sld [smem:[#allocation0]]
  $region114: #{_forward_impl.1} parent=0
    _
  %s29 = ssub.s32 1, %s27
  %s30 = scalar_select 0, %s29, %s27
  $region1: #{_forward_impl.1} parent=0
    #allocation2 [shape = 'u8[1024]{0}', space=vmem, size = 0x400, scoped, tag = 'output window, operand 0, single buffered']
    #allocation3 [shape = 's32[1]{0}', space=sflag, size = 0x4, scoped, tag = 'scoped memory for _forward_impl.1']
    %31 = vsyncpa [#allocation3], 0
    // Predicated region
    $region2: #{_forward_impl.1} parent=1 // pred_check
      _
    $region3: #{_forward_impl.1} parent=1 // pred_check_branch
      %33 = sbr.rel (0) target = $region5
    $region4: #{_forward_impl.1} parent=1 // pred_region
      _
    $region5: #{_forward_impl.1} parent=1 // pred_fallthru
      _
    // Predicated region
    $region6: #{_forward_impl.1} parent=1 // pred_check
      _
    $region7: #{_forward_impl.1} parent=1 // pred_check_branch
      %35 = sbr.rel (0) target = $region9
    $region8: #{_forward_impl.1} parent=1 // pred_region
      _
    $region9: #{_forward_impl.1} parent=1 // pred_fallthru
      _
    // Predicated region
    $region10: #{_forward_impl.1} parent=1 // pred_check
      _
    $region11: #{_forward_impl.1} parent=1 // pred_check_branch
      %37 = sbr.rel (0) target = $region13
    $region12: #{_forward_impl.1} parent=1 // pred_region
      _
    $region13: #{_forward_impl.1} parent=1 // pred_fallthru
      _
    // Predicated region
    $region14: #{_forward_impl.1} parent=1 // pred_check
      _
    $region15: #{_forward_impl.1} parent=1 // pred_check_branch
      %39 = sbr.rel (0) target = $region17
    $region16: #{_forward_impl.1} parent=1 // pred_region
      _
    $region17: #{_forward_impl.1} parent=1 // pred_fallthru
      _
    // Predicated region
    $region18: #{_forward_impl.1} parent=1 // pred_check
      _
    $region19: #{_forward_impl.1} parent=1 // pred_check_branch
      %41 = sbr.rel (0) target = $region21
    $region20: #{_forward_impl.1} parent=1 // pred_region
      _
    $region21: #{_forward_impl.1} parent=1 // pred_fallthru
      _
    // Predicated region
    $region22: #{_forward_impl.1} parent=1 // pred_check
      _
    $region23: #{_forward_impl.1} parent=1 // pred_check_branch
      %43 = sbr.rel (0) target = $region25
    $region24: #{_forward_impl.1} parent=1 // pred_region
      _
    $region25: #{_forward_impl.1} parent=1 // pred_fallthru
      _
    // Predicated region
    $region26: #{_forward_impl.1} parent=1 // pred_check
      _
    $region27: #{_forward_impl.1} parent=1 // pred_check_branch
      %45 = sbr.rel (0) target = $region29
    $region28: #{_forward_impl.1} parent=1 // pred_region
      _
    $region29: #{_forward_impl.1} parent=1 // pred_fallthru
      _
    // Predicated region
    $region30: #{_forward_impl.1} parent=1 // pred_check
      _
    $region31: #{_forward_impl.1} parent=1 // pred_check_branch
      %47 = sbr.rel (0) target = $region33
    $region32: #{_forward_impl.1} parent=1 // pred_region
      _
    $region33: #{_forward_impl.1} parent=1 // pred_fallthru
      _
    // Predicated region
    $region34: #{_forward_impl.1} parent=1 // pred_check
      _
    $region35: #{_forward_impl.1} parent=1 // pred_check_branch
      %49 = sbr.rel (0) target = $region37
    $region36: #{_forward_impl.1} parent=1 // pred_region
      _
    $region37: #{_forward_impl.1} parent=1 // pred_fallthru
      _
    // Predicated region
    $region38: #{_forward_impl.1} parent=1 // pred_check
      _
    $region39: #{_forward_impl.1} parent=1 // pred_check_branch
      %51 = sbr.rel (0) target = $region41
    $region40: #{_forward_impl.1} parent=1 // pred_region
      _
    $region41: #{_forward_impl.1} parent=1 // pred_fallthru
      _
    // Predicated region
    $region42: #{_forward_impl.1} parent=1 // pred_check
      _
    $region43: #{_forward_impl.1} parent=1 // pred_check_branch
      %53 = sbr.rel (0) target = $region45
    $region44: #{_forward_impl.1} parent=1 // pred_region
      _
    $region45: #{_forward_impl.1} parent=1 // pred_fallthru
      _
    // Predicated region
    $region46: #{_forward_impl.1} parent=1 // pred_check
      _
    $region47: #{_forward_impl.1} parent=1 // pred_check_branch
      %55 = sbr.rel (0) target = $region49
    $region48: #{_forward_impl.1} parent=1 // pred_region
      _
    $region49: #{_forward_impl.1} parent=1 // pred_fallthru
      _
    // Predicated region
    $region50: #{_forward_impl.1} parent=1 // pred_check
      _
    $region51: #{_forward_impl.1} parent=1 // pred_check_branch
      %57 = sbr.rel (0) target = $region53
    $region52: #{_forward_impl.1} parent=1 // pred_region
      _
    $region53: #{_forward_impl.1} parent=1 // pred_fallthru
      _
    // Predicated region
    $region54: #{_forward_impl.1} parent=1 // pred_check
      _
    $region55: #{_forward_impl.1} parent=1 // pred_check_branch
      %59 = sbr.rel (0) target = $region57
    $region56: #{_forward_impl.1} parent=1 // pred_region
      _
    $region57: #{_forward_impl.1} parent=1 // pred_fallthru
      _
    // Predicated region
    $region58: #{_forward_impl.1} parent=1 // pred_check
      _
    $region59: #{_forward_impl.1} parent=1 // pred_check_branch
      %61 = sbr.rel (0) target = $region61
    $region60: #{_forward_impl.1} parent=1 // pred_region
      _
    $region61: #{_forward_impl.1} parent=1 // pred_fallthru
      _
    // Predicated region
    $region62: #{_forward_impl.1} parent=1 // pred_check
      _
    $region63: #{_forward_impl.1} parent=1 // pred_check_branch
      %63 = sbr.rel (0) target = $region65
    $region64: #{_forward_impl.1} parent=1 // pred_region
      _
    $region65: #{_forward_impl.1} parent=1 // pred_fallthru
      _
    // Predicated region
    $region66: #{_forward_impl.1} parent=1 // pred_check
      _
    $region67: #{_forward_impl.1} parent=1 // pred_check_branch
      %65 = sbr.rel (0) target = $region69
    $region68: #{_forward_impl.1} parent=1 // pred_region
      _
    $region69: #{_forward_impl.1} parent=1 // pred_fallthru
      _
    // Predicated region
    $region70: #{_forward_impl.1} parent=1 // pred_check
      _
    $region71: #{_forward_impl.1} parent=1 // pred_check_branch
      %67 = sbr.rel (0) target = $region73
    $region72: #{_forward_impl.1} parent=1 // pred_region
      _
    $region73: #{_forward_impl.1} parent=1 // pred_fallthru
      _
    // Predicated region
    $region74: #{_forward_impl.1} parent=1 // pred_check
      _
    $region75: #{_forward_impl.1} parent=1 // pred_check_branch
      %69 = sbr.rel (0) target = $region77
    $region76: #{_forward_impl.1} parent=1 // pred_region
      _
    $region77: #{_forward_impl.1} parent=1 // pred_fallthru
      _
    // Predicated region
    $region78: #{_forward_impl.1} parent=1 // pred_check
      _
    $region79: #{_forward_impl.1} parent=1 // pred_check_branch
      %71 = sbr.rel (0) target = $region81
    $region80: #{_forward_impl.1} parent=1 // pred_region
      _
    $region81: #{_forward_impl.1} parent=1 // pred_fallthru
      _
    // Predicated region
    $region82: #{_forward_impl.1} parent=1 // pred_check
      _
    $region83: #{_forward_impl.1} parent=1 // pred_check_branch
      %73 = sbr.rel (0) target = $region85
    $region84: #{_forward_impl.1} parent=1 // pred_region
      _
    $region85: #{_forward_impl.1} parent=1 // pred_fallthru
      _
    // Predicated region
    $region86: #{_forward_impl.1} parent=1 // pred_check
      _
    $region87: #{_forward_impl.1} parent=1 // pred_check_branch
      %75 = sbr.rel (0) target = $region89
    $region88: #{_forward_impl.1} parent=1 // pred_region
      _
    $region89: #{_forward_impl.1} parent=1 // pred_fallthru
      _
    // Predicated region
    $region90: #{_forward_impl.1} parent=1 // pred_check
      _
    $region91: #{_forward_impl.1} parent=1 // pred_check_branch
      %77 = sbr.rel (0) target = $region93
    $region92: #{_forward_impl.1} parent=1 // pred_region
      _
    $region93: #{_forward_impl.1} parent=1 // pred_fallthru
      _
    // Predicated region
    $region94: #{_forward_impl.1} parent=1 // pred_check
      _
    $region95: #{_forward_impl.1} parent=1 // pred_check_branch
      %79 = sbr.rel (0) target = $region97
    $region96: #{_forward_impl.1} parent=1 // pred_region
      _
    $region97: #{_forward_impl.1} parent=1 // pred_fallthru
      _
    // Predicated region
    $region98: #{_forward_impl.1} parent=1 // pred_check
      _
    $region99: #{_forward_impl.1} parent=1 // pred_check_branch
      %81 = sbr.rel (0) target = $region101
    $region100: #{_forward_impl.1} parent=1 // pred_region
      _
    $region101: #{_forward_impl.1} parent=1 // pred_fallthru
      _
    // Predicated region
    $region102: #{_forward_impl.1} parent=1 // pred_check
      _
    $region103: #{_forward_impl.1} parent=1 // pred_check_branch
      %83 = sbr.rel (0) target = $region105
    $region104: #{_forward_impl.1} parent=1 // pred_region
      _
    $region105: #{_forward_impl.1} parent=1 // pred_fallthru
      _
    %v85 = vld [vmem:[%s0] sm:$0xff]
    %v86 = vld [vmem:[%s0 + $0x8] sm:$0xff]
    %v87 = vld [vmem:[%s0 + $0x10] sm:$0xff]
    %v88 = vld [vmem:[%s0 + $0x18] sm:$0xff]
    %v89 = vld [vmem:[%s0 + $0x20] sm:$0xff]
    %v90 = vld [vmem:[%s0 + $0x28] sm:$0xff]
    %v91 = vld [vmem:[%s0 + $0x30] sm:$0xff]
    %v92 = vld [vmem:[%s0 + $0x38] sm:$0xff]
    %v93 = vld [vmem:[%s0 + $0x40] sm:$0xff]
    %v94 = vld [vmem:[%s0 + $0x48] sm:$0xff]
    %v95 = vld [vmem:[%s0 + $0x50] sm:$0xff]
    %v96 = vld [vmem:[%s0 + $0x58] sm:$0xff]
    %v97 = vld [vmem:[%s0 + $0x60] sm:$0xff]
    %v98 = vld [vmem:[%s0 + $0x68] sm:$0xff]
    %v99 = vld [vmem:[%s0 + $0x70] sm:$0xff]
    %v100 = vld [vmem:[%s0 + $0x78] sm:$0xff]
    %v101 = vld [vmem:[%s2] sm:$0xff]
    %v102 = vld [vmem:[%s2 + $0x8] sm:$0xff]
    %v103 = vld [vmem:[%s2 + $0x10] sm:$0xff]
    %v104 = vld [vmem:[%s2 + $0x18] sm:$0xff]
    %v105 = vld [vmem:[%s2 + $0x20] sm:$0xff]
    %v106 = vld [vmem:[%s2 + $0x28] sm:$0xff]
    %v107 = vld [vmem:[%s2 + $0x30] sm:$0xff]
    %v108 = vld [vmem:[%s2 + $0x38] sm:$0xff]
    %v109 = vld [vmem:[%s2 + $0x40] sm:$0xff]
    %v110 = vld [vmem:[%s2 + $0x48] sm:$0xff]
    %v111 = vld [vmem:[%s2 + $0x50] sm:$0xff]
    %v112 = vld [vmem:[%s2 + $0x58] sm:$0x11]
    %v113 = vpack.c.bf16 %v86, %v85
    %v114 = vpack.c.bf16 %v88, %v87
    %v115 = vpack.c.bf16 %v90, %v89
    %v116 = vpack.c.bf16 %v92, %v91
    %v117 = vpack.c.bf16 %v94, %v93
    %v118 = vpack.c.bf16 %v96, %v95
    %v119 = vpack.c.bf16 %v98, %v97
    %v120 = vpack.c.bf16 %v100, %v99
    %v133 = vunpack.c.l.b16 %v101
    %v134 = vunpack.c.h.b16 %v101
    %v135 = vunpack.c.l.b16 %v102
    %v136 = vunpack.c.h.b16 %v102
    %v137 = vunpack.c.l.b16 %v103
    %v138 = vunpack.c.h.b16 %v103
    %v139 = vunpack.c.l.b16 %v104
    %v140 = vunpack.c.h.b16 %v104
    %v141 = vunpack.c.l.b16 %v105
    %v142 = vunpack.c.h.b16 %v105
    %v143 = vunpack.c.l.b16 %v106
    %v144 = vunpack.c.h.b16 %v106
    %v145 = vunpack.c.l.b16 %v107
    %v146 = vunpack.c.h.b16 %v107
    %v147 = vunpack.c.l.b16 %v108
    %v148 = vunpack.c.h.b16 %v108
    %v149 = vunpack.c.l.b16 %v109
    %v150 = vunpack.c.h.b16 %v109
    %v151 = vunpack.c.l.b16 %v110
    %v152 = vunpack.c.h.b16 %v110
    %v153 = vunpack.c.l.b16 %v111
    %v154 = vunpack.c.h.b16 %v111
    %v155 = vunpack.c.l.b16 %v112
    %v156 = vunpack.c.h.b16 %v112
    %v157 = vpack.c.b16 %v135, %v133
    %v158 = vpack.c.b16 %v136, %v134
    %v159 = vpack.c.b16 %v139, %v137
    %v160 = vpack.c.b16 %v140, %v138
    %v161 = vpack.c.b16 %v143, %v141
    %v162 = vpack.c.b16 %v144, %v142
    %v163 = vpack.c.b16 %v147, %v145
    %v164 = vpack.c.b16 %v148, %v146
    %v165 = vpack.c.b16 %v151, %v149
    %v166 = vpack.c.b16 %v152, %v150
    %v167 = vpack.c.b16 %v155, %v153
    %v168 = vpack.c.b16 %v156, %v154
    %vm179 = vcmask 736256
    %v181 = vsel %vm179, %v113, 0
    %v184 = vsel %vm179, %v114, 0
    %v187 = vsel %vm179, %v115, 0
    %v190 = vsel %vm179, %v116, 0
    %v193 = vsel %vm179, %v117, 0
    %v196 = vsel %vm179, %v118, 0
    %v199 = vsel %vm179, %v119, 0
    %v202 = vsel %vm179, %v120, 0
    %vm204 = vcmask 1044480
    %v206 = vsel %vm204, %v167, 0
    %v209 = vsel %vm204, %v168, 0
    %211 = vmatprep.subr.bf16.mxu0 0
    %212 = vmatpush1.bf16.msra.mxu0 0
    %213 = vmatprep.subr.bf16.mxu0 0
    %214 = vmatpush1.bf16.msra.mxu0 0
    %215 = vmatprep.subr.bf16.mxu0 %v209
    %216 = vmatpush1.bf16.msra.mxu0 %v206
    %217 = vmatprep.subr.bf16.mxu0 %v166
    %218 = vmatpush1.bf16.msra.mxu0 %v165
    %219 = vmatprep.subr.bf16.mxu0 %v164
    %220 = vmatpush1.bf16.msra.mxu0 %v163
    %221 = vmatprep.subr.bf16.mxu0 %v162
    %222 = vmatpush1.bf16.msra.mxu0 %v161
    %223 = vmatprep.subr.bf16.mxu0 %v160
    %224 = vmatpush1.bf16.msra.mxu0 %v159
    %225 = vmatprep.subr.bf16.mxu0 %v158
    %226 = vmatpush1.bf16.msra.mxu0 %v157
    %227 = vmatprep.subr.bf16.mxu0 0
    %228 = vmatpush2.bf16.msra.mxu0 0
    %229 = vmatprep.subr.bf16.mxu0 0
    %230 = vmatpush2.bf16.msra.mxu0 0
    %231 = vmatprep.subr.bf16.mxu0 0
    %232 = vmatpush2.bf16.msra.mxu0 0
    %233 = vmatprep.subr.bf16.mxu0 0
    %234 = vmatpush2.bf16.msra.mxu0 0
    %235 = vmatprep.subr.bf16.mxu0 0
    %236 = vmatpush2.bf16.msra.mxu0 0
    %237 = vmatprep.subr.bf16.mxu0 0
    %238 = vmatpush2.bf16.msra.mxu0 0
    %239 = vmatprep.subr.bf16.mxu0 0
    %240 = vmatpush2.bf16.msra.mxu0 0
    %241 = vmatprep.subr.bf16.mxu0 0
    %242 = vmatpush2.bf16.msra.mxu0 0
    %243 = vmatprep.mubr.bf16.mxu0 0
    %244 = vmatmul.mubr.bf16.gmra.mxu0 %v181
    %v245 = vpop.f32.mrf.mxu0
    %v246 = vadd.f32 0.0, %v245
    %v247 = vpop.f32.mrf.mxu0
    %v248 = vadd.f32 0.0, %v247
    %v249 = vpop.f32.mrf.mxu0
    %v250 = vadd.f32 0.0, %v249
    %v251 = vpop.f32.mrf.mxu0
    %v252 = vadd.f32 0.0, %v251
    %253 = vmatprep.mubr.bf16.mxu0 0
    %254 = vmatmul.mubr.bf16.gmra.mxu0 %v184
    %v255 = vpop.f32.mrf.mxu0
    %v256 = vadd.f32 0.0, %v255
    %v257 = vpop.f32.mrf.mxu0
    %v258 = vadd.f32 0.0, %v257
    %v259 = vpop.f32.mrf.mxu0
    %v260 = vadd.f32 0.0, %v259
    %v261 = vpop.f32.mrf.mxu0
    %v262 = vadd.f32 0.0, %v261
    %263 = vmatprep.mubr.bf16.mxu0 0
    %264 = vmatmul.mubr.bf16.gmra.mxu0 %v187
    %v265 = vpop.f32.mrf.mxu0
    %v266 = vadd.f32 0.0, %v265
    %v267 = vpop.f32.mrf.mxu0
    %v268 = vadd.f32 0.0, %v267
    %v269 = vpop.f32.mrf.mxu0
    %v270 = vadd.f32 0.0, %v269
    %v271 = vpop.f32.mrf.mxu0
    %v272 = vadd.f32 0.0, %v271
    %273 = vmatprep.mubr.bf16.mxu0 0
    %274 = vmatmul.mubr.bf16.gmra.mxu0 %v190
    %v275 = vpop.f32.mrf.mxu0
    %v276 = vadd.f32 0.0, %v275
    %v277 = vpop.f32.mrf.mxu0
    %v278 = vadd.f32 0.0, %v277
    %v279 = vpop.f32.mrf.mxu0
    %v280 = vadd.f32 0.0, %v279
    %v281 = vpop.f32.mrf.mxu0
    %v282 = vadd.f32 0.0, %v281
    %283 = vmatprep.mubr.bf16.mxu0 0
    %284 = vmatmul.mubr.bf16.gmra.mxu0 %v193
    %v285 = vpop.f32.mrf.mxu0
    %v286 = vadd.f32 0.0, %v285
    %v287 = vpop.f32.mrf.mxu0
    %v288 = vadd.f32 0.0, %v287
    %v289 = vpop.f32.mrf.mxu0
    %v290 = vadd.f32 0.0, %v289
    %v291 = vpop.f32.mrf.mxu0
    %v292 = vadd.f32 0.0, %v291
    %293 = vmatprep.mubr.bf16.mxu0 0
    %294 = vmatmul.mubr.bf16.gmra.mxu0 %v196
    %v295 = vpop.f32.mrf.mxu0
    %v296 = vadd.f32 0.0, %v295
    %v297 = vpop.f32.mrf.mxu0
    %v298 = vadd.f32 0.0, %v297
    %v299 = vpop.f32.mrf.mxu0
    %v300 = vadd.f32 0.0, %v299
    %v301 = vpop.f32.mrf.mxu0
    %v302 = vadd.f32 0.0, %v301
    %303 = vmatprep.mubr.bf16.mxu0 0
    %304 = vmatmul.mubr.bf16.gmra.mxu0 %v199
    %v305 = vpop.f32.mrf.mxu0
    %v306 = vadd.f32 0.0, %v305
    %v307 = vpop.f32.mrf.mxu0
    %v308 = vadd.f32 0.0, %v307
    %v309 = vpop.f32.mrf.mxu0
    %v310 = vadd.f32 0.0, %v309
    %v311 = vpop.f32.mrf.mxu0
    %v312 = vadd.f32 0.0, %v311
    %313 = vmatprep.mubr.bf16.mxu0 0
    %314 = vmatmul.mubr.bf16.gmra.mxu0 %v202
    %v315 = vpop.f32.mrf.mxu0
    %v316 = vadd.f32 0.0, %v315
    %v317 = vpop.f32.mrf.mxu0
    %v318 = vadd.f32 0.0, %v317
    %v319 = vpop.f32.mrf.mxu0
    %v320 = vadd.f32 0.0, %v319
    %v321 = vpop.f32.mrf.mxu0
    %v322 = vadd.f32 0.0, %v321
    %323 = vdwg.mxu0
    %v324 = vmax.f32 %v246, 0.0
    %v325 = vmax.f32 %v248, 0.0
    %v326 = vmax.f32 %v250, 0.0
    %v327 = vmax.f32 %v252, 0.0
    %v328 = vmax.f32 %v256, 0.0
    %v329 = vmax.f32 %v258, 0.0
    %v330 = vmax.f32 %v260, 0.0
    %v331 = vmax.f32 %v262, 0.0
    %v332 = vmax.f32 %v266, 0.0
    %v333 = vmax.f32 %v268, 0.0
    %v334 = vmax.f32 %v270, 0.0
    %v335 = vmax.f32 %v272, 0.0
    %v336 = vmax.f32 %v276, 0.0
    %v337 = vmax.f32 %v278, 0.0
    %v338 = vmax.f32 %v280, 0.0
    %v339 = vmax.f32 %v282, 0.0
    %v340 = vmax.f32 %v286, 0.0
    %v341 = vmax.f32 %v288, 0.0
    %v342 = vmax.f32 %v290, 0.0
    %v343 = vmax.f32 %v292, 0.0
    %v344 = vmax.f32 %v296, 0.0
    %v345 = vmax.f32 %v298, 0.0
    %v346 = vmax.f32 %v300, 0.0
    %v347 = vmax.f32 %v302, 0.0
    %v348 = vmax.f32 %v306, 0.0
    %v349 = vmax.f32 %v308, 0.0
    %v350 = vmax.f32 %v310, 0.0
    %v351 = vmax.f32 %v312, 0.0
    %v352 = vmax.f32 %v316, 0.0
    %v353 = vmax.f32 %v318, 0.0
    %v354 = vmax.f32 %v320, 0.0
    %v355 = vmax.f32 %v322, 0.0
    %v356 = vld [vmem:[%s3] sm:$0xf]
    %v357 = vld [vmem:[%s3 + $0x4] sm:$0xf]
    %v358 = vld [vmem:[%s3 + $0x8] sm:$0xf]
    %v359 = vld [vmem:[%s3 + $0xc] sm:$0xf]
    %v360 = vld [vmem:[%s3 + $0x10] sm:$0xf]
    %v361 = vld [vmem:[%s3 + $0x14] sm:$0xf]
    %v362 = vld [vmem:[%s3 + $0x18] sm:$0xf]
    %v363 = vld [vmem:[%s3 + $0x1c] sm:$0xf]
    %v364 = vld [vmem:[%s3 + $0x20] sm:$0xf]
    %v365 = vld [vmem:[%s3 + $0x24] sm:$0xf]
    %v366 = vld [vmem:[%s3 + $0x28] sm:$0xf]
    %v367 = vld [vmem:[%s3 + $0x2c] sm:$0xf]
    %v368 = vld [vmem:[%s3 + $0x30] sm:$0xf]
    %v369 = vld [vmem:[%s3 + $0x34] sm:$0xf]
    %v370 = vld [vmem:[%s3 + $0x38] sm:$0xf]
    %v371 = vld [vmem:[%s3 + $0x3c] sm:$0xf]
    %v372 = vld [vmem:[%s3 + $0x40] sm:$0xf]
    %v373 = vld [vmem:[%s3 + $0x44] sm:$0xf]
    %v374 = vpack.c.bf16 %v326, %v324
    %v375 = vpack.c.bf16 %v327, %v325
    %v376 = vpack.c.bf16 %v330, %v328
    %v377 = vpack.c.bf16 %v331, %v329
    %v378 = vpack.c.bf16 %v334, %v332
    %v379 = vpack.c.bf16 %v335, %v333
    %v380 = vpack.c.bf16 %v338, %v336
    %v381 = vpack.c.bf16 %v339, %v337
    %v382 = vpack.c.bf16 %v342, %v340
    %v383 = vpack.c.bf16 %v343, %v341
    %v384 = vpack.c.bf16 %v346, %v344
    %v385 = vpack.c.bf16 %v347, %v345
    %v386 = vpack.c.bf16 %v350, %v348
    %v387 = vpack.c.bf16 %v351, %v349
    %v388 = vpack.c.bf16 %v354, %v352
    %v389 = vpack.c.bf16 %v355, %v353
    %v390 = vld [vmem:[%s4] sm:$0x1]
    %v392 = vlaneseq
    %v393 = vshrl.u32 %v392, 7
    %v394 = vsub.s32 0, %v393
    %v395 = vrot.slane %v390, %v394
    %v415 = vunpack.c.l.b16 %v356
    %v416 = vunpack.c.l.b16 %v357
    %v417 = vunpack.c.l.b16 %v358
    %v418 = vunpack.c.l.b16 %v359
    %v419 = vunpack.c.l.b16 %v360
    %v420 = vunpack.c.l.b16 %v361
    %v421 = vunpack.c.l.b16 %v362
    %v422 = vunpack.c.l.b16 %v363
    %v423 = vunpack.c.l.b16 %v364
    %v424 = vunpack.c.l.b16 %v365
    %v425 = vunpack.c.l.b16 %v366
    %v426 = vunpack.c.l.b16 %v367
    %v427 = vunpack.c.l.b16 %v368
    %v428 = vunpack.c.l.b16 %v369
    %v429 = vunpack.c.l.b16 %v370
    %v430 = vunpack.c.l.b16 %v371
    %v431 = vunpack.c.l.b16 %v372
    %v432 = vunpack.c.l.b16 %v373
    %v433 = vpack.c.b16 %v416, %v415
    %v434 = vpack.c.b16 %v418, %v417
    %v435 = vpack.c.b16 %v420, %v419
    %v436 = vpack.c.b16 %v422, %v421
    %v437 = vpack.c.b16 %v424, %v423
    %v438 = vpack.c.b16 %v426, %v425
    %v439 = vpack.c.b16 %v428, %v427
    %v440 = vpack.c.b16 %v430, %v429
    %v441 = vpack.c.b16 %v432, %v431
    %vm451 = vcmask 130048
    %v453 = vsel %vm451, %v375, 0
    %v456 = vsel %vm451, %v377, 0
    %v459 = vsel %vm451, %v379, 0
    %v462 = vsel %vm451, %v381, 0
    %v465 = vsel %vm451, %v383, 0
    %v468 = vsel %vm451, %v385, 0
    %v471 = vsel %vm451, %v387, 0
    %v474 = vsel %vm451, %v389, 0
    %476 = vmatprep.subr.bf16.mxu0 0
    %477 = vmatpush1.bf16.msra.mxu0 %v440
    %478 = vmatprep.subr.bf16.mxu0 0
    %479 = vmatpush1.bf16.msra.mxu0 %v439
    %480 = vmatprep.subr.bf16.mxu0 0
    %481 = vmatpush1.bf16.msra.mxu0 %v438
    %482 = vmatprep.subr.bf16.mxu0 0
    %483 = vmatpush1.bf16.msra.mxu0 %v437
    %484 = vmatprep.subr.bf16.mxu0 0
    %485 = vmatpush1.bf16.msra.mxu0 %v436
    %486 = vmatprep.subr.bf16.mxu0 0
    %487 = vmatpush1.bf16.msra.mxu0 %v435
    %488 = vmatprep.subr.bf16.mxu0 0
    %489 = vmatpush1.bf16.msra.mxu0 %v434
    %490 = vmatprep.subr.bf16.mxu0 0
    %491 = vmatpush1.bf16.msra.mxu0 %v433
    %492 = vmatprep.subr.bf16.mxu0 0
    %493 = vmatpush2.bf16.msra.mxu0 0
    %494 = vmatprep.subr.bf16.mxu0 0
    %495 = vmatpush2.bf16.msra.mxu0 0
    %496 = vmatprep.subr.bf16.mxu0 0
    %497 = vmatpush2.bf16.msra.mxu0 0
    %498 = vmatprep.subr.bf16.mxu0 0
    %499 = vmatpush2.bf16.msra.mxu0 0
    %500 = vmatprep.subr.bf16.mxu0 0
    %501 = vmatpush2.bf16.msra.mxu0 0
    %502 = vmatprep.subr.bf16.mxu0 0
    %503 = vmatpush2.bf16.msra.mxu0 0
    %504 = vmatprep.subr.bf16.mxu0 0
    %505 = vmatpush2.bf16.msra.mxu0 0
    %506 = vmatprep.subr.bf16.mxu0 0
    %507 = vmatpush2.bf16.msra.mxu0 %v441
    %508 = vmatprep.mubr.bf16.mxu0 %v453
    %509 = vmatmul.mubr.bf16.gmra.mxu0 %v374
    %v510 = vpop.f32.mrf.mxu0
    %v511 = vadd.f32 %v395, %v510
    %v512 = vpop.f32.mrf.mxu0
    %v513 = vpop.f32.mrf.mxu0
    %v514 = vadd.f32 %v395, %v513
    %v515 = vpop.f32.mrf.mxu0
    %516 = vmatprep.mubr.bf16.mxu0 %v456
    %517 = vmatmul.mubr.bf16.gmra.mxu0 %v376
    %v518 = vpop.f32.mrf.mxu0
    %v519 = vadd.f32 %v395, %v518
    %v520 = vpop.f32.mrf.mxu0
    %v521 = vpop.f32.mrf.mxu0
    %v522 = vadd.f32 %v395, %v521
    %v523 = vpop.f32.mrf.mxu0
    %524 = vmatprep.mubr.bf16.mxu0 %v459
    %525 = vmatmul.mubr.bf16.gmra.mxu0 %v378
    %v526 = vpop.f32.mrf.mxu0
    %v527 = vadd.f32 %v395, %v526
    %v528 = vpop.f32.mrf.mxu0
    %v529 = vpop.f32.mrf.mxu0
    %v530 = vadd.f32 %v395, %v529
    %v531 = vpop.f32.mrf.mxu0
    %532 = vmatprep.mubr.bf16.mxu0 %v462
    %533 = vmatmul.mubr.bf16.gmra.mxu0 %v380
    %v534 = vpop.f32.mrf.mxu0
    %v535 = vadd.f32 %v395, %v534
    %v536 = vpop.f32.mrf.mxu0
    %v537 = vpop.f32.mrf.mxu0
    %v538 = vadd.f32 %v395, %v537
    %v539 = vpop.f32.mrf.mxu0
    %540 = vmatprep.mubr.bf16.mxu0 %v465
    %541 = vmatmul.mubr.bf16.gmra.mxu0 %v382
    %v542 = vpop.f32.mrf.mxu0
    %v543 = vadd.f32 %v395, %v542
    %v544 = vpop.f32.mrf.mxu0
    %v545 = vpop.f32.mrf.mxu0
    %v546 = vadd.f32 %v395, %v545
    %v547 = vpop.f32.mrf.mxu0
    %548 = vmatprep.mubr.bf16.mxu0 %v468
    %549 = vmatmul.mubr.bf16.gmra.mxu0 %v384
    %v550 = vpop.f32.mrf.mxu0
    %v551 = vadd.f32 %v395, %v550
    %v552 = vpop.f32.mrf.mxu0
    %v553 = vpop.f32.mrf.mxu0
    %v554 = vadd.f32 %v395, %v553
    %v555 = vpop.f32.mrf.mxu0
    %556 = vmatprep.mubr.bf16.mxu0 %v471
    %557 = vmatmul.mubr.bf16.gmra.mxu0 %v386
    %v558 = vpop.f32.mrf.mxu0
    %v559 = vadd.f32 %v395, %v558
    %v560 = vpop.f32.mrf.mxu0
    %v561 = vpop.f32.mrf.mxu0
    %v562 = vadd.f32 %v395, %v561
    %v563 = vpop.f32.mrf.mxu0
    %564 = vmatprep.mubr.bf16.mxu0 %v474
    %565 = vmatmul.mubr.bf16.gmra.mxu0 %v388
    %v566 = vpop.f32.mrf.mxu0
    %v567 = vadd.f32 %v395, %v566
    %v568 = vpop.f32.mrf.mxu0
    %v569 = vpop.f32.mrf.mxu0
    %v570 = vadd.f32 %v395, %v569
    %v571 = vpop.f32.mrf.mxu0
    %572 = vdwg.mxu0
    %v573 = vmax.f32 %v511, 0.0
    %v574 = vmax.f32 %v514, 0.0
    %v575 = vmax.f32 %v519, 0.0
    %v576 = vmax.f32 %v522, 0.0
    %v577 = vmax.f32 %v527, 0.0
    %v578 = vmax.f32 %v530, 0.0
    %v579 = vmax.f32 %v535, 0.0
    %v580 = vmax.f32 %v538, 0.0
    %v581 = vmax.f32 %v543, 0.0
    %v582 = vmax.f32 %v546, 0.0
    %v583 = vmax.f32 %v551, 0.0
    %v584 = vmax.f32 %v554, 0.0
    %v585 = vmax.f32 %v559, 0.0
    %v586 = vmax.f32 %v562, 0.0
    %v587 = vmax.f32 %v567, 0.0
    %v588 = vmax.f32 %v570, 0.0
    %v589 = vld [vmem:[%s1] sm:$0xff]
    %v590 = vld [vmem:[%s1 + $0x8] sm:$0xff]
    %v591 = vld [vmem:[%s1 + $0x10] sm:$0xff]
    %v592 = vld [vmem:[%s1 + $0x18] sm:$0xff]
    %v593 = vld [vmem:[%s1 + $0x20] sm:$0xff]
    %v594 = vld [vmem:[%s1 + $0x28] sm:$0xff]
    %v595 = vld [vmem:[%s1 + $0x30] sm:$0xff]
    %v596 = vld [vmem:[%s1 + $0x38] sm:$0xff]
    %v597 = vld [vmem:[%s1 + $0x40] sm:$0xff]
    %v598 = vld [vmem:[%s1 + $0x48] sm:$0xff]
    %v599 = vld [vmem:[%s1 + $0x50] sm:$0xff]
    %v600 = vld [vmem:[%s1 + $0x58] sm:$0xff]
    %v601 = vld [vmem:[%s1 + $0x60] sm:$0xff]
    %v602 = vld [vmem:[%s1 + $0x68] sm:$0xff]
    %v603 = vld [vmem:[%s1 + $0x70] sm:$0xff]
    %v604 = vld [vmem:[%s1 + $0x78] sm:$0xff]
    %v605 = vld [vmem:[%s5] sm:$0x1]
    %607 = vset.pattern.permute.xlu0 0
    %608 = vperm.xlu0 %607, %v589
    %v609 = vpop.permute.xlu0 %608
    %612 = vset.pattern.permute.xlu0 0
    %613 = vperm.xlu0 %612, %v590
    %v614 = vpop.permute.xlu0 %613
    %617 = vset.pattern.permute.xlu0 0
    %618 = vperm.xlu0 %617, %v591
    %v619 = vpop.permute.xlu0 %618
    %622 = vset.pattern.permute.xlu0 0
    %623 = vperm.xlu0 %622, %v592
    %v624 = vpop.permute.xlu0 %623
    %627 = vset.pattern.permute.xlu0 0
    %628 = vperm.xlu0 %627, %v593
    %v629 = vpop.permute.xlu0 %628
    %632 = vset.pattern.permute.xlu0 0
    %633 = vperm.xlu0 %632, %v594
    %v634 = vpop.permute.xlu0 %633
    %637 = vset.pattern.permute.xlu0 0
    %638 = vperm.xlu0 %637, %v595
    %v639 = vpop.permute.xlu0 %638
    %642 = vset.pattern.permute.xlu0 0
    %643 = vperm.xlu0 %642, %v596
    %v644 = vpop.permute.xlu0 %643
    %647 = vset.pattern.permute.xlu0 0
    %648 = vperm.xlu0 %647, %v597
    %v649 = vpop.permute.xlu0 %648
    %652 = vset.pattern.permute.xlu0 0
    %653 = vperm.xlu0 %652, %v598
    %v654 = vpop.permute.xlu0 %653
    %657 = vset.pattern.permute.xlu0 0
    %658 = vperm.xlu0 %657, %v599
    %v659 = vpop.permute.xlu0 %658
    %662 = vset.pattern.permute.xlu0 0
    %663 = vperm.xlu0 %662, %v600
    %v664 = vpop.permute.xlu0 %663
    %667 = vset.pattern.permute.xlu0 0
    %668 = vperm.xlu0 %667, %v601
    %v669 = vpop.permute.xlu0 %668
    %672 = vset.pattern.permute.xlu0 0
    %673 = vperm.xlu0 %672, %v602
    %v674 = vpop.permute.xlu0 %673
    %677 = vset.pattern.permute.xlu0 0
    %678 = vperm.xlu0 %677, %v603
    %v679 = vpop.permute.xlu0 %678
    %682 = vset.pattern.permute.xlu0 0
    %683 = vperm.xlu0 %682, %v604
    %v684 = vpop.permute.xlu0 %683
    %v687 = vlaneseq
    %v688 = vshrl.u32 %v687, 7
    %v689 = vsub.s32 0, %v688
    %v690 = vrot.slane %v605, %v689
    %v692 = vmul.f32 %v609, %v690
    %v693 = vmul.f32 %v614, %v690
    %v694 = vmul.f32 %v619, %v690
    %v695 = vmul.f32 %v624, %v690
    %v696 = vmul.f32 %v629, %v690
    %v697 = vmul.f32 %v634, %v690
    %v698 = vmul.f32 %v639, %v690
    %v699 = vmul.f32 %v644, %v690
    %v700 = vmul.f32 %v649, %v690
    %v701 = vmul.f32 %v654, %v690
    %v702 = vmul.f32 %v659, %v690
    %v703 = vmul.f32 %v664, %v690
    %v704 = vmul.f32 %v669, %v690
    %v705 = vmul.f32 %v674, %v690
    %v706 = vmul.f32 %v679, %v690
    %v707 = vmul.f32 %v684, %v690
    %v708 = vld [vmem:[%s6] sm:$0x1]
    %v710 = vlaneseq
    %v711 = vshrl.u32 %v710, 7
    %v712 = vsub.s32 0, %v711
    %v713 = vrot.slane %v708, %v712
    %v715 = vadd.f32 %v692, %v713
    %v716 = vadd.f32 %v693, %v713
    %v717 = vadd.f32 %v694, %v713
    %v718 = vadd.f32 %v695, %v713
    %v719 = vadd.f32 %v696, %v713
    %v720 = vadd.f32 %v697, %v713
    %v721 = vadd.f32 %v698, %v713
    %v722 = vadd.f32 %v699, %v713
    %v723 = vadd.f32 %v700, %v713
    %v724 = vadd.f32 %v701, %v713
    %v725 = vadd.f32 %v702, %v713
    %v726 = vadd.f32 %v703, %v713
    %v727 = vadd.f32 %v704, %v713
    %v728 = vadd.f32 %v705, %v713
    %v729 = vadd.f32 %v706, %v713
    %v730 = vadd.f32 %v707, %v713
    %v731 = vmax.f32 %v715, 0.0
    %v732 = vmax.f32 %v716, 0.0
    %v733 = vmax.f32 %v717, 0.0
    %v734 = vmax.f32 %v718, 0.0
    %v735 = vmax.f32 %v719, 0.0
    %v736 = vmax.f32 %v720, 0.0
    %v737 = vmax.f32 %v721, 0.0
    %v738 = vmax.f32 %v722, 0.0
    %v739 = vmax.f32 %v723, 0.0
    %v740 = vmax.f32 %v724, 0.0
    %v741 = vmax.f32 %v725, 0.0
    %v742 = vmax.f32 %v726, 0.0
    %v743 = vmax.f32 %v727, 0.0
    %v744 = vmax.f32 %v728, 0.0
    %v745 = vmax.f32 %v729, 0.0
    %v746 = vmax.f32 %v730, 0.0
    %v747 = vadd.f32 %v573, %v731
    %v748 = vadd.f32 %v574, %v732
    %v749 = vadd.f32 %v575, %v733
    %v750 = vadd.f32 %v576, %v734
    %v751 = vadd.f32 %v577, %v735
    %v752 = vadd.f32 %v578, %v736
    %v753 = vadd.f32 %v579, %v737
    %v754 = vadd.f32 %v580, %v738
    %v755 = vadd.f32 %v581, %v739
    %v756 = vadd.f32 %v582, %v740
    %v757 = vadd.f32 %v583, %v741
    %v758 = vadd.f32 %v584, %v742
    %v759 = vadd.f32 %v585, %v743
    %v760 = vadd.f32 %v586, %v744
    %v761 = vadd.f32 %v587, %v745
    %v762 = vadd.f32 %v588, %v746
    %v763 = vld [vmem:[%s7] sm:$0xf]
    %v764 = vld [vmem:[%s7 + $0x4] sm:$0xf]
    %v765 = vld [vmem:[%s7 + $0x8] sm:$0xf]
    %v766 = vld [vmem:[%s7 + $0xc] sm:$0xf]
    %v767 = vld [vmem:[%s7 + $0x10] sm:$0xf]
    %v768 = vld [vmem:[%s7 + $0x14] sm:$0xf]
    %v769 = vld [vmem:[%s7 + $0x18] sm:$0xf]
    %v770 = vld [vmem:[%s7 + $0x1c] sm:$0xf]
    %v771 = vld [vmem:[%s7 + $0x20] sm:$0xf]
    %v772 = vld [vmem:[%s7 + $0x24] sm:$0xf]
    %v773 = vld [vmem:[%s7 + $0x28] sm:$0xf]
    %v774 = vld [vmem:[%s7 + $0x2c] sm:$0xf]
    %v775 = vld [vmem:[%s7 + $0x30] sm:$0xf]
    %v776 = vld [vmem:[%s7 + $0x34] sm:$0xf]
    %v777 = vld [vmem:[%s7 + $0x38] sm:$0xf]
    %v778 = vld [vmem:[%s7 + $0x3c] sm:$0xf]
    %v779 = vpack.c.bf16 %v748, %v747
    %v780 = vpack.c.bf16 %v750, %v749
    %v781 = vpack.c.bf16 %v752, %v751
    %v782 = vpack.c.bf16 %v754, %v753
    %v783 = vpack.c.bf16 %v756, %v755
    %v784 = vpack.c.bf16 %v758, %v757
    %v785 = vpack.c.bf16 %v760, %v759
    %v786 = vpack.c.bf16 %v762, %v761
    %v803 = vunpack.c.l.b16 %v763
    %v804 = vunpack.c.l.b16 %v764
    %v805 = vunpack.c.l.b16 %v765
    %v806 = vunpack.c.l.b16 %v766
    %v807 = vunpack.c.l.b16 %v767
    %v808 = vunpack.c.l.b16 %v768
    %v809 = vunpack.c.l.b16 %v769
    %v810 = vunpack.c.l.b16 %v770
    %v811 = vunpack.c.l.b16 %v771
    %v812 = vunpack.c.l.b16 %v772
    %v813 = vunpack.c.l.b16 %v773
    %v814 = vunpack.c.l.b16 %v774
    %v815 = vunpack.c.l.b16 %v775
    %v816 = vunpack.c.l.b16 %v776
    %v817 = vunpack.c.l.b16 %v777
    %v818 = vunpack.c.l.b16 %v778
    %v819 = vpack.c.b16 %v804, %v803
    %v820 = vpack.c.b16 %v806, %v805
    %v821 = vpack.c.b16 %v808, %v807
    %v822 = vpack.c.b16 %v810, %v809
    %v823 = vpack.c.b16 %v812, %v811
    %v824 = vpack.c.b16 %v814, %v813
    %v825 = vpack.c.b16 %v816, %v815
    %v826 = vpack.c.b16 %v818, %v817
    %835 = vmatprep.subr.bf16.mxu0 0
    %836 = vmatpush1.bf16.msra.mxu0 %v786
    %837 = vmatprep.subr.bf16.mxu0 0
    %838 = vmatpush1.bf16.msra.mxu0 %v785
    %839 = vmatprep.subr.bf16.mxu0 0
    %840 = vmatpush1.bf16.msra.mxu0 %v784
    %841 = vmatprep.subr.bf16.mxu0 0
    %842 = vmatpush1.bf16.msra.mxu0 %v783
    %843 = vmatprep.subr.bf16.mxu0 0
    %844 = vmatpush1.bf16.msra.mxu0 %v782
    %845 = vmatprep.subr.bf16.mxu0 0
    %846 = vmatpush1.bf16.msra.mxu0 %v781
    %847 = vmatprep.subr.bf16.mxu0 0
    %848 = vmatpush1.bf16.msra.mxu0 %v780
    %849 = vmatprep.subr.bf16.mxu0 0
    %850 = vmatpush1.bf16.msra.mxu0 %v779
    %851 = vmatprep.subr.bf16.mxu0 0
    %852 = vmatpush2.bf16.msra.mxu0 0
    %853 = vmatprep.subr.bf16.mxu0 0
    %854 = vmatpush2.bf16.msra.mxu0 0
    %855 = vmatprep.subr.bf16.mxu0 0
    %856 = vmatpush2.bf16.msra.mxu0 0
    %857 = vmatprep.subr.bf16.mxu0 0
    %858 = vmatpush2.bf16.msra.mxu0 0
    %859 = vmatprep.subr.bf16.mxu0 0
    %860 = vmatpush2.bf16.msra.mxu0 0
    %861 = vmatprep.subr.bf16.mxu0 0
    %862 = vmatpush2.bf16.msra.mxu0 0
    %863 = vmatprep.subr.bf16.mxu0 0
    %864 = vmatpush2.bf16.msra.mxu0 0
    %865 = vmatprep.subr.bf16.mxu0 0
    %866 = vmatpush2.bf16.msra.mxu0 0
    %867 = vmatprep.mubr.bf16.mxu0 0
    %868 = vmatmul.mubr.bf16.gmra.mxu0 %v819
    %v869 = vpop.f32.mrf.mxu0
    %v870 = vadd.f32 0.0, %v869
    %v871 = vpop.f32.mrf.mxu0
    %v872 = vpop.f32.mrf.mxu0
    %v873 = vadd.f32 0.0, %v872
    %v874 = vpop.f32.mrf.mxu0
    %875 = vmatprep.mubr.bf16.mxu0 0
    %876 = vmatmul.mubr.bf16.gmra.mxu0 %v820
    %v877 = vpop.f32.mrf.mxu0
    %v878 = vadd.f32 0.0, %v877
    %v879 = vpop.f32.mrf.mxu0
    %v880 = vpop.f32.mrf.mxu0
    %v881 = vadd.f32 0.0, %v880
    %v882 = vpop.f32.mrf.mxu0
    %883 = vmatprep.mubr.bf16.mxu0 0
    %884 = vmatmul.mubr.bf16.gmra.mxu0 %v821
    %v885 = vpop.f32.mrf.mxu0
    %v886 = vadd.f32 0.0, %v885
    %v887 = vpop.f32.mrf.mxu0
    %v888 = vpop.f32.mrf.mxu0
    %v889 = vadd.f32 0.0, %v888
    %v890 = vpop.f32.mrf.mxu0
    %891 = vmatprep.mubr.bf16.mxu0 0
    %892 = vmatmul.mubr.bf16.gmra.mxu0 %v822
    %v893 = vpop.f32.mrf.mxu0
    %v894 = vadd.f32 0.0, %v893
    %v895 = vpop.f32.mrf.mxu0
    %v896 = vpop.f32.mrf.mxu0
    %v897 = vadd.f32 0.0, %v896
    %v898 = vpop.f32.mrf.mxu0
    %899 = vmatprep.mubr.bf16.mxu0 0
    %900 = vmatmul.mubr.bf16.gmra.mxu0 %v823
    %v901 = vpop.f32.mrf.mxu0
    %v902 = vadd.f32 0.0, %v901
    %v903 = vpop.f32.mrf.mxu0
    %v904 = vpop.f32.mrf.mxu0
    %v905 = vadd.f32 0.0, %v904
    %v906 = vpop.f32.mrf.mxu0
    %907 = vmatprep.mubr.bf16.mxu0 0
    %908 = vmatmul.mubr.bf16.gmra.mxu0 %v824
    %v909 = vpop.f32.mrf.mxu0
    %v910 = vadd.f32 0.0, %v909
    %v911 = vpop.f32.mrf.mxu0
    %v912 = vpop.f32.mrf.mxu0
    %v913 = vadd.f32 0.0, %v912
    %v914 = vpop.f32.mrf.mxu0
    %915 = vmatprep.mubr.bf16.mxu0 0
    %916 = vmatmul.mubr.bf16.gmra.mxu0 %v825
    %v917 = vpop.f32.mrf.mxu0
    %v918 = vadd.f32 0.0, %v917
    %v919 = vpop.f32.mrf.mxu0
    %v920 = vpop.f32.mrf.mxu0
    %v921 = vadd.f32 0.0, %v920
    %v922 = vpop.f32.mrf.mxu0
    %923 = vmatprep.mubr.bf16.mxu0 0
    %924 = vmatmul.mubr.bf16.gmra.mxu0 %v826
    %v925 = vpop.f32.mrf.mxu0
    %v926 = vadd.f32 0.0, %v925
    %v927 = vpop.f32.mrf.mxu0
    %v928 = vpop.f32.mrf.mxu0
    %v929 = vadd.f32 0.0, %v928
    %v930 = vpop.f32.mrf.mxu0
    %931 = vdwg.mxu0
    %v932 = vmax.f32 %v870, %v886
    %v933 = vmax.f32 %v873, %v889
    %v934 = vmax.f32 %v878, %v894
    %v935 = vmax.f32 %v881, %v897
    %v936 = vmax.f32 %v902, %v918
    %v937 = vmax.f32 %v905, %v921
    %v938 = vmax.f32 %v910, %v926
    %v939 = vmax.f32 %v913, %v929
    %v940 = vmax.f32 %v932, %v936
    %v941 = vmax.f32 %v933, %v937
    %v942 = vmax.f32 %v934, %v938
    %v943 = vmax.f32 %v935, %v939
    %v944 = vld [vmem:[%s8] sm:$0xf]
    %v945 = vld [vmem:[%s8 + $0x4] sm:$0xf]
    %v946 = vld [vmem:[%s8 + $0x8] sm:$0xf]
    %v947 = vld [vmem:[%s8 + $0xc] sm:$0xf]
    %v948 = vld [vmem:[%s8 + $0x10] sm:$0xf]
    %v949 = vld [vmem:[%s8 + $0x14] sm:$0xf]
    %v950 = vld [vmem:[%s8 + $0x18] sm:$0xf]
    %v951 = vld [vmem:[%s8 + $0x1c] sm:$0xf]
    %v952 = vld [vmem:[%s8 + $0x20] sm:$0xf]
    %v953 = vld [vmem:[%s8 + $0x24] sm:$0xf]
    %v954 = vld [vmem:[%s8 + $0x28] sm:$0xf]
    %v955 = vld [vmem:[%s8 + $0x2c] sm:$0xf]
    %v956 = vld [vmem:[%s8 + $0x30] sm:$0xf]
    %v957 = vld [vmem:[%s8 + $0x34] sm:$0xf]
    %v958 = vld [vmem:[%s8 + $0x38] sm:$0xf]
    %v959 = vld [vmem:[%s8 + $0x3c] sm:$0xf]
    %v960 = vld [vmem:[%s8 + $0x40] sm:$0xf]
    %v961 = vld [vmem:[%s8 + $0x44] sm:$0xf]
    %v962 = vld [vmem:[%s8 + $0x48] sm:$0xf]
    %v963 = vld [vmem:[%s8 + $0x4c] sm:$0xf]
    %v964 = vld [vmem:[%s8 + $0x50] sm:$0xf]
    %v965 = vld [vmem:[%s8 + $0x54] sm:$0xf]
    %v966 = vld [vmem:[%s8 + $0x58] sm:$0xf]
    %v967 = vld [vmem:[%s8 + $0x5c] sm:$0xf]
    %v968 = vld [vmem:[%s8 + $0x60] sm:$0xf]
    %v969 = vld [vmem:[%s8 + $0x64] sm:$0xf]
    %v970 = vld [vmem:[%s8 + $0x68] sm:$0xf]
    %v971 = vld [vmem:[%s8 + $0x6c] sm:$0xf]
    %v972 = vld [vmem:[%s8 + $0x70] sm:$0xf]
    %v973 = vld [vmem:[%s8 + $0x74] sm:$0xf]
    %v974 = vld [vmem:[%s8 + $0x78] sm:$0xf]
    %v975 = vld [vmem:[%s8 + $0x7c] sm:$0xf]
    %v976 = vld [vmem:[%s8 + $0x80] sm:$0xf]
    %v977 = vld [vmem:[%s8 + $0x84] sm:$0xf]
    %v978 = vld [vmem:[%s8 + $0x88] sm:$0xf]
    %v979 = vld [vmem:[%s8 + $0x8c] sm:$0xf]
    %v980 = vld [vmem:[%s9] sm:$0xf]
    %v981 = vld [vmem:[%s9 + $0x4] sm:$0xf]
    %v982 = vld [vmem:[%s9 + $0x8] sm:$0xf]
    %v983 = vld [vmem:[%s9 + $0xc] sm:$0xf]
    %v984 = vld [vmem:[%s9 + $0x10] sm:$0xf]
    %v985 = vld [vmem:[%s9 + $0x14] sm:$0xf]
    %v986 = vld [vmem:[%s9 + $0x18] sm:$0xf]
    %v987 = vld [vmem:[%s9 + $0x1c] sm:$0xf]
    %v988 = vld [vmem:[%s9 + $0x20] sm:$0xf]
    %v989 = vld [vmem:[%s9 + $0x24] sm:$0xf]
    %v990 = vld [vmem:[%s9 + $0x28] sm:$0xf]
    %v991 = vld [vmem:[%s9 + $0x2c] sm:$0xf]
    %v992 = vld [vmem:[%s9 + $0x30] sm:$0xf]
    %v993 = vld [vmem:[%s9 + $0x34] sm:$0xf]
    %v994 = vld [vmem:[%s9 + $0x38] sm:$0xf]
    %v995 = vld [vmem:[%s9 + $0x3c] sm:$0xf]
    %v996 = vld [vmem:[%s9 + $0x40] sm:$0xf]
    %v997 = vld [vmem:[%s9 + $0x44] sm:$0xf]
    %v998 = vld [vmem:[%s10] sm:$0x1]
    %v999 = vpack.c.bf16 %v941, %v940
    %v1000 = vpack.c.bf16 %v943, %v942
    %v1037 = vunpack.c.l.b16 %v944
    %v1038 = vunpack.c.l.b16 %v945
    %v1039 = vunpack.c.l.b16 %v946
    %v1040 = vunpack.c.l.b16 %v947
    %v1041 = vunpack.c.l.b16 %v948
    %v1042 = vunpack.c.l.b16 %v949
    %v1043 = vunpack.c.l.b16 %v950
    %v1044 = vunpack.c.l.b16 %v951
    %v1045 = vunpack.c.l.b16 %v952
    %v1046 = vunpack.c.l.b16 %v953
    %v1047 = vunpack.c.l.b16 %v954
    %v1048 = vunpack.c.l.b16 %v955
    %v1049 = vunpack.c.l.b16 %v956
    %v1050 = vunpack.c.l.b16 %v957
    %v1051 = vunpack.c.l.b16 %v958
    %v1052 = vunpack.c.l.b16 %v959
    %v1053 = vunpack.c.l.b16 %v960
    %v1054 = vunpack.c.l.b16 %v961
    %v1055 = vunpack.c.l.b16 %v962
    %v1056 = vunpack.c.l.b16 %v963
    %v1057 = vunpack.c.l.b16 %v964
    %v1058 = vunpack.c.l.b16 %v965
    %v1059 = vunpack.c.l.b16 %v966
    %v1060 = vunpack.c.l.b16 %v967
    %v1061 = vunpack.c.l.b16 %v968
    %v1062 = vunpack.c.l.b16 %v969
    %v1063 = vunpack.c.l.b16 %v970
    %v1064 = vunpack.c.l.b16 %v971
    %v1065 = vunpack.c.l.b16 %v972
    %v1066 = vunpack.c.l.b16 %v973
    %v1067 = vunpack.c.l.b16 %v974
    %v1068 = vunpack.c.l.b16 %v975
    %v1069 = vunpack.c.l.b16 %v976
    %v1070 = vunpack.c.l.b16 %v977
    %v1071 = vunpack.c.l.b16 %v978
    %v1072 = vunpack.c.l.b16 %v979
    %v1073 = vpack.c.b16 %v1038, %v1037
    %v1074 = vpack.c.b16 %v1040, %v1039
    %v1075 = vpack.c.b16 %v1042, %v1041
    %v1076 = vpack.c.b16 %v1044, %v1043
    %v1077 = vpack.c.b16 %v1046, %v1045
    %v1078 = vpack.c.b16 %v1048, %v1047
    %v1079 = vpack.c.b16 %v1050, %v1049
    %v1080 = vpack.c.b16 %v1052, %v1051
    %v1081 = vpack.c.b16 %v1054, %v1053
    %v1082 = vpack.c.b16 %v1056, %v1055
    %v1083 = vpack.c.b16 %v1058, %v1057
    %v1084 = vpack.c.b16 %v1060, %v1059
    %v1085 = vpack.c.b16 %v1062, %v1061
    %v1086 = vpack.c.b16 %v1064, %v1063
    %v1087 = vpack.c.b16 %v1066, %v1065
    %v1088 = vpack.c.b16 %v1068, %v1067
    %v1089 = vpack.c.b16 %v1070, %v1069
    %v1090 = vpack.c.b16 %v1072, %v1071
    %vm1091 = vcmask 261120
    %v1093 = vsel %vm1091, %v1073, 0
    %v1096 = vsel %vm1091, %v1074, 0
    %v1099 = vsel %vm1091, %v1075, 0
    %v1102 = vsel %vm1091, %v1076, 0
    %v1105 = vsel %vm1091, %v1077, 0
    %v1108 = vsel %vm1091, %v1078, 0
    %v1111 = vsel %vm1091, %v1079, 0
    %v1114 = vsel %vm1091, %v1080, 0
    %v1117 = vsel %vm1091, %v1081, 0
    %v1120 = vsel %vm1091, %v1082, 0
    %v1123 = vsel %vm1091, %v1083, 0
    %v1126 = vsel %vm1091, %v1084, 0
    %v1129 = vsel %vm1091, %v1085, 0
    %v1132 = vsel %vm1091, %v1086, 0
    %v1135 = vsel %vm1091, %v1087, 0
    %v1138 = vsel %vm1091, %v1088, 0
    %v1141 = vsel %vm1091, %v1089, 0
    %v1144 = vsel %vm1091, %v1090, 0
    %1146 = vmatprep.subr.bf16.mxu0 0
    %1147 = vmatpush1.bf16.msra.mxu0 0
    %1148 = vmatprep.subr.bf16.mxu0 0
    %1149 = vmatpush1.bf16.msra.mxu0 0
    %1150 = vmatprep.subr.bf16.mxu0 0
    %1151 = vmatpush1.bf16.msra.mxu0 0
    %1152 = vmatprep.subr.bf16.mxu0 0
    %1153 = vmatpush1.bf16.msra.mxu0 0
    %1154 = vmatprep.subr.bf16.mxu0 0
    %1155 = vmatpush1.bf16.msra.mxu0 0
    %1156 = vmatprep.subr.bf16.mxu0 0
    %1157 = vmatpush1.bf16.msra.mxu0 0
    %1158 = vmatprep.subr.bf16.mxu0 0
    %1159 = vmatpush1.bf16.msra.mxu0 %v1000
    %1160 = vmatprep.subr.bf16.mxu0 0
    %1161 = vmatpush1.bf16.msra.mxu0 %v999
    %1162 = vmatprep.subr.bf16.mxu0 0
    %1163 = vmatpush2.bf16.msra.mxu0 0
    %1164 = vmatprep.subr.bf16.mxu0 0
    %1165 = vmatpush2.bf16.msra.mxu0 0
    %1166 = vmatprep.subr.bf16.mxu0 0
    %1167 = vmatpush2.bf16.msra.mxu0 0
    %1168 = vmatprep.subr.bf16.mxu0 0
    %1169 = vmatpush2.bf16.msra.mxu0 0
    %1170 = vmatprep.subr.bf16.mxu0 0
    %1171 = vmatpush2.bf16.msra.mxu0 0
    %1172 = vmatprep.subr.bf16.mxu0 0
    %1173 = vmatpush2.bf16.msra.mxu0 0
    %1174 = vmatprep.subr.bf16.mxu0 0
    %1175 = vmatpush2.bf16.msra.mxu0 0
    %1176 = vmatprep.subr.bf16.mxu0 0
    %1177 = vmatpush2.bf16.msra.mxu0 0
    %1178 = vmatprep.mubr.bf16.mxu0 0
    %1179 = vmatmul.mubr.bf16.gmra.mxu0 %v1093
    %v1180 = vpop.f32.mrf.mxu0
    %v1181 = vadd.f32 0.0, %v1180
    %v1182 = vpop.f32.mrf.mxu0
    %v1183 = vpop.f32.mrf.mxu0
    %v1184 = vadd.f32 0.0, %v1183
    %v1185 = vpop.f32.mrf.mxu0
    %1186 = vmatprep.mubr.bf16.mxu0 0
    %1187 = vmatmul.mubr.bf16.gmra.mxu0 %v1096
    %v1188 = vpop.f32.mrf.mxu0
    %v1189 = vadd.f32 0.0, %v1188
    %v1190 = vpop.f32.mrf.mxu0
    %v1191 = vpop.f32.mrf.mxu0
    %v1192 = vadd.f32 0.0, %v1191
    %v1193 = vpop.f32.mrf.mxu0
    %1194 = vmatprep.mubr.bf16.mxu0 0
    %1195 = vmatmul.mubr.bf16.gmra.mxu0 %v1099
    %v1196 = vpop.f32.mrf.mxu0
    %v1197 = vadd.f32 0.0, %v1196
    %v1198 = vpop.f32.mrf.mxu0
    %v1199 = vpop.f32.mrf.mxu0
    %v1200 = vadd.f32 0.0, %v1199
    %v1201 = vpop.f32.mrf.mxu0
    %1202 = vmatprep.mubr.bf16.mxu0 0
    %1203 = vmatmul.mubr.bf16.gmra.mxu0 %v1102
    %v1204 = vpop.f32.mrf.mxu0
    %v1205 = vadd.f32 0.0, %v1204
    %v1206 = vpop.f32.mrf.mxu0
    %v1207 = vpop.f32.mrf.mxu0
    %v1208 = vadd.f32 0.0, %v1207
    %v1209 = vpop.f32.mrf.mxu0
    %1210 = vmatprep.mubr.bf16.mxu0 0
    %1211 = vmatmul.mubr.bf16.gmra.mxu0 %v1105
    %v1212 = vpop.f32.mrf.mxu0
    %v1213 = vadd.f32 0.0, %v1212
    %v1214 = vpop.f32.mrf.mxu0
    %v1215 = vpop.f32.mrf.mxu0
    %v1216 = vadd.f32 0.0, %v1215
    %v1217 = vpop.f32.mrf.mxu0
    %1218 = vmatprep.mubr.bf16.mxu0 0
    %1219 = vmatmul.mubr.bf16.gmra.mxu0 %v1108
    %v1220 = vpop.f32.mrf.mxu0
    %v1221 = vadd.f32 0.0, %v1220
    %v1222 = vpop.f32.mrf.mxu0
    %v1223 = vpop.f32.mrf.mxu0
    %v1224 = vadd.f32 0.0, %v1223
    %v1225 = vpop.f32.mrf.mxu0
    %1226 = vmatprep.mubr.bf16.mxu0 0
    %1227 = vmatmul.mubr.bf16.gmra.mxu0 %v1111
    %v1228 = vpop.f32.mrf.mxu0
    %v1229 = vadd.f32 0.0, %v1228
    %v1230 = vpop.f32.mrf.mxu0
    %v1231 = vpop.f32.mrf.mxu0
    %v1232 = vadd.f32 0.0, %v1231
    %v1233 = vpop.f32.mrf.mxu0
    %1234 = vmatprep.mubr.bf16.mxu0 0
    %1235 = vmatmul.mubr.bf16.gmra.mxu0 %v1114
    %v1236 = vpop.f32.mrf.mxu0
    %v1237 = vadd.f32 0.0, %v1236
    %v1238 = vpop.f32.mrf.mxu0
    %v1239 = vpop.f32.mrf.mxu0
    %v1240 = vadd.f32 0.0, %v1239
    %v1241 = vpop.f32.mrf.mxu0
    %1242 = vmatprep.mubr.bf16.mxu0 0
    %1243 = vmatmul.mubr.bf16.gmra.mxu0 %v1117
    %v1244 = vpop.f32.mrf.mxu0
    %v1245 = vadd.f32 0.0, %v1244
    %v1246 = vpop.f32.mrf.mxu0
    %v1247 = vpop.f32.mrf.mxu0
    %v1248 = vadd.f32 0.0, %v1247
    %v1249 = vpop.f32.mrf.mxu0
    %1250 = vmatprep.mubr.bf16.mxu0 0
    %1251 = vmatmul.mubr.bf16.gmra.mxu0 %v1120
    %v1252 = vpop.f32.mrf.mxu0
    %v1253 = vadd.f32 0.0, %v1252
    %v1254 = vpop.f32.mrf.mxu0
    %v1255 = vpop.f32.mrf.mxu0
    %v1256 = vadd.f32 0.0, %v1255
    %v1257 = vpop.f32.mrf.mxu0
    %1258 = vmatprep.mubr.bf16.mxu0 0
    %1259 = vmatmul.mubr.bf16.gmra.mxu0 %v1123
    %v1260 = vpop.f32.mrf.mxu0
    %v1261 = vadd.f32 0.0, %v1260
    %v1262 = vpop.f32.mrf.mxu0
    %v1263 = vpop.f32.mrf.mxu0
    %v1264 = vadd.f32 0.0, %v1263
    %v1265 = vpop.f32.mrf.mxu0
    %1266 = vmatprep.mubr.bf16.mxu0 0
    %1267 = vmatmul.mubr.bf16.gmra.mxu0 %v1126
    %v1268 = vpop.f32.mrf.mxu0
    %v1269 = vadd.f32 0.0, %v1268
    %v1270 = vpop.f32.mrf.mxu0
    %v1271 = vpop.f32.mrf.mxu0
    %v1272 = vadd.f32 0.0, %v1271
    %v1273 = vpop.f32.mrf.mxu0
    %1274 = vmatprep.mubr.bf16.mxu0 0
    %1275 = vmatmul.mubr.bf16.gmra.mxu0 %v1129
    %v1276 = vpop.f32.mrf.mxu0
    %v1277 = vadd.f32 0.0, %v1276
    %v1278 = vpop.f32.mrf.mxu0
    %v1279 = vpop.f32.mrf.mxu0
    %v1280 = vadd.f32 0.0, %v1279
    %v1281 = vpop.f32.mrf.mxu0
    %1282 = vmatprep.mubr.bf16.mxu0 0
    %1283 = vmatmul.mubr.bf16.gmra.mxu0 %v1132
    %v1284 = vpop.f32.mrf.mxu0
    %v1285 = vadd.f32 0.0, %v1284
    %v1286 = vpop.f32.mrf.mxu0
    %v1287 = vpop.f32.mrf.mxu0
    %v1288 = vadd.f32 0.0, %v1287
    %v1289 = vpop.f32.mrf.mxu0
    %1290 = vmatprep.mubr.bf16.mxu0 0
    %1291 = vmatmul.mubr.bf16.gmra.mxu0 %v1135
    %v1292 = vpop.f32.mrf.mxu0
    %v1293 = vadd.f32 0.0, %v1292
    %v1294 = vpop.f32.mrf.mxu0
    %v1295 = vpop.f32.mrf.mxu0
    %v1296 = vadd.f32 0.0, %v1295
    %v1297 = vpop.f32.mrf.mxu0
    %1298 = vmatprep.mubr.bf16.mxu0 0
    %1299 = vmatmul.mubr.bf16.gmra.mxu0 %v1138
    %v1300 = vpop.f32.mrf.mxu0
    %v1301 = vadd.f32 0.0, %v1300
    %v1302 = vpop.f32.mrf.mxu0
    %v1303 = vpop.f32.mrf.mxu0
    %v1304 = vadd.f32 0.0, %v1303
    %v1305 = vpop.f32.mrf.mxu0
    %1306 = vmatprep.mubr.bf16.mxu0 0
    %1307 = vmatmul.mubr.bf16.gmra.mxu0 %v1141
    %v1308 = vpop.f32.mrf.mxu0
    %v1309 = vadd.f32 0.0, %v1308
    %v1310 = vpop.f32.mrf.mxu0
    %v1311 = vpop.f32.mrf.mxu0
    %v1312 = vadd.f32 0.0, %v1311
    %v1313 = vpop.f32.mrf.mxu0
    %1314 = vmatprep.mubr.bf16.mxu0 0
    %1315 = vmatmul.mubr.bf16.gmra.mxu0 %v1144
    %v1316 = vpop.f32.mrf.mxu0
    %v1317 = vadd.f32 0.0, %v1316
    %v1318 = vpop.f32.mrf.mxu0
    %v1319 = vpop.f32.mrf.mxu0
    %v1320 = vadd.f32 0.0, %v1319
    %v1321 = vpop.f32.mrf.mxu0
    %1322 = vdwg.mxu0
    %v1323 = vpack.c.bf16 %v1184, %v1181
    %v1324 = vpack.c.bf16 %v1192, %v1189
    %v1327 = vunpack.c.l.b16 %v980
    %v1328 = vunpack.c.l.b16 %v981
    %v1329 = vpack.c.b16 %v1328, %v1327
    %v1332 = vsel %vm451, %v1323, 0
    %v1335 = vsel %vm451, %v1324, 0
    %1337 = vmatprep.subr.bf16.mxu0 0
    %1338 = vmatpush1.bf16.msra.mxu0 0
    %1339 = vmatprep.subr.bf16.mxu0 0
    %1340 = vmatpush1.bf16.msra.mxu0 0
    %1341 = vmatprep.subr.bf16.mxu0 0
    %1342 = vmatpush1.bf16.msra.mxu0 0
    %1343 = vmatprep.subr.bf16.mxu0 0
    %1344 = vmatpush1.bf16.msra.mxu0 0
    %1345 = vmatprep.subr.bf16.mxu0 0
    %1346 = vmatpush1.bf16.msra.mxu0 0
    %1347 = vmatprep.subr.bf16.mxu0 0
    %1348 = vmatpush1.bf16.msra.mxu0 0
    %1349 = vmatprep.subr.bf16.mxu0 0
    %1350 = vmatpush1.bf16.msra.mxu0 0
    %1351 = vmatprep.subr.bf16.mxu0 0
    %1352 = vmatpush1.bf16.msra.mxu0 %v1329
    %1353 = vmatprep.subr.bf16.mxu0 0
    %1354 = vmatpush2.bf16.msra.mxu0 0
    %1355 = vmatprep.subr.bf16.mxu0 0
    %1356 = vmatpush2.bf16.msra.mxu0 0
    %1357 = vmatprep.subr.bf16.mxu0 0
    %1358 = vmatpush2.bf16.msra.mxu0 0
    %1359 = vmatprep.subr.bf16.mxu0 0
    %1360 = vmatpush2.bf16.msra.mxu0 0
    %1361 = vmatprep.subr.bf16.mxu0 0
    %1362 = vmatpush2.bf16.msra.mxu0 0
    %1363 = vmatprep.subr.bf16.mxu0 0
    %1364 = vmatpush2.bf16.msra.mxu0 0
    %1365 = vmatprep.subr.bf16.mxu0 0
    %1366 = vmatpush2.bf16.msra.mxu0 0
    %1367 = vmatprep.subr.bf16.mxu0 0
    %1368 = vmatpush2.bf16.msra.mxu0 0
    %1369 = vmatprep.mubr.bf16.mxu0 0
    %1370 = vmatmul.mubr.bf16.gmra.mxu0 %v1332
    %v1371 = vpop.f32.mrf.mxu0
    %v1372 = vadd.f32 0.0, %v1371
    %v1373 = vpop.f32.mrf.mxu0
    %v1374 = vpop.f32.mrf.mxu0
    %v1375 = vadd.f32 0.0, %v1374
    %v1376 = vpop.f32.mrf.mxu0
    %1377 = vmatprep.mubr.bf16.mxu0 0
    %1378 = vmatmul.mubr.bf16.gmra.mxu0 %v1335
    %v1379 = vpop.f32.mrf.mxu0
    %v1380 = vadd.f32 0.0, %v1379
    %v1381 = vpop.f32.mrf.mxu0
    %v1382 = vpop.f32.mrf.mxu0
    %v1383 = vadd.f32 0.0, %v1382
    %v1384 = vpop.f32.mrf.mxu0
    %1385 = vdwg.mxu0
    %v1387 = vlaneseq
    %v1388 = vshrl.u32 %v1387, 7
    %v1389 = vsub.s32 0, %v1388
    %v1390 = vrot.slane %v998, %v1389
    %v1392 = vadd.f32 %v1390, %v1372
    %v1393 = vadd.f32 %v1390, %v1375
    %v1394 = vadd.f32 %v1390, %v1380
    %v1395 = vadd.f32 %v1390, %v1383
    %v1396 = vpack.c.bf16 %v1200, %v1197
    %v1397 = vpack.c.bf16 %v1208, %v1205
    %v1400 = vunpack.c.l.b16 %v982
    %v1401 = vunpack.c.l.b16 %v983
    %v1402 = vpack.c.b16 %v1401, %v1400
    %v1405 = vsel %vm451, %v1396, 0
    %v1408 = vsel %vm451, %v1397, 0
    %1410 = vmatprep.subr.bf16.mxu0 0
    %1411 = vmatpush1.bf16.msra.mxu0 0
    %1412 = vmatprep.subr.bf16.mxu0 0
    %1413 = vmatpush1.bf16.msra.mxu0 0
    %1414 = vmatprep.subr.bf16.mxu0 0
    %1415 = vmatpush1.bf16.msra.mxu0 0
    %1416 = vmatprep.subr.bf16.mxu0 0
    %1417 = vmatpush1.bf16.msra.mxu0 0
    %1418 = vmatprep.subr.bf16.mxu0 0
    %1419 = vmatpush1.bf16.msra.mxu0 0
    %1420 = vmatprep.subr.bf16.mxu0 0
    %1421 = vmatpush1.bf16.msra.mxu0 0
    %1422 = vmatprep.subr.bf16.mxu0 0
    %1423 = vmatpush1.bf16.msra.mxu0 0
    %1424 = vmatprep.subr.bf16.mxu0 0
    %1425 = vmatpush1.bf16.msra.mxu0 %v1402
    %1426 = vmatprep.subr.bf16.mxu0 0
    %1427 = vmatpush2.bf16.msra.mxu0 0
    %1428 = vmatprep.subr.bf16.mxu0 0
    %1429 = vmatpush2.bf16.msra.mxu0 0
    %1430 = vmatprep.subr.bf16.mxu0 0
    %1431 = vmatpush2.bf16.msra.mxu0 0
    %1432 = vmatprep.subr.bf16.mxu0 0
    %1433 = vmatpush2.bf16.msra.mxu0 0
    %1434 = vmatprep.subr.bf16.mxu0 0
    %1435 = vmatpush2.bf16.msra.mxu0 0
    %1436 = vmatprep.subr.bf16.mxu0 0
    %1437 = vmatpush2.bf16.msra.mxu0 0
    %1438 = vmatprep.subr.bf16.mxu0 0
    %1439 = vmatpush2.bf16.msra.mxu0 0
    %1440 = vmatprep.subr.bf16.mxu0 0
    %1441 = vmatpush2.bf16.msra.mxu0 0
    %1442 = vmatprep.mubr.bf16.mxu0 0
    %1443 = vmatmul.mubr.bf16.gmra.mxu0 %v1405
    %v1444 = vpop.f32.mrf.mxu0
    %v1445 = vadd.f32 0.0, %v1444
    %v1446 = vpop.f32.mrf.mxu0
    %v1447 = vpop.f32.mrf.mxu0
    %v1448 = vadd.f32 0.0, %v1447
    %v1449 = vpop.f32.mrf.mxu0
    %1450 = vmatprep.mubr.bf16.mxu0 0
    %1451 = vmatmul.mubr.bf16.gmra.mxu0 %v1408
    %v1452 = vpop.f32.mrf.mxu0
    %v1453 = vadd.f32 0.0, %v1452
    %v1454 = vpop.f32.mrf.mxu0
    %v1455 = vpop.f32.mrf.mxu0
    %v1456 = vadd.f32 0.0, %v1455
    %v1457 = vpop.f32.mrf.mxu0
    %1458 = vdwg.mxu0
    %v1459 = vadd.f32 %v1392, %v1445
    %v1460 = vadd.f32 %v1393, %v1448
    %v1461 = vadd.f32 %v1394, %v1453
    %v1462 = vadd.f32 %v1395, %v1456
    %v1463 = vpack.c.bf16 %v1216, %v1213
    %v1464 = vpack.c.bf16 %v1224, %v1221
    %v1467 = vunpack.c.l.b16 %v984
    %v1468 = vunpack.c.l.b16 %v985
    %v1469 = vpack.c.b16 %v1468, %v1467
    %v1472 = vsel %vm451, %v1463, 0
    %v1475 = vsel %vm451, %v1464, 0
    %1477 = vmatprep.subr.bf16.mxu0 0
    %1478 = vmatpush1.bf16.msra.mxu0 0
    %1479 = vmatprep.subr.bf16.mxu0 0
    %1480 = vmatpush1.bf16.msra.mxu0 0
    %1481 = vmatprep.subr.bf16.mxu0 0
    %1482 = vmatpush1.bf16.msra.mxu0 0
    %1483 = vmatprep.subr.bf16.mxu0 0
    %1484 = vmatpush1.bf16.msra.mxu0 0
    %1485 = vmatprep.subr.bf16.mxu0 0
    %1486 = vmatpush1.bf16.msra.mxu0 0
    %1487 = vmatprep.subr.bf16.mxu0 0
    %1488 = vmatpush1.bf16.msra.mxu0 0
    %1489 = vmatprep.subr.bf16.mxu0 0
    %1490 = vmatpush1.bf16.msra.mxu0 0
    %1491 = vmatprep.subr.bf16.mxu0 0
    %1492 = vmatpush1.bf16.msra.mxu0 %v1469
    %1493 = vmatprep.subr.bf16.mxu0 0
    %1494 = vmatpush2.bf16.msra.mxu0 0
    %1495 = vmatprep.subr.bf16.mxu0 0
    %1496 = vmatpush2.bf16.msra.mxu0 0
    %1497 = vmatprep.subr.bf16.mxu0 0
    %1498 = vmatpush2.bf16.msra.mxu0 0
    %1499 = vmatprep.subr.bf16.mxu0 0
    %1500 = vmatpush2.bf16.msra.mxu0 0
    %1501 = vmatprep.subr.bf16.mxu0 0
    %1502 = vmatpush2.bf16.msra.mxu0 0
    %1503 = vmatprep.subr.bf16.mxu0 0
    %1504 = vmatpush2.bf16.msra.mxu0 0
    %1505 = vmatprep.subr.bf16.mxu0 0
    %1506 = vmatpush2.bf16.msra.mxu0 0
    %1507 = vmatprep.subr.bf16.mxu0 0
    %1508 = vmatpush2.bf16.msra.mxu0 0
    %1509 = vmatprep.mubr.bf16.mxu0 0
    %1510 = vmatmul.mubr.bf16.gmra.mxu0 %v1472
    %v1511 = vpop.f32.mrf.mxu0
    %v1512 = vadd.f32 0.0, %v1511
    %v1513 = vpop.f32.mrf.mxu0
    %v1514 = vpop.f32.mrf.mxu0
    %v1515 = vadd.f32 0.0, %v1514
    %v1516 = vpop.f32.mrf.mxu0
    %1517 = vmatprep.mubr.bf16.mxu0 0
    %1518 = vmatmul.mubr.bf16.gmra.mxu0 %v1475
    %v1519 = vpop.f32.mrf.mxu0
    %v1520 = vadd.f32 0.0, %v1519
    %v1521 = vpop.f32.mrf.mxu0
    %v1522 = vpop.f32.mrf.mxu0
    %v1523 = vadd.f32 0.0, %v1522
    %v1524 = vpop.f32.mrf.mxu0
    %1525 = vdwg.mxu0
    %v1526 = vadd.f32 %v1459, %v1512
    %v1527 = vadd.f32 %v1460, %v1515
    %v1528 = vadd.f32 %v1461, %v1520
    %v1529 = vadd.f32 %v1462, %v1523
    %v1530 = vpack.c.bf16 %v1232, %v1229
    %v1531 = vpack.c.bf16 %v1240, %v1237
    %v1534 = vunpack.c.l.b16 %v986
    %v1535 = vunpack.c.l.b16 %v987
    %v1536 = vpack.c.b16 %v1535, %v1534
    %v1539 = vsel %vm451, %v1530, 0
    %v1542 = vsel %vm451, %v1531, 0
    %1544 = vmatprep.subr.bf16.mxu0 0
    %1545 = vmatpush1.bf16.msra.mxu0 0
    %1546 = vmatprep.subr.bf16.mxu0 0
    %1547 = vmatpush1.bf16.msra.mxu0 0
    %1548 = vmatprep.subr.bf16.mxu0 0
    %1549 = vmatpush1.bf16.msra.mxu0 0
    %1550 = vmatprep.subr.bf16.mxu0 0
    %1551 = vmatpush1.bf16.msra.mxu0 0
    %1552 = vmatprep.subr.bf16.mxu0 0
    %1553 = vmatpush1.bf16.msra.mxu0 0
    %1554 = vmatprep.subr.bf16.mxu0 0
    %1555 = vmatpush1.bf16.msra.mxu0 0
    %1556 = vmatprep.subr.bf16.mxu0 0
    %1557 = vmatpush1.bf16.msra.mxu0 0
    %1558 = vmatprep.subr.bf16.mxu0 0
    %1559 = vmatpush1.bf16.msra.mxu0 %v1536
    %1560 = vmatprep.subr.bf16.mxu0 0
    %1561 = vmatpush2.bf16.msra.mxu0 0
    %1562 = vmatprep.subr.bf16.mxu0 0
    %1563 = vmatpush2.bf16.msra.mxu0 0
    %1564 = vmatprep.subr.bf16.mxu0 0
    %1565 = vmatpush2.bf16.msra.mxu0 0
    %1566 = vmatprep.subr.bf16.mxu0 0
    %1567 = vmatpush2.bf16.msra.mxu0 0
    %1568 = vmatprep.subr.bf16.mxu0 0
    %1569 = vmatpush2.bf16.msra.mxu0 0
    %1570 = vmatprep.subr.bf16.mxu0 0
    %1571 = vmatpush2.bf16.msra.mxu0 0
    %1572 = vmatprep.subr.bf16.mxu0 0
    %1573 = vmatpush2.bf16.msra.mxu0 0
    %1574 = vmatprep.subr.bf16.mxu0 0
    %1575 = vmatpush2.bf16.msra.mxu0 0
    %1576 = vmatprep.mubr.bf16.mxu0 0
    %1577 = vmatmul.mubr.bf16.gmra.mxu0 %v1539
    %v1578 = vpop.f32.mrf.mxu0
    %v1579 = vadd.f32 0.0, %v1578
    %v1580 = vpop.f32.mrf.mxu0
    %v1581 = vpop.f32.mrf.mxu0
    %v1582 = vadd.f32 0.0, %v1581
    %v1583 = vpop.f32.mrf.mxu0
    %1584 = vmatprep.mubr.bf16.mxu0 0
    %1585 = vmatmul.mubr.bf16.gmra.mxu0 %v1542
    %v1586 = vpop.f32.mrf.mxu0
    %v1587 = vadd.f32 0.0, %v1586
    %v1588 = vpop.f32.mrf.mxu0
    %v1589 = vpop.f32.mrf.mxu0
    %v1590 = vadd.f32 0.0, %v1589
    %v1591 = vpop.f32.mrf.mxu0
    %1592 = vdwg.mxu0
    %v1593 = vadd.f32 %v1526, %v1579
    %v1594 = vadd.f32 %v1527, %v1582
    %v1595 = vadd.f32 %v1528, %v1587
    %v1596 = vadd.f32 %v1529, %v1590
    %v1597 = vpack.c.bf16 %v1248, %v1245
    %v1598 = vpack.c.bf16 %v1256, %v1253
    %v1601 = vunpack.c.l.b16 %v988
    %v1602 = vunpack.c.l.b16 %v989
    %v1603 = vpack.c.b16 %v1602, %v1601
    %v1606 = vsel %vm451, %v1597, 0
    %v1609 = vsel %vm451, %v1598, 0
    %1611 = vmatprep.subr.bf16.mxu0 0
    %1612 = vmatpush1.bf16.msra.mxu0 0
    %1613 = vmatprep.subr.bf16.mxu0 0
    %1614 = vmatpush1.bf16.msra.mxu0 0
    %1615 = vmatprep.subr.bf16.mxu0 0
    %1616 = vmatpush1.bf16.msra.mxu0 0
    %1617 = vmatprep.subr.bf16.mxu0 0
    %1618 = vmatpush1.bf16.msra.mxu0 0
    %1619 = vmatprep.subr.bf16.mxu0 0
    %1620 = vmatpush1.bf16.msra.mxu0 0
    %1621 = vmatprep.subr.bf16.mxu0 0
    %1622 = vmatpush1.bf16.msra.mxu0 0
    %1623 = vmatprep.subr.bf16.mxu0 0
    %1624 = vmatpush1.bf16.msra.mxu0 0
    %1625 = vmatprep.subr.bf16.mxu0 0
    %1626 = vmatpush1.bf16.msra.mxu0 %v1603
    %1627 = vmatprep.subr.bf16.mxu0 0
    %1628 = vmatpush2.bf16.msra.mxu0 0
    %1629 = vmatprep.subr.bf16.mxu0 0
    %1630 = vmatpush2.bf16.msra.mxu0 0
    %1631 = vmatprep.subr.bf16.mxu0 0
    %1632 = vmatpush2.bf16.msra.mxu0 0
    %1633 = vmatprep.subr.bf16.mxu0 0
    %1634 = vmatpush2.bf16.msra.mxu0 0
    %1635 = vmatprep.subr.bf16.mxu0 0
    %1636 = vmatpush2.bf16.msra.mxu0 0
    %1637 = vmatprep.subr.bf16.mxu0 0
    %1638 = vmatpush2.bf16.msra.mxu0 0
    %1639 = vmatprep.subr.bf16.mxu0 0
    %1640 = vmatpush2.bf16.msra.mxu0 0
    %1641 = vmatprep.subr.bf16.mxu0 0
    %1642 = vmatpush2.bf16.msra.mxu0 0
    %1643 = vmatprep.mubr.bf16.mxu0 0
    %1644 = vmatmul.mubr.bf16.gmra.mxu0 %v1606
    %v1645 = vpop.f32.mrf.mxu0
    %v1646 = vadd.f32 0.0, %v1645
    %v1647 = vpop.f32.mrf.mxu0
    %v1648 = vpop.f32.mrf.mxu0
    %v1649 = vadd.f32 0.0, %v1648
    %v1650 = vpop.f32.mrf.mxu0
    %1651 = vmatprep.mubr.bf16.mxu0 0
    %1652 = vmatmul.mubr.bf16.gmra.mxu0 %v1609
    %v1653 = vpop.f32.mrf.mxu0
    %v1654 = vadd.f32 0.0, %v1653
    %v1655 = vpop.f32.mrf.mxu0
    %v1656 = vpop.f32.mrf.mxu0
    %v1657 = vadd.f32 0.0, %v1656
    %v1658 = vpop.f32.mrf.mxu0
    %1659 = vdwg.mxu0
    %v1660 = vadd.f32 %v1593, %v1646
    %v1661 = vadd.f32 %v1594, %v1649
    %v1662 = vadd.f32 %v1595, %v1654
    %v1663 = vadd.f32 %v1596, %v1657
    %v1664 = vpack.c.bf16 %v1264, %v1261
    %v1665 = vpack.c.bf16 %v1272, %v1269
    %v1668 = vunpack.c.l.b16 %v990
    %v1669 = vunpack.c.l.b16 %v991
    %v1670 = vpack.c.b16 %v1669, %v1668
    %v1673 = vsel %vm451, %v1664, 0
    %v1676 = vsel %vm451, %v1665, 0
    %1678 = vmatprep.subr.bf16.mxu0 0
    %1679 = vmatpush1.bf16.msra.mxu0 0
    %1680 = vmatprep.subr.bf16.mxu0 0
    %1681 = vmatpush1.bf16.msra.mxu0 0
    %1682 = vmatprep.subr.bf16.mxu0 0
    %1683 = vmatpush1.bf16.msra.mxu0 0
    %1684 = vmatprep.subr.bf16.mxu0 0
    %1685 = vmatpush1.bf16.msra.mxu0 0
    %1686 = vmatprep.subr.bf16.mxu0 0
    %1687 = vmatpush1.bf16.msra.mxu0 0
    %1688 = vmatprep.subr.bf16.mxu0 0
    %1689 = vmatpush1.bf16.msra.mxu0 0
    %1690 = vmatprep.subr.bf16.mxu0 0
    %1691 = vmatpush1.bf16.msra.mxu0 0
    %1692 = vmatprep.subr.bf16.mxu0 0
    %1693 = vmatpush1.bf16.msra.mxu0 %v1670
    %1694 = vmatprep.subr.bf16.mxu0 0
    %1695 = vmatpush2.bf16.msra.mxu0 0
    %1696 = vmatprep.subr.bf16.mxu0 0
    %1697 = vmatpush2.bf16.msra.mxu0 0
    %1698 = vmatprep.subr.bf16.mxu0 0
    %1699 = vmatpush2.bf16.msra.mxu0 0
    %1700 = vmatprep.subr.bf16.mxu0 0
    %1701 = vmatpush2.bf16.msra.mxu0 0
    %1702 = vmatprep.subr.bf16.mxu0 0
    %1703 = vmatpush2.bf16.msra.mxu0 0
    %1704 = vmatprep.subr.bf16.mxu0 0
    %1705 = vmatpush2.bf16.msra.mxu0 0
    %1706 = vmatprep.subr.bf16.mxu0 0
    %1707 = vmatpush2.bf16.msra.mxu0 0
    %1708 = vmatprep.subr.bf16.mxu0 0
    %1709 = vmatpush2.bf16.msra.mxu0 0
    %1710 = vmatprep.mubr.bf16.mxu0 0
    %1711 = vmatmul.mubr.bf16.gmra.mxu0 %v1673
    %v1712 = vpop.f32.mrf.mxu0
    %v1713 = vadd.f32 0.0, %v1712
    %v1714 = vpop.f32.mrf.mxu0
    %v1715 = vpop.f32.mrf.mxu0
    %v1716 = vadd.f32 0.0, %v1715
    %v1717 = vpop.f32.mrf.mxu0
    %1718 = vmatprep.mubr.bf16.mxu0 0
    %1719 = vmatmul.mubr.bf16.gmra.mxu0 %v1676
    %v1720 = vpop.f32.mrf.mxu0
    %v1721 = vadd.f32 0.0, %v1720
    %v1722 = vpop.f32.mrf.mxu0
    %v1723 = vpop.f32.mrf.mxu0
    %v1724 = vadd.f32 0.0, %v1723
    %v1725 = vpop.f32.mrf.mxu0
    %1726 = vdwg.mxu0
    %v1727 = vadd.f32 %v1660, %v1713
    %v1728 = vadd.f32 %v1661, %v1716
    %v1729 = vadd.f32 %v1662, %v1721
    %v1730 = vadd.f32 %v1663, %v1724
    %v1731 = vpack.c.bf16 %v1280, %v1277
    %v1732 = vpack.c.bf16 %v1288, %v1285
    %v1735 = vunpack.c.l.b16 %v992
    %v1736 = vunpack.c.l.b16 %v993
    %v1737 = vpack.c.b16 %v1736, %v1735
    %v1740 = vsel %vm451, %v1731, 0
    %v1743 = vsel %vm451, %v1732, 0
    %1745 = vmatprep.subr.bf16.mxu0 0
    %1746 = vmatpush1.bf16.msra.mxu0 0
    %1747 = vmatprep.subr.bf16.mxu0 0
    %1748 = vmatpush1.bf16.msra.mxu0 0
    %1749 = vmatprep.subr.bf16.mxu0 0
    %1750 = vmatpush1.bf16.msra.mxu0 0
    %1751 = vmatprep.subr.bf16.mxu0 0
    %1752 = vmatpush1.bf16.msra.mxu0 0
    %1753 = vmatprep.subr.bf16.mxu0 0
    %1754 = vmatpush1.bf16.msra.mxu0 0
    %1755 = vmatprep.subr.bf16.mxu0 0
    %1756 = vmatpush1.bf16.msra.mxu0 0
    %1757 = vmatprep.subr.bf16.mxu0 0
    %1758 = vmatpush1.bf16.msra.mxu0 0
    %1759 = vmatprep.subr.bf16.mxu0 0
    %1760 = vmatpush1.bf16.msra.mxu0 %v1737
    %1761 = vmatprep.subr.bf16.mxu0 0
    %1762 = vmatpush2.bf16.msra.mxu0 0
    %1763 = vmatprep.subr.bf16.mxu0 0
    %1764 = vmatpush2.bf16.msra.mxu0 0
    %1765 = vmatprep.subr.bf16.mxu0 0
    %1766 = vmatpush2.bf16.msra.mxu0 0
    %1767 = vmatprep.subr.bf16.mxu0 0
    %1768 = vmatpush2.bf16.msra.mxu0 0
    %1769 = vmatprep.subr.bf16.mxu0 0
    %1770 = vmatpush2.bf16.msra.mxu0 0
    %1771 = vmatprep.subr.bf16.mxu0 0
    %1772 = vmatpush2.bf16.msra.mxu0 0
    %1773 = vmatprep.subr.bf16.mxu0 0
    %1774 = vmatpush2.bf16.msra.mxu0 0
    %1775 = vmatprep.subr.bf16.mxu0 0
    %1776 = vmatpush2.bf16.msra.mxu0 0
    %1777 = vmatprep.mubr.bf16.mxu0 0
    %1778 = vmatmul.mubr.bf16.gmra.mxu0 %v1740
    %v1779 = vpop.f32.mrf.mxu0
    %v1780 = vadd.f32 0.0, %v1779
    %v1781 = vpop.f32.mrf.mxu0
    %v1782 = vpop.f32.mrf.mxu0
    %v1783 = vadd.f32 0.0, %v1782
    %v1784 = vpop.f32.mrf.mxu0
    %1785 = vmatprep.mubr.bf16.mxu0 0
    %1786 = vmatmul.mubr.bf16.gmra.mxu0 %v1743
    %v1787 = vpop.f32.mrf.mxu0
    %v1788 = vadd.f32 0.0, %v1787
    %v1789 = vpop.f32.mrf.mxu0
    %v1790 = vpop.f32.mrf.mxu0
    %v1791 = vadd.f32 0.0, %v1790
    %v1792 = vpop.f32.mrf.mxu0
    %1793 = vdwg.mxu0
    %v1794 = vadd.f32 %v1727, %v1780
    %v1795 = vadd.f32 %v1728, %v1783
    %v1796 = vadd.f32 %v1729, %v1788
    %v1797 = vadd.f32 %v1730, %v1791
    %v1798 = vpack.c.bf16 %v1296, %v1293
    %v1799 = vpack.c.bf16 %v1304, %v1301
    %v1802 = vunpack.c.l.b16 %v994
    %v1803 = vunpack.c.l.b16 %v995
    %v1804 = vpack.c.b16 %v1803, %v1802
    %v1807 = vsel %vm451, %v1798, 0
    %v1810 = vsel %vm451, %v1799, 0
    %1812 = vmatprep.subr.bf16.mxu0 0
    %1813 = vmatpush1.bf16.msra.mxu0 0
    %1814 = vmatprep.subr.bf16.mxu0 0
    %1815 = vmatpush1.bf16.msra.mxu0 0
    %1816 = vmatprep.subr.bf16.mxu0 0
    %1817 = vmatpush1.bf16.msra.mxu0 0
    %1818 = vmatprep.subr.bf16.mxu0 0
    %1819 = vmatpush1.bf16.msra.mxu0 0
    %1820 = vmatprep.subr.bf16.mxu0 0
    %1821 = vmatpush1.bf16.msra.mxu0 0
    %1822 = vmatprep.subr.bf16.mxu0 0
    %1823 = vmatpush1.bf16.msra.mxu0 0
    %1824 = vmatprep.subr.bf16.mxu0 0
    %1825 = vmatpush1.bf16.msra.mxu0 0
    %1826 = vmatprep.subr.bf16.mxu0 0
    %1827 = vmatpush1.bf16.msra.mxu0 %v1804
    %1828 = vmatprep.subr.bf16.mxu0 0
    %1829 = vmatpush2.bf16.msra.mxu0 0
    %1830 = vmatprep.subr.bf16.mxu0 0
    %1831 = vmatpush2.bf16.msra.mxu0 0
    %1832 = vmatprep.subr.bf16.mxu0 0
    %1833 = vmatpush2.bf16.msra.mxu0 0
    %1834 = vmatprep.subr.bf16.mxu0 0
    %1835 = vmatpush2.bf16.msra.mxu0 0
    %1836 = vmatprep.subr.bf16.mxu0 0
    %1837 = vmatpush2.bf16.msra.mxu0 0
    %1838 = vmatprep.subr.bf16.mxu0 0
    %1839 = vmatpush2.bf16.msra.mxu0 0
    %1840 = vmatprep.subr.bf16.mxu0 0
    %1841 = vmatpush2.bf16.msra.mxu0 0
    %1842 = vmatprep.subr.bf16.mxu0 0
    %1843 = vmatpush2.bf16.msra.mxu0 0
    %1844 = vmatprep.mubr.bf16.mxu0 0
    %1845 = vmatmul.mubr.bf16.gmra.mxu0 %v1807
    %v1846 = vpop.f32.mrf.mxu0
    %v1847 = vadd.f32 0.0, %v1846
    %v1848 = vpop.f32.mrf.mxu0
    %v1849 = vpop.f32.mrf.mxu0
    %v1850 = vadd.f32 0.0, %v1849
    %v1851 = vpop.f32.mrf.mxu0
    %1852 = vmatprep.mubr.bf16.mxu0 0
    %1853 = vmatmul.mubr.bf16.gmra.mxu0 %v1810
    %v1854 = vpop.f32.mrf.mxu0
    %v1855 = vadd.f32 0.0, %v1854
    %v1856 = vpop.f32.mrf.mxu0
    %v1857 = vpop.f32.mrf.mxu0
    %v1858 = vadd.f32 0.0, %v1857
    %v1859 = vpop.f32.mrf.mxu0
    %1860 = vdwg.mxu0
    %v1861 = vadd.f32 %v1794, %v1847
    %v1862 = vadd.f32 %v1795, %v1850
    %v1863 = vadd.f32 %v1796, %v1855
    %v1864 = vadd.f32 %v1797, %v1858
    %v1865 = vpack.c.bf16 %v1312, %v1309
    %v1866 = vpack.c.bf16 %v1320, %v1317
    %v1869 = vunpack.c.l.b16 %v996
    %v1870 = vunpack.c.l.b16 %v997
    %v1871 = vpack.c.b16 %v1870, %v1869
    %v1874 = vsel %vm451, %v1865, 0
    %v1877 = vsel %vm451, %v1866, 0
    %1879 = vmatprep.subr.bf16.mxu0 0
    %1880 = vmatpush1.bf16.msra.mxu0 0
    %1881 = vmatprep.subr.bf16.mxu0 0
    %1882 = vmatpush1.bf16.msra.mxu0 0
    %1883 = vmatprep.subr.bf16.mxu0 0
    %1884 = vmatpush1.bf16.msra.mxu0 0
    %1885 = vmatprep.subr.bf16.mxu0 0
    %1886 = vmatpush1.bf16.msra.mxu0 0
    %1887 = vmatprep.subr.bf16.mxu0 0
    %1888 = vmatpush1.bf16.msra.mxu0 0
    %1889 = vmatprep.subr.bf16.mxu0 0
    %1890 = vmatpush1.bf16.msra.mxu0 0
    %1891 = vmatprep.subr.bf16.mxu0 0
    %1892 = vmatpush1.bf16.msra.mxu0 0
    %1893 = vmatprep.subr.bf16.mxu0 0
    %1894 = vmatpush1.bf16.msra.mxu0 %v1871
    %1895 = vmatprep.subr.bf16.mxu0 0
    %1896 = vmatpush2.bf16.msra.mxu0 0
    %1897 = vmatprep.subr.bf16.mxu0 0
    %1898 = vmatpush2.bf16.msra.mxu0 0
    %1899 = vmatprep.subr.bf16.mxu0 0
    %1900 = vmatpush2.bf16.msra.mxu0 0
    %1901 = vmatprep.subr.bf16.mxu0 0
    %1902 = vmatpush2.bf16.msra.mxu0 0
    %1903 = vmatprep.subr.bf16.mxu0 0
    %1904 = vmatpush2.bf16.msra.mxu0 0
    %1905 = vmatprep.subr.bf16.mxu0 0
    %1906 = vmatpush2.bf16.msra.mxu0 0
    %1907 = vmatprep.subr.bf16.mxu0 0
    %1908 = vmatpush2.bf16.msra.mxu0 0
    %1909 = vmatprep.subr.bf16.mxu0 0
    %1910 = vmatpush2.bf16.msra.mxu0 0
    %1911 = vmatprep.mubr.bf16.mxu0 0
    %1912 = vmatmul.mubr.bf16.gmra.mxu0 %v1874
    %v1913 = vpop.f32.mrf.mxu0
    %v1914 = vadd.f32 0.0, %v1913
    %v1915 = vpop.f32.mrf.mxu0
    %v1916 = vpop.f32.mrf.mxu0
    %v1917 = vadd.f32 0.0, %v1916
    %v1918 = vpop.f32.mrf.mxu0
    %1919 = vmatprep.mubr.bf16.mxu0 0
    %1920 = vmatmul.mubr.bf16.gmra.mxu0 %v1877
    %v1921 = vpop.f32.mrf.mxu0
    %v1922 = vadd.f32 0.0, %v1921
    %v1923 = vpop.f32.mrf.mxu0
    %v1924 = vpop.f32.mrf.mxu0
    %v1925 = vadd.f32 0.0, %v1924
    %v1926 = vpop.f32.mrf.mxu0
    %1927 = vdwg.mxu0
    %v1928 = vadd.f32 %v1861, %v1914
    %v1929 = vadd.f32 %v1862, %v1917
    %v1930 = vadd.f32 %v1863, %v1922
    %v1931 = vadd.f32 %v1864, %v1925
    %v1932 = vmax.f32 %v1928, 0.0
    %v1933 = vmax.f32 %v1929, 0.0
    %v1934 = vmax.f32 %v1930, 0.0
    %v1935 = vmax.f32 %v1931, 0.0
    %v1936 = vld [vmem:[%s11] sm:$0xf]
    %v1937 = vld [vmem:[%s11 + $0x4] sm:$0xf]
    %v1938 = vld [vmem:[%s11 + $0x8] sm:$0xf]
    %v1939 = vld [vmem:[%s11 + $0xc] sm:$0xf]
    %v1940 = vld [vmem:[%s11 + $0x10] sm:$0xf]
    %v1941 = vld [vmem:[%s11 + $0x14] sm:$0xf]
    %v1942 = vld [vmem:[%s11 + $0x18] sm:$0xf]
    %v1943 = vld [vmem:[%s11 + $0x1c] sm:$0xf]
    %v1944 = vld [vmem:[%s11 + $0x20] sm:$0xf]
    %v1945 = vld [vmem:[%s11 + $0x24] sm:$0xf]
    %v1946 = vld [vmem:[%s11 + $0x28] sm:$0xf]
    %v1947 = vld [vmem:[%s11 + $0x2c] sm:$0xf]
    %v1948 = vld [vmem:[%s11 + $0x30] sm:$0xf]
    %v1949 = vld [vmem:[%s11 + $0x34] sm:$0xf]
    %v1950 = vld [vmem:[%s11 + $0x38] sm:$0xf]
    %v1951 = vld [vmem:[%s11 + $0x3c] sm:$0xf]
    %v1952 = vld [vmem:[%s11 + $0x40] sm:$0xf]
    %v1953 = vld [vmem:[%s11 + $0x44] sm:$0xf]
    %v1954 = vld [vmem:[%s11 + $0x48] sm:$0xf]
    %v1955 = vld [vmem:[%s11 + $0x4c] sm:$0xf]
    %v1956 = vld [vmem:[%s11 + $0x50] sm:$0xf]
    %v1957 = vld [vmem:[%s11 + $0x54] sm:$0xf]
    %v1958 = vld [vmem:[%s11 + $0x58] sm:$0xf]
    %v1959 = vld [vmem:[%s11 + $0x5c] sm:$0xf]
    %v1960 = vld [vmem:[%s11 + $0x60] sm:$0xf]
    %v1961 = vld [vmem:[%s11 + $0x64] sm:$0xf]
    %v1962 = vld [vmem:[%s11 + $0x68] sm:$0xf]
    %v1963 = vld [vmem:[%s11 + $0x6c] sm:$0xf]
    %v1964 = vld [vmem:[%s11 + $0x70] sm:$0xf]
    %v1965 = vld [vmem:[%s11 + $0x74] sm:$0xf]
    %v1966 = vld [vmem:[%s11 + $0x78] sm:$0xf]
    %v1967 = vld [vmem:[%s11 + $0x7c] sm:$0xf]
    %v1968 = vld [vmem:[%s11 + $0x80] sm:$0xf]
    %v1969 = vld [vmem:[%s11 + $0x84] sm:$0xf]
    %v1970 = vld [vmem:[%s11 + $0x88] sm:$0xf]
    %v1971 = vld [vmem:[%s11 + $0x8c] sm:$0xf]
    %v1972 = vld [vmem:[%s12] sm:$0x1]
    %v1973 = vpack.c.bf16 %v1933, %v1932
    %v1974 = vpack.c.bf16 %v1935, %v1934
    %1975 = vmatprep.subr.bf16.mxu0 0
    %1976 = vmatpush1.bf16.msra.mxu0 0
    %1977 = vmatprep.subr.bf16.mxu0 0
    %1978 = vmatpush1.bf16.msra.mxu0 0
    %1979 = vmatprep.subr.bf16.mxu0 0
    %1980 = vmatpush1.bf16.msra.mxu0 0
    %1981 = vmatprep.subr.bf16.mxu0 0
    %1982 = vmatpush1.bf16.msra.mxu0 0
    %1983 = vmatprep.subr.bf16.mxu0 0
    %1984 = vmatpush1.bf16.msra.mxu0 0
    %1985 = vmatprep.subr.bf16.mxu0 0
    %1986 = vmatpush1.bf16.msra.mxu0 0
    %1987 = vmatprep.subr.bf16.mxu0 0
    %1988 = vmatpush1.bf16.msra.mxu0 %v1974
    %1989 = vmatprep.subr.bf16.mxu0 0
    %1990 = vmatpush1.bf16.msra.mxu0 %v1973
    %1991 = vmatprep.subr.bf16.mxu0 0
    %1992 = vmatpush2.bf16.msra.mxu0 0
    %1993 = vmatprep.subr.bf16.mxu0 0
    %1994 = vmatpush2.bf16.msra.mxu0 0
    %1995 = vmatprep.subr.bf16.mxu0 0
    %1996 = vmatpush2.bf16.msra.mxu0 0
    %1997 = vmatprep.subr.bf16.mxu0 0
    %1998 = vmatpush2.bf16.msra.mxu0 0
    %1999 = vmatprep.subr.bf16.mxu0 0
    %2000 = vmatpush2.bf16.msra.mxu0 0
    %2001 = vmatprep.subr.bf16.mxu0 0
    %2002 = vmatpush2.bf16.msra.mxu0 0
    %2003 = vmatprep.subr.bf16.mxu0 0
    %2004 = vmatpush2.bf16.msra.mxu0 0
    %2005 = vmatprep.subr.bf16.mxu0 0
    %2006 = vmatpush2.bf16.msra.mxu0 0
    %2007 = vmatprep.mubr.bf16.mxu0 0
    %2008 = vmatmul.mubr.bf16.gmra.mxu0 %v1093
    %v2009 = vpop.f32.mrf.mxu0
    %v2010 = vadd.f32 0.0, %v2009
    %v2011 = vpop.f32.mrf.mxu0
    %v2012 = vpop.f32.mrf.mxu0
    %v2013 = vadd.f32 0.0, %v2012
    %v2014 = vpop.f32.mrf.mxu0
    %2015 = vmatprep.mubr.bf16.mxu0 0
    %2016 = vmatmul.mubr.bf16.gmra.mxu0 %v1096
    %v2017 = vpop.f32.mrf.mxu0
    %v2018 = vadd.f32 0.0, %v2017
    %v2019 = vpop.f32.mrf.mxu0
    %v2020 = vpop.f32.mrf.mxu0
    %v2021 = vadd.f32 0.0, %v2020
    %v2022 = vpop.f32.mrf.mxu0
    %2023 = vmatprep.mubr.bf16.mxu0 0
    %2024 = vmatmul.mubr.bf16.gmra.mxu0 %v1099
    %v2025 = vpop.f32.mrf.mxu0
    %v2026 = vadd.f32 0.0, %v2025
    %v2027 = vpop.f32.mrf.mxu0
    %v2028 = vpop.f32.mrf.mxu0
    %v2029 = vadd.f32 0.0, %v2028
    %v2030 = vpop.f32.mrf.mxu0
    %2031 = vmatprep.mubr.bf16.mxu0 0
    %2032 = vmatmul.mubr.bf16.gmra.mxu0 %v1102
    %v2033 = vpop.f32.mrf.mxu0
    %v2034 = vadd.f32 0.0, %v2033
    %v2035 = vpop.f32.mrf.mxu0
    %v2036 = vpop.f32.mrf.mxu0
    %v2037 = vadd.f32 0.0, %v2036
    %v2038 = vpop.f32.mrf.mxu0
    %2039 = vmatprep.mubr.bf16.mxu0 0
    %2040 = vmatmul.mubr.bf16.gmra.mxu0 %v1105
    %v2041 = vpop.f32.mrf.mxu0
    %v2042 = vadd.f32 0.0, %v2041
    %v2043 = vpop.f32.mrf.mxu0
    %v2044 = vpop.f32.mrf.mxu0
    %v2045 = vadd.f32 0.0, %v2044
    %v2046 = vpop.f32.mrf.mxu0
    %2047 = vmatprep.mubr.bf16.mxu0 0
    %2048 = vmatmul.mubr.bf16.gmra.mxu0 %v1108
    %v2049 = vpop.f32.mrf.mxu0
    %v2050 = vadd.f32 0.0, %v2049
    %v2051 = vpop.f32.mrf.mxu0
    %v2052 = vpop.f32.mrf.mxu0
    %v2053 = vadd.f32 0.0, %v2052
    %v2054 = vpop.f32.mrf.mxu0
    %2055 = vmatprep.mubr.bf16.mxu0 0
    %2056 = vmatmul.mubr.bf16.gmra.mxu0 %v1111
    %v2057 = vpop.f32.mrf.mxu0
    %v2058 = vadd.f32 0.0, %v2057
    %v2059 = vpop.f32.mrf.mxu0
    %v2060 = vpop.f32.mrf.mxu0
    %v2061 = vadd.f32 0.0, %v2060
    %v2062 = vpop.f32.mrf.mxu0
    %2063 = vmatprep.mubr.bf16.mxu0 0
    %2064 = vmatmul.mubr.bf16.gmra.mxu0 %v1114
    %v2065 = vpop.f32.mrf.mxu0
    %v2066 = vadd.f32 0.0, %v2065
    %v2067 = vpop.f32.mrf.mxu0
    %v2068 = vpop.f32.mrf.mxu0
    %v2069 = vadd.f32 0.0, %v2068
    %v2070 = vpop.f32.mrf.mxu0
    %2071 = vmatprep.mubr.bf16.mxu0 0
    %2072 = vmatmul.mubr.bf16.gmra.mxu0 %v1117
    %v2073 = vpop.f32.mrf.mxu0
    %v2074 = vadd.f32 0.0, %v2073
    %v2075 = vpop.f32.mrf.mxu0
    %v2076 = vpop.f32.mrf.mxu0
    %v2077 = vadd.f32 0.0, %v2076
    %v2078 = vpop.f32.mrf.mxu0
    %2079 = vmatprep.mubr.bf16.mxu0 0
    %2080 = vmatmul.mubr.bf16.gmra.mxu0 %v1120
    %v2081 = vpop.f32.mrf.mxu0
    %v2082 = vadd.f32 0.0, %v2081
    %v2083 = vpop.f32.mrf.mxu0
    %v2084 = vpop.f32.mrf.mxu0
    %v2085 = vadd.f32 0.0, %v2084
    %v2086 = vpop.f32.mrf.mxu0
    %2087 = vmatprep.mubr.bf16.mxu0 0
    %2088 = vmatmul.mubr.bf16.gmra.mxu0 %v1123
    %v2089 = vpop.f32.mrf.mxu0
    %v2090 = vadd.f32 0.0, %v2089
    %v2091 = vpop.f32.mrf.mxu0
    %v2092 = vpop.f32.mrf.mxu0
    %v2093 = vadd.f32 0.0, %v2092
    %v2094 = vpop.f32.mrf.mxu0
    %2095 = vmatprep.mubr.bf16.mxu0 0
    %2096 = vmatmul.mubr.bf16.gmra.mxu0 %v1126
    %v2097 = vpop.f32.mrf.mxu0
    %v2098 = vadd.f32 0.0, %v2097
    %v2099 = vpop.f32.mrf.mxu0
    %v2100 = vpop.f32.mrf.mxu0
    %v2101 = vadd.f32 0.0, %v2100
    %v2102 = vpop.f32.mrf.mxu0
    %2103 = vmatprep.mubr.bf16.mxu0 0
    %2104 = vmatmul.mubr.bf16.gmra.mxu0 %v1129
    %v2105 = vpop.f32.mrf.mxu0
    %v2106 = vadd.f32 0.0, %v2105
    %v2107 = vpop.f32.mrf.mxu0
    %v2108 = vpop.f32.mrf.mxu0
    %v2109 = vadd.f32 0.0, %v2108
    %v2110 = vpop.f32.mrf.mxu0
    %2111 = vmatprep.mubr.bf16.mxu0 0
    %2112 = vmatmul.mubr.bf16.gmra.mxu0 %v1132
    %v2113 = vpop.f32.mrf.mxu0
    %v2114 = vadd.f32 0.0, %v2113
    %v2115 = vpop.f32.mrf.mxu0
    %v2116 = vpop.f32.mrf.mxu0
    %v2117 = vadd.f32 0.0, %v2116
    %v2118 = vpop.f32.mrf.mxu0
    %2119 = vmatprep.mubr.bf16.mxu0 0
    %2120 = vmatmul.mubr.bf16.gmra.mxu0 %v1135
    %v2121 = vpop.f32.mrf.mxu0
    %v2122 = vadd.f32 0.0, %v2121
    %v2123 = vpop.f32.mrf.mxu0
    %v2124 = vpop.f32.mrf.mxu0
    %v2125 = vadd.f32 0.0, %v2124
    %v2126 = vpop.f32.mrf.mxu0
    %2127 = vmatprep.mubr.bf16.mxu0 0
    %2128 = vmatmul.mubr.bf16.gmra.mxu0 %v1138
    %v2129 = vpop.f32.mrf.mxu0
    %v2130 = vadd.f32 0.0, %v2129
    %v2131 = vpop.f32.mrf.mxu0
    %v2132 = vpop.f32.mrf.mxu0
    %v2133 = vadd.f32 0.0, %v2132
    %v2134 = vpop.f32.mrf.mxu0
    %2135 = vmatprep.mubr.bf16.mxu0 0
    %2136 = vmatmul.mubr.bf16.gmra.mxu0 %v1141
    %v2137 = vpop.f32.mrf.mxu0
    %v2138 = vadd.f32 0.0, %v2137
    %v2139 = vpop.f32.mrf.mxu0
    %v2140 = vpop.f32.mrf.mxu0
    %v2141 = vadd.f32 0.0, %v2140
    %v2142 = vpop.f32.mrf.mxu0
    %2143 = vmatprep.mubr.bf16.mxu0 0
    %2144 = vmatmul.mubr.bf16.gmra.mxu0 %v1144
    %v2145 = vpop.f32.mrf.mxu0
    %v2146 = vadd.f32 0.0, %v2145
    %v2147 = vpop.f32.mrf.mxu0
    %v2148 = vpop.f32.mrf.mxu0
    %v2149 = vadd.f32 0.0, %v2148
    %v2150 = vpop.f32.mrf.mxu0
    %2151 = vdwg.mxu0
    %v2152 = vpack.c.bf16 %v2013, %v2010
    %v2153 = vpack.c.bf16 %v2021, %v2018
    %v2158 = vunpack.c.l.b16 %v1936
    %v2159 = vunpack.c.l.b16 %v1937
    %v2160 = vunpack.c.l.b16 %v1938
    %v2161 = vunpack.c.l.b16 %v1939
    %v2162 = vpack.c.b16 %v2159, %v2158
    %v2163 = vpack.c.b16 %v2161, %v2160
    %v2167 = vsel %vm1091, %v2152, 0
    %v2170 = vsel %vm1091, %v2153, 0
    %2172 = vmatprep.subr.bf16.mxu0 0
    %2173 = vmatpush1.bf16.msra.mxu0 0
    %2174 = vmatprep.subr.bf16.mxu0 0
    %2175 = vmatpush1.bf16.msra.mxu0 0
    %2176 = vmatprep.subr.bf16.mxu0 0
    %2177 = vmatpush1.bf16.msra.mxu0 0
    %2178 = vmatprep.subr.bf16.mxu0 0
    %2179 = vmatpush1.bf16.msra.mxu0 0
    %2180 = vmatprep.subr.bf16.mxu0 0
    %2181 = vmatpush1.bf16.msra.mxu0 0
    %2182 = vmatprep.subr.bf16.mxu0 0
    %2183 = vmatpush1.bf16.msra.mxu0 0
    %2184 = vmatprep.subr.bf16.mxu0 0
    %2185 = vmatpush1.bf16.msra.mxu0 %v2163
    %2186 = vmatprep.subr.bf16.mxu0 0
    %2187 = vmatpush1.bf16.msra.mxu0 %v2162
    %2188 = vmatprep.subr.bf16.mxu0 0
    %2189 = vmatpush2.bf16.msra.mxu0 0
    %2190 = vmatprep.subr.bf16.mxu0 0
    %2191 = vmatpush2.bf16.msra.mxu0 0
    %2192 = vmatprep.subr.bf16.mxu0 0
    %2193 = vmatpush2.bf16.msra.mxu0 0
    %2194 = vmatprep.subr.bf16.mxu0 0
    %2195 = vmatpush2.bf16.msra.mxu0 0
    %2196 = vmatprep.subr.bf16.mxu0 0
    %2197 = vmatpush2.bf16.msra.mxu0 0
    %2198 = vmatprep.subr.bf16.mxu0 0
    %2199 = vmatpush2.bf16.msra.mxu0 0
    %2200 = vmatprep.subr.bf16.mxu0 0
    %2201 = vmatpush2.bf16.msra.mxu0 0
    %2202 = vmatprep.subr.bf16.mxu0 0
    %2203 = vmatpush2.bf16.msra.mxu0 0
    %2204 = vmatprep.mubr.bf16.mxu0 0
    %2205 = vmatmul.mubr.bf16.gmra.mxu0 %v2167
    %v2206 = vpop.f32.mrf.mxu0
    %v2207 = vadd.f32 0.0, %v2206
    %v2208 = vpop.f32.mrf.mxu0
    %v2209 = vpop.f32.mrf.mxu0
    %v2210 = vadd.f32 0.0, %v2209
    %v2211 = vpop.f32.mrf.mxu0
    %2212 = vmatprep.mubr.bf16.mxu0 0
    %2213 = vmatmul.mubr.bf16.gmra.mxu0 %v2170
    %v2214 = vpop.f32.mrf.mxu0
    %v2215 = vadd.f32 0.0, %v2214
    %v2216 = vpop.f32.mrf.mxu0
    %v2217 = vpop.f32.mrf.mxu0
    %v2218 = vadd.f32 0.0, %v2217
    %v2219 = vpop.f32.mrf.mxu0
    %2220 = vdwg.mxu0
    %v2222 = vlaneseq
    %v2223 = vshrl.u32 %v2222, 7
    %v2224 = vsub.s32 0, %v2223
    %v2225 = vrot.slane %v1972, %v2224
    %v2227 = vadd.f32 %v2225, %v2207
    %v2228 = vadd.f32 %v2225, %v2210
    %v2229 = vadd.f32 %v2225, %v2215
    %v2230 = vadd.f32 %v2225, %v2218
    %v2231 = vpack.c.bf16 %v2029, %v2026
    %v2232 = vpack.c.bf16 %v2037, %v2034
    %v2237 = vunpack.c.l.b16 %v1940
    %v2238 = vunpack.c.l.b16 %v1941
    %v2239 = vunpack.c.l.b16 %v1942
    %v2240 = vunpack.c.l.b16 %v1943
    %v2241 = vpack.c.b16 %v2238, %v2237
    %v2242 = vpack.c.b16 %v2240, %v2239
    %v2246 = vsel %vm1091, %v2231, 0
    %v2249 = vsel %vm1091, %v2232, 0
    %2251 = vmatprep.subr.bf16.mxu0 0
    %2252 = vmatpush1.bf16.msra.mxu0 0
    %2253 = vmatprep.subr.bf16.mxu0 0
    %2254 = vmatpush1.bf16.msra.mxu0 0
    %2255 = vmatprep.subr.bf16.mxu0 0
    %2256 = vmatpush1.bf16.msra.mxu0 0
    %2257 = vmatprep.subr.bf16.mxu0 0
    %2258 = vmatpush1.bf16.msra.mxu0 0
    %2259 = vmatprep.subr.bf16.mxu0 0
    %2260 = vmatpush1.bf16.msra.mxu0 0
    %2261 = vmatprep.subr.bf16.mxu0 0
    %2262 = vmatpush1.bf16.msra.mxu0 0
    %2263 = vmatprep.subr.bf16.mxu0 0
    %2264 = vmatpush1.bf16.msra.mxu0 %v2242
    %2265 = vmatprep.subr.bf16.mxu0 0
    %2266 = vmatpush1.bf16.msra.mxu0 %v2241
    %2267 = vmatprep.subr.bf16.mxu0 0
    %2268 = vmatpush2.bf16.msra.mxu0 0
    %2269 = vmatprep.subr.bf16.mxu0 0
    %2270 = vmatpush2.bf16.msra.mxu0 0
    %2271 = vmatprep.subr.bf16.mxu0 0
    %2272 = vmatpush2.bf16.msra.mxu0 0
    %2273 = vmatprep.subr.bf16.mxu0 0
    %2274 = vmatpush2.bf16.msra.mxu0 0
    %2275 = vmatprep.subr.bf16.mxu0 0
    %2276 = vmatpush2.bf16.msra.mxu0 0
    %2277 = vmatprep.subr.bf16.mxu0 0
    %2278 = vmatpush2.bf16.msra.mxu0 0
    %2279 = vmatprep.subr.bf16.mxu0 0
    %2280 = vmatpush2.bf16.msra.mxu0 0
    %2281 = vmatprep.subr.bf16.mxu0 0
    %2282 = vmatpush2.bf16.msra.mxu0 0
    %2283 = vmatprep.mubr.bf16.mxu0 0
    %2284 = vmatmul.mubr.bf16.gmra.mxu0 %v2246
    %v2285 = vpop.f32.mrf.mxu0
    %v2286 = vadd.f32 0.0, %v2285
    %v2287 = vpop.f32.mrf.mxu0
    %v2288 = vpop.f32.mrf.mxu0
    %v2289 = vadd.f32 0.0, %v2288
    %v2290 = vpop.f32.mrf.mxu0
    %2291 = vmatprep.mubr.bf16.mxu0 0
    %2292 = vmatmul.mubr.bf16.gmra.mxu0 %v2249
    %v2293 = vpop.f32.mrf.mxu0
    %v2294 = vadd.f32 0.0, %v2293
    %v2295 = vpop.f32.mrf.mxu0
    %v2296 = vpop.f32.mrf.mxu0
    %v2297 = vadd.f32 0.0, %v2296
    %v2298 = vpop.f32.mrf.mxu0
    %2299 = vdwg.mxu0
    %v2300 = vadd.f32 %v2227, %v2286
    %v2301 = vadd.f32 %v2228, %v2289
    %v2302 = vadd.f32 %v2229, %v2294
    %v2303 = vadd.f32 %v2230, %v2297
    %v2304 = vpack.c.bf16 %v2045, %v2042
    %v2305 = vpack.c.bf16 %v2053, %v2050
    %v2310 = vunpack.c.l.b16 %v1944
    %v2311 = vunpack.c.l.b16 %v1945
    %v2312 = vunpack.c.l.b16 %v1946
    %v2313 = vunpack.c.l.b16 %v1947
    %v2314 = vpack.c.b16 %v2311, %v2310
    %v2315 = vpack.c.b16 %v2313, %v2312
    %v2319 = vsel %vm1091, %v2304, 0
    %v2322 = vsel %vm1091, %v2305, 0
    %2324 = vmatprep.subr.bf16.mxu0 0
    %2325 = vmatpush1.bf16.msra.mxu0 0
    %2326 = vmatprep.subr.bf16.mxu0 0
    %2327 = vmatpush1.bf16.msra.mxu0 0
    %2328 = vmatprep.subr.bf16.mxu0 0
    %2329 = vmatpush1.bf16.msra.mxu0 0
    %2330 = vmatprep.subr.bf16.mxu0 0
    %2331 = vmatpush1.bf16.msra.mxu0 0
    %2332 = vmatprep.subr.bf16.mxu0 0
    %2333 = vmatpush1.bf16.msra.mxu0 0
    %2334 = vmatprep.subr.bf16.mxu0 0
    %2335 = vmatpush1.bf16.msra.mxu0 0
    %2336 = vmatprep.subr.bf16.mxu0 0
    %2337 = vmatpush1.bf16.msra.mxu0 %v2315
    %2338 = vmatprep.subr.bf16.mxu0 0
    %2339 = vmatpush1.bf16.msra.mxu0 %v2314
    %2340 = vmatprep.subr.bf16.mxu0 0
    %2341 = vmatpush2.bf16.msra.mxu0 0
    %2342 = vmatprep.subr.bf16.mxu0 0
    %2343 = vmatpush2.bf16.msra.mxu0 0
    %2344 = vmatprep.subr.bf16.mxu0 0
    %2345 = vmatpush2.bf16.msra.mxu0 0
    %2346 = vmatprep.subr.bf16.mxu0 0
    %2347 = vmatpush2.bf16.msra.mxu0 0
    %2348 = vmatprep.subr.bf16.mxu0 0
    %2349 = vmatpush2.bf16.msra.mxu0 0
    %2350 = vmatprep.subr.bf16.mxu0 0
    %2351 = vmatpush2.bf16.msra.mxu0 0
    %2352 = vmatprep.subr.bf16.mxu0 0
    %2353 = vmatpush2.bf16.msra.mxu0 0
    %2354 = vmatprep.subr.bf16.mxu0 0
    %2355 = vmatpush2.bf16.msra.mxu0 0
    %2356 = vmatprep.mubr.bf16.mxu0 0
    %2357 = vmatmul.mubr.bf16.gmra.mxu0 %v2319
    %v2358 = vpop.f32.mrf.mxu0
    %v2359 = vadd.f32 0.0, %v2358
    %v2360 = vpop.f32.mrf.mxu0
    %v2361 = vpop.f32.mrf.mxu0
    %v2362 = vadd.f32 0.0, %v2361
    %v2363 = vpop.f32.mrf.mxu0
    %2364 = vmatprep.mubr.bf16.mxu0 0
    %2365 = vmatmul.mubr.bf16.gmra.mxu0 %v2322
    %v2366 = vpop.f32.mrf.mxu0
    %v2367 = vadd.f32 0.0, %v2366
    %v2368 = vpop.f32.mrf.mxu0
    %v2369 = vpop.f32.mrf.mxu0
    %v2370 = vadd.f32 0.0, %v2369
    %v2371 = vpop.f32.mrf.mxu0
    %2372 = vdwg.mxu0
    %v2373 = vadd.f32 %v2300, %v2359
    %v2374 = vadd.f32 %v2301, %v2362
    %v2375 = vadd.f32 %v2302, %v2367
    %v2376 = vadd.f32 %v2303, %v2370
    %v2377 = vpack.c.bf16 %v2061, %v2058
    %v2378 = vpack.c.bf16 %v2069, %v2066
    %v2383 = vunpack.c.l.b16 %v1948
    %v2384 = vunpack.c.l.b16 %v1949
    %v2385 = vunpack.c.l.b16 %v1950
    %v2386 = vunpack.c.l.b16 %v1951
    %v2387 = vpack.c.b16 %v2384, %v2383
    %v2388 = vpack.c.b16 %v2386, %v2385
    %v2392 = vsel %vm1091, %v2377, 0
    %v2395 = vsel %vm1091, %v2378, 0
    %2397 = vmatprep.subr.bf16.mxu0 0
    %2398 = vmatpush1.bf16.msra.mxu0 0
    %2399 = vmatprep.subr.bf16.mxu0 0
    %2400 = vmatpush1.bf16.msra.mxu0 0
    %2401 = vmatprep.subr.bf16.mxu0 0
    %2402 = vmatpush1.bf16.msra.mxu0 0
    %2403 = vmatprep.subr.bf16.mxu0 0
    %2404 = vmatpush1.bf16.msra.mxu0 0
    %2405 = vmatprep.subr.bf16.mxu0 0
    %2406 = vmatpush1.bf16.msra.mxu0 0
    %2407 = vmatprep.subr.bf16.mxu0 0
    %2408 = vmatpush1.bf16.msra.mxu0 0
    %2409 = vmatprep.subr.bf16.mxu0 0
    %2410 = vmatpush1.bf16.msra.mxu0 %v2388
    %2411 = vmatprep.subr.bf16.mxu0 0
    %2412 = vmatpush1.bf16.msra.mxu0 %v2387
    %2413 = vmatprep.subr.bf16.mxu0 0
    %2414 = vmatpush2.bf16.msra.mxu0 0
    %2415 = vmatprep.subr.bf16.mxu0 0
    %2416 = vmatpush2.bf16.msra.mxu0 0
    %2417 = vmatprep.subr.bf16.mxu0 0
    %2418 = vmatpush2.bf16.msra.mxu0 0
    %2419 = vmatprep.subr.bf16.mxu0 0
    %2420 = vmatpush2.bf16.msra.mxu0 0
    %2421 = vmatprep.subr.bf16.mxu0 0
    %2422 = vmatpush2.bf16.msra.mxu0 0
    %2423 = vmatprep.subr.bf16.mxu0 0
    %2424 = vmatpush2.bf16.msra.mxu0 0
    %2425 = vmatprep.subr.bf16.mxu0 0
    %2426 = vmatpush2.bf16.msra.mxu0 0
    %2427 = vmatprep.subr.bf16.mxu0 0
    %2428 = vmatpush2.bf16.msra.mxu0 0
    %2429 = vmatprep.mubr.bf16.mxu0 0
    %2430 = vmatmul.mubr.bf16.gmra.mxu0 %v2392
    %v2431 = vpop.f32.mrf.mxu0
    %v2432 = vadd.f32 0.0, %v2431
    %v2433 = vpop.f32.mrf.mxu0
    %v2434 = vpop.f32.mrf.mxu0
    %v2435 = vadd.f32 0.0, %v2434
    %v2436 = vpop.f32.mrf.mxu0
    %2437 = vmatprep.mubr.bf16.mxu0 0
    %2438 = vmatmul.mubr.bf16.gmra.mxu0 %v2395
    %v2439 = vpop.f32.mrf.mxu0
    %v2440 = vadd.f32 0.0, %v2439
    %v2441 = vpop.f32.mrf.mxu0
    %v2442 = vpop.f32.mrf.mxu0
    %v2443 = vadd.f32 0.0, %v2442
    %v2444 = vpop.f32.mrf.mxu0
    %2445 = vdwg.mxu0
    %v2446 = vadd.f32 %v2373, %v2432
    %v2447 = vadd.f32 %v2374, %v2435
    %v2448 = vadd.f32 %v2375, %v2440
    %v2449 = vadd.f32 %v2376, %v2443
    %v2450 = vpack.c.bf16 %v2077, %v2074
    %v2451 = vpack.c.bf16 %v2085, %v2082
    %v2456 = vunpack.c.l.b16 %v1952
    %v2457 = vunpack.c.l.b16 %v1953
    %v2458 = vunpack.c.l.b16 %v1954
    %v2459 = vunpack.c.l.b16 %v1955
    %v2460 = vpack.c.b16 %v2457, %v2456
    %v2461 = vpack.c.b16 %v2459, %v2458
    %v2465 = vsel %vm1091, %v2450, 0
    %v2468 = vsel %vm1091, %v2451, 0
    %2470 = vmatprep.subr.bf16.mxu0 0
    %2471 = vmatpush1.bf16.msra.mxu0 0
    %2472 = vmatprep.subr.bf16.mxu0 0
    %2473 = vmatpush1.bf16.msra.mxu0 0
    %2474 = vmatprep.subr.bf16.mxu0 0
    %2475 = vmatpush1.bf16.msra.mxu0 0
    %2476 = vmatprep.subr.bf16.mxu0 0
    %2477 = vmatpush1.bf16.msra.mxu0 0
    %2478 = vmatprep.subr.bf16.mxu0 0
    %2479 = vmatpush1.bf16.msra.mxu0 0
    %2480 = vmatprep.subr.bf16.mxu0 0
    %2481 = vmatpush1.bf16.msra.mxu0 0
    %2482 = vmatprep.subr.bf16.mxu0 0
    %2483 = vmatpush1.bf16.msra.mxu0 %v2461
    %2484 = vmatprep.subr.bf16.mxu0 0
    %2485 = vmatpush1.bf16.msra.mxu0 %v2460
    %2486 = vmatprep.subr.bf16.mxu0 0
    %2487 = vmatpush2.bf16.msra.mxu0 0
    %2488 = vmatprep.subr.bf16.mxu0 0
    %2489 = vmatpush2.bf16.msra.mxu0 0
    %2490 = vmatprep.subr.bf16.mxu0 0
    %2491 = vmatpush2.bf16.msra.mxu0 0
    %2492 = vmatprep.subr.bf16.mxu0 0
    %2493 = vmatpush2.bf16.msra.mxu0 0
    %2494 = vmatprep.subr.bf16.mxu0 0
    %2495 = vmatpush2.bf16.msra.mxu0 0
    %2496 = vmatprep.subr.bf16.mxu0 0
    %2497 = vmatpush2.bf16.msra.mxu0 0
    %2498 = vmatprep.subr.bf16.mxu0 0
    %2499 = vmatpush2.bf16.msra.mxu0 0
    %2500 = vmatprep.subr.bf16.mxu0 0
    %2501 = vmatpush2.bf16.msra.mxu0 0
    %2502 = vmatprep.mubr.bf16.mxu0 0
    %2503 = vmatmul.mubr.bf16.gmra.mxu0 %v2465
    %v2504 = vpop.f32.mrf.mxu0
    %v2505 = vadd.f32 0.0, %v2504
    %v2506 = vpop.f32.mrf.mxu0
    %v2507 = vpop.f32.mrf.mxu0
    %v2508 = vadd.f32 0.0, %v2507
    %v2509 = vpop.f32.mrf.mxu0
    %2510 = vmatprep.mubr.bf16.mxu0 0
    %2511 = vmatmul.mubr.bf16.gmra.mxu0 %v2468
    %v2512 = vpop.f32.mrf.mxu0
    %v2513 = vadd.f32 0.0, %v2512
    %v2514 = vpop.f32.mrf.mxu0
    %v2515 = vpop.f32.mrf.mxu0
    %v2516 = vadd.f32 0.0, %v2515
    %v2517 = vpop.f32.mrf.mxu0
    %2518 = vdwg.mxu0
    %v2519 = vadd.f32 %v2446, %v2505
    %v2520 = vadd.f32 %v2447, %v2508
    %v2521 = vadd.f32 %v2448, %v2513
    %v2522 = vadd.f32 %v2449, %v2516
    %v2523 = vpack.c.bf16 %v2093, %v2090
    %v2524 = vpack.c.bf16 %v2101, %v2098
    %v2529 = vunpack.c.l.b16 %v1956
    %v2530 = vunpack.c.l.b16 %v1957
    %v2531 = vunpack.c.l.b16 %v1958
    %v2532 = vunpack.c.l.b16 %v1959
    %v2533 = vpack.c.b16 %v2530, %v2529
    %v2534 = vpack.c.b16 %v2532, %v2531
    %v2538 = vsel %vm1091, %v2523, 0
    %v2541 = vsel %vm1091, %v2524, 0
    %2543 = vmatprep.subr.bf16.mxu0 0
    %2544 = vmatpush1.bf16.msra.mxu0 0
    %2545 = vmatprep.subr.bf16.mxu0 0
    %2546 = vmatpush1.bf16.msra.mxu0 0
    %2547 = vmatprep.subr.bf16.mxu0 0
    %2548 = vmatpush1.bf16.msra.mxu0 0
    %2549 = vmatprep.subr.bf16.mxu0 0
    %2550 = vmatpush1.bf16.msra.mxu0 0
    %2551 = vmatprep.subr.bf16.mxu0 0
    %2552 = vmatpush1.bf16.msra.mxu0 0
    %2553 = vmatprep.subr.bf16.mxu0 0
    %2554 = vmatpush1.bf16.msra.mxu0 0
    %2555 = vmatprep.subr.bf16.mxu0 0
    %2556 = vmatpush1.bf16.msra.mxu0 %v2534
    %2557 = vmatprep.subr.bf16.mxu0 0
    %2558 = vmatpush1.bf16.msra.mxu0 %v2533
    %2559 = vmatprep.subr.bf16.mxu0 0
    %2560 = vmatpush2.bf16.msra.mxu0 0
    %2561 = vmatprep.subr.bf16.mxu0 0
    %2562 = vmatpush2.bf16.msra.mxu0 0
    %2563 = vmatprep.subr.bf16.mxu0 0
    %2564 = vmatpush2.bf16.msra.mxu0 0
    %2565 = vmatprep.subr.bf16.mxu0 0
    %2566 = vmatpush2.bf16.msra.mxu0 0
    %2567 = vmatprep.subr.bf16.mxu0 0
    %2568 = vmatpush2.bf16.msra.mxu0 0
    %2569 = vmatprep.subr.bf16.mxu0 0
    %2570 = vmatpush2.bf16.msra.mxu0 0
    %2571 = vmatprep.subr.bf16.mxu0 0
    %2572 = vmatpush2.bf16.msra.mxu0 0
    %2573 = vmatprep.subr.bf16.mxu0 0
    %2574 = vmatpush2.bf16.msra.mxu0 0
    %2575 = vmatprep.mubr.bf16.mxu0 0
    %2576 = vmatmul.mubr.bf16.gmra.mxu0 %v2538
    %v2577 = vpop.f32.mrf.mxu0
    %v2578 = vadd.f32 0.0, %v2577
    %v2579 = vpop.f32.mrf.mxu0
    %v2580 = vpop.f32.mrf.mxu0
    %v2581 = vadd.f32 0.0, %v2580
    %v2582 = vpop.f32.mrf.mxu0
    %2583 = vmatprep.mubr.bf16.mxu0 0
    %2584 = vmatmul.mubr.bf16.gmra.mxu0 %v2541
    %v2585 = vpop.f32.mrf.mxu0
    %v2586 = vadd.f32 0.0, %v2585
    %v2587 = vpop.f32.mrf.mxu0
    %v2588 = vpop.f32.mrf.mxu0
    %v2589 = vadd.f32 0.0, %v2588
    %v2590 = vpop.f32.mrf.mxu0
    %2591 = vdwg.mxu0
    %v2592 = vadd.f32 %v2519, %v2578
    %v2593 = vadd.f32 %v2520, %v2581
    %v2594 = vadd.f32 %v2521, %v2586
    %v2595 = vadd.f32 %v2522, %v2589
    %v2596 = vpack.c.bf16 %v2109, %v2106
    %v2597 = vpack.c.bf16 %v2117, %v2114
    %v2602 = vunpack.c.l.b16 %v1960
    %v2603 = vunpack.c.l.b16 %v1961
    %v2604 = vunpack.c.l.b16 %v1962
    %v2605 = vunpack.c.l.b16 %v1963
    %v2606 = vpack.c.b16 %v2603, %v2602
    %v2607 = vpack.c.b16 %v2605, %v2604
    %v2611 = vsel %vm1091, %v2596, 0
    %v2614 = vsel %vm1091, %v2597, 0
    %2616 = vmatprep.subr.bf16.mxu0 0
    %2617 = vmatpush1.bf16.msra.mxu0 0
    %2618 = vmatprep.subr.bf16.mxu0 0
    %2619 = vmatpush1.bf16.msra.mxu0 0
    %2620 = vmatprep.subr.bf16.mxu0 0
    %2621 = vmatpush1.bf16.msra.mxu0 0
    %2622 = vmatprep.subr.bf16.mxu0 0
    %2623 = vmatpush1.bf16.msra.mxu0 0
    %2624 = vmatprep.subr.bf16.mxu0 0
    %2625 = vmatpush1.bf16.msra.mxu0 0
    %2626 = vmatprep.subr.bf16.mxu0 0
    %2627 = vmatpush1.bf16.msra.mxu0 0
    %2628 = vmatprep.subr.bf16.mxu0 0
    %2629 = vmatpush1.bf16.msra.mxu0 %v2607
    %2630 = vmatprep.subr.bf16.mxu0 0
    %2631 = vmatpush1.bf16.msra.mxu0 %v2606
    %2632 = vmatprep.subr.bf16.mxu0 0
    %2633 = vmatpush2.bf16.msra.mxu0 0
    %2634 = vmatprep.subr.bf16.mxu0 0
    %2635 = vmatpush2.bf16.msra.mxu0 0
    %2636 = vmatprep.subr.bf16.mxu0 0
    %2637 = vmatpush2.bf16.msra.mxu0 0
    %2638 = vmatprep.subr.bf16.mxu0 0
    %2639 = vmatpush2.bf16.msra.mxu0 0
    %2640 = vmatprep.subr.bf16.mxu0 0
    %2641 = vmatpush2.bf16.msra.mxu0 0
    %2642 = vmatprep.subr.bf16.mxu0 0
    %2643 = vmatpush2.bf16.msra.mxu0 0
    %2644 = vmatprep.subr.bf16.mxu0 0
    %2645 = vmatpush2.bf16.msra.mxu0 0
    %2646 = vmatprep.subr.bf16.mxu0 0
    %2647 = vmatpush2.bf16.msra.mxu0 0
    %2648 = vmatprep.mubr.bf16.mxu0 0
    %2649 = vmatmul.mubr.bf16.gmra.mxu0 %v2611
    %v2650 = vpop.f32.mrf.mxu0
    %v2651 = vadd.f32 0.0, %v2650
    %v2652 = vpop.f32.mrf.mxu0
    %v2653 = vpop.f32.mrf.mxu0
    %v2654 = vadd.f32 0.0, %v2653
    %v2655 = vpop.f32.mrf.mxu0
    %2656 = vmatprep.mubr.bf16.mxu0 0
    %2657 = vmatmul.mubr.bf16.gmra.mxu0 %v2614
    %v2658 = vpop.f32.mrf.mxu0
    %v2659 = vadd.f32 0.0, %v2658
    %v2660 = vpop.f32.mrf.mxu0
    %v2661 = vpop.f32.mrf.mxu0
    %v2662 = vadd.f32 0.0, %v2661
    %v2663 = vpop.f32.mrf.mxu0
    %2664 = vdwg.mxu0
    %v2665 = vadd.f32 %v2592, %v2651
    %v2666 = vadd.f32 %v2593, %v2654
    %v2667 = vadd.f32 %v2594, %v2659
    %v2668 = vadd.f32 %v2595, %v2662
    %v2669 = vpack.c.bf16 %v2125, %v2122
    %v2670 = vpack.c.bf16 %v2133, %v2130
    %v2675 = vunpack.c.l.b16 %v1964
    %v2676 = vunpack.c.l.b16 %v1965
    %v2677 = vunpack.c.l.b16 %v1966
    %v2678 = vunpack.c.l.b16 %v1967
    %v2679 = vpack.c.b16 %v2676, %v2675
    %v2680 = vpack.c.b16 %v2678, %v2677
    %v2684 = vsel %vm1091, %v2669, 0
    %v2687 = vsel %vm1091, %v2670, 0
    %2689 = vmatprep.subr.bf16.mxu0 0
    %2690 = vmatpush1.bf16.msra.mxu0 0
    %2691 = vmatprep.subr.bf16.mxu0 0
    %2692 = vmatpush1.bf16.msra.mxu0 0
    %2693 = vmatprep.subr.bf16.mxu0 0
    %2694 = vmatpush1.bf16.msra.mxu0 0
    %2695 = vmatprep.subr.bf16.mxu0 0
    %2696 = vmatpush1.bf16.msra.mxu0 0
    %2697 = vmatprep.subr.bf16.mxu0 0
    %2698 = vmatpush1.bf16.msra.mxu0 0
    %2699 = vmatprep.subr.bf16.mxu0 0
    %2700 = vmatpush1.bf16.msra.mxu0 0
    %2701 = vmatprep.subr.bf16.mxu0 0
    %2702 = vmatpush1.bf16.msra.mxu0 %v2680
    %2703 = vmatprep.subr.bf16.mxu0 0
    %2704 = vmatpush1.bf16.msra.mxu0 %v2679
    %2705 = vmatprep.subr.bf16.mxu0 0
    %2706 = vmatpush2.bf16.msra.mxu0 0
    %2707 = vmatprep.subr.bf16.mxu0 0
    %2708 = vmatpush2.bf16.msra.mxu0 0
    %2709 = vmatprep.subr.bf16.mxu0 0
    %2710 = vmatpush2.bf16.msra.mxu0 0
    %2711 = vmatprep.subr.bf16.mxu0 0
    %2712 = vmatpush2.bf16.msra.mxu0 0
    %2713 = vmatprep.subr.bf16.mxu0 0
    %2714 = vmatpush2.bf16.msra.mxu0 0
    %2715 = vmatprep.subr.bf16.mxu0 0
    %2716 = vmatpush2.bf16.msra.mxu0 0
    %2717 = vmatprep.subr.bf16.mxu0 0
    %2718 = vmatpush2.bf16.msra.mxu0 0
    %2719 = vmatprep.subr.bf16.mxu0 0
    %2720 = vmatpush2.bf16.msra.mxu0 0
    %2721 = vmatprep.mubr.bf16.mxu0 0
    %2722 = vmatmul.mubr.bf16.gmra.mxu0 %v2684
    %v2723 = vpop.f32.mrf.mxu0
    %v2724 = vadd.f32 0.0, %v2723
    %v2725 = vpop.f32.mrf.mxu0
    %v2726 = vpop.f32.mrf.mxu0
    %v2727 = vadd.f32 0.0, %v2726
    %v2728 = vpop.f32.mrf.mxu0
    %2729 = vmatprep.mubr.bf16.mxu0 0
    %2730 = vmatmul.mubr.bf16.gmra.mxu0 %v2687
    %v2731 = vpop.f32.mrf.mxu0
    %v2732 = vadd.f32 0.0, %v2731
    %v2733 = vpop.f32.mrf.mxu0
    %v2734 = vpop.f32.mrf.mxu0
    %v2735 = vadd.f32 0.0, %v2734
    %v2736 = vpop.f32.mrf.mxu0
    %2737 = vdwg.mxu0
    %v2738 = vadd.f32 %v2665, %v2724
    %v2739 = vadd.f32 %v2666, %v2727
    %v2740 = vadd.f32 %v2667, %v2732
    %v2741 = vadd.f32 %v2668, %v2735
    %v2742 = vpack.c.bf16 %v2141, %v2138
    %v2743 = vpack.c.bf16 %v2149, %v2146
    %v2748 = vunpack.c.l.b16 %v1968
    %v2749 = vunpack.c.l.b16 %v1969
    %v2750 = vunpack.c.l.b16 %v1970
    %v2751 = vunpack.c.l.b16 %v1971
    %v2752 = vpack.c.b16 %v2749, %v2748
    %v2753 = vpack.c.b16 %v2751, %v2750
    %v2757 = vsel %vm1091, %v2742, 0
    %v2760 = vsel %vm1091, %v2743, 0
    %2762 = vmatprep.subr.bf16.mxu0 0
    %2763 = vmatpush1.bf16.msra.mxu0 0
    %2764 = vmatprep.subr.bf16.mxu0 0
    %2765 = vmatpush1.bf16.msra.mxu0 0
    %2766 = vmatprep.subr.bf16.mxu0 0
    %2767 = vmatpush1.bf16.msra.mxu0 0
    %2768 = vmatprep.subr.bf16.mxu0 0
    %2769 = vmatpush1.bf16.msra.mxu0 0
    %2770 = vmatprep.subr.bf16.mxu0 0
    %2771 = vmatpush1.bf16.msra.mxu0 0
    %2772 = vmatprep.subr.bf16.mxu0 0
    %2773 = vmatpush1.bf16.msra.mxu0 0
    %2774 = vmatprep.subr.bf16.mxu0 0
    %2775 = vmatpush1.bf16.msra.mxu0 %v2753
    %2776 = vmatprep.subr.bf16.mxu0 0
    %2777 = vmatpush1.bf16.msra.mxu0 %v2752
    %2778 = vmatprep.subr.bf16.mxu0 0
    %2779 = vmatpush2.bf16.msra.mxu0 0
    %2780 = vmatprep.subr.bf16.mxu0 0
    %2781 = vmatpush2.bf16.msra.mxu0 0
    %2782 = vmatprep.subr.bf16.mxu0 0
    %2783 = vmatpush2.bf16.msra.mxu0 0
    %2784 = vmatprep.subr.bf16.mxu0 0
    %2785 = vmatpush2.bf16.msra.mxu0 0
    %2786 = vmatprep.subr.bf16.mxu0 0
    %2787 = vmatpush2.bf16.msra.mxu0 0
    %2788 = vmatprep.subr.bf16.mxu0 0
    %2789 = vmatpush2.bf16.msra.mxu0 0
    %2790 = vmatprep.subr.bf16.mxu0 0
    %2791 = vmatpush2.bf16.msra.mxu0 0
    %2792 = vmatprep.subr.bf16.mxu0 0
    %2793 = vmatpush2.bf16.msra.mxu0 0
    %2794 = vmatprep.mubr.bf16.mxu0 0
    %2795 = vmatmul.mubr.bf16.gmra.mxu0 %v2757
    %v2796 = vpop.f32.mrf.mxu0
    %v2797 = vadd.f32 0.0, %v2796
    %v2798 = vpop.f32.mrf.mxu0
    %v2799 = vpop.f32.mrf.mxu0
    %v2800 = vadd.f32 0.0, %v2799
    %v2801 = vpop.f32.mrf.mxu0
    %2802 = vmatprep.mubr.bf16.mxu0 0
    %2803 = vmatmul.mubr.bf16.gmra.mxu0 %v2760
    %v2804 = vpop.f32.mrf.mxu0
    %v2805 = vadd.f32 0.0, %v2804
    %v2806 = vpop.f32.mrf.mxu0
    %v2807 = vpop.f32.mrf.mxu0
    %v2808 = vadd.f32 0.0, %v2807
    %v2809 = vpop.f32.mrf.mxu0
    %2810 = vdwg.mxu0
    %v2811 = vadd.f32 %v2738, %v2797
    %v2812 = vadd.f32 %v2739, %v2800
    %v2813 = vadd.f32 %v2740, %v2805
    %v2814 = vadd.f32 %v2741, %v2808
    %v2815 = vmax.f32 %v2811, 0.0
    %v2816 = vmax.f32 %v2812, 0.0
    %v2817 = vmax.f32 %v2813, 0.0
    %v2818 = vmax.f32 %v2814, 0.0
    %v2819 = vld [vmem:[%s13] sm:$0xf]
    %v2820 = vld [vmem:[%s13 + $0x4] sm:$0xf]
    %v2821 = vld [vmem:[%s14] sm:$0x1]
    %v2823 = vlaneseq
    %v2824 = vshrl.u32 %v2823, 7
    %v2825 = vsub.s32 0, %v2824
    %v2826 = vrot.slane %v2821, %v2825
    %v2830 = vunpack.c.l.b16 %v2819
    %v2831 = vunpack.c.l.b16 %v2820
    %v2832 = vpack.c.b16 %v2831, %v2830
    %v2835 = vsel %vm451, %v999, 0
    %v2838 = vsel %vm451, %v1000, 0
    %2840 = vmatprep.subr.bf16.mxu0 0
    %2841 = vmatpush1.bf16.msra.mxu0 0
    %2842 = vmatprep.subr.bf16.mxu0 0
    %2843 = vmatpush1.bf16.msra.mxu0 0
    %2844 = vmatprep.subr.bf16.mxu0 0
    %2845 = vmatpush1.bf16.msra.mxu0 0
    %2846 = vmatprep.subr.bf16.mxu0 0
    %2847 = vmatpush1.bf16.msra.mxu0 0
    %2848 = vmatprep.subr.bf16.mxu0 0
    %2849 = vmatpush1.bf16.msra.mxu0 0
    %2850 = vmatprep.subr.bf16.mxu0 0
    %2851 = vmatpush1.bf16.msra.mxu0 0
    %2852 = vmatprep.subr.bf16.mxu0 0
    %2853 = vmatpush1.bf16.msra.mxu0 0
    %2854 = vmatprep.subr.bf16.mxu0 0
    %2855 = vmatpush1.bf16.msra.mxu0 %v2832
    %2856 = vmatprep.subr.bf16.mxu0 0
    %2857 = vmatpush2.bf16.msra.mxu0 0
    %2858 = vmatprep.subr.bf16.mxu0 0
    %2859 = vmatpush2.bf16.msra.mxu0 0
    %2860 = vmatprep.subr.bf16.mxu0 0
    %2861 = vmatpush2.bf16.msra.mxu0 0
    %2862 = vmatprep.subr.bf16.mxu0 0
    %2863 = vmatpush2.bf16.msra.mxu0 0
    %2864 = vmatprep.subr.bf16.mxu0 0
    %2865 = vmatpush2.bf16.msra.mxu0 0
    %2866 = vmatprep.subr.bf16.mxu0 0
    %2867 = vmatpush2.bf16.msra.mxu0 0
    %2868 = vmatprep.subr.bf16.mxu0 0
    %2869 = vmatpush2.bf16.msra.mxu0 0
    %2870 = vmatprep.subr.bf16.mxu0 0
    %2871 = vmatpush2.bf16.msra.mxu0 0
    %2872 = vmatprep.mubr.bf16.mxu0 0
    %2873 = vmatmul.mubr.bf16.gmra.mxu0 %v2835
    %v2874 = vpop.f32.mrf.mxu0
    %v2875 = vadd.f32 %v2826, %v2874
    %v2876 = vpop.f32.mrf.mxu0
    %v2877 = vpop.f32.mrf.mxu0
    %v2878 = vadd.f32 %v2826, %v2877
    %v2879 = vpop.f32.mrf.mxu0
    %2880 = vmatprep.mubr.bf16.mxu0 0
    %2881 = vmatmul.mubr.bf16.gmra.mxu0 %v2838
    %v2882 = vpop.f32.mrf.mxu0
    %v2883 = vadd.f32 %v2826, %v2882
    %v2884 = vpop.f32.mrf.mxu0
    %v2885 = vpop.f32.mrf.mxu0
    %v2886 = vadd.f32 %v2826, %v2885
    %v2887 = vpop.f32.mrf.mxu0
    %2888 = vdwg.mxu0
    %v2889 = vmax.f32 %v2875, 0.0
    %v2890 = vmax.f32 %v2878, 0.0
    %v2891 = vmax.f32 %v2883, 0.0
    %v2892 = vmax.f32 %v2886, 0.0
    %v2893 = vadd.f32 %v2815, %v2889
    %v2894 = vadd.f32 %v2816, %v2890
    %v2895 = vadd.f32 %v2817, %v2891
    %v2896 = vadd.f32 %v2818, %v2892
    %v2897 = vld [vmem:[%s15] sm:$0xf]
    %v2898 = vld [vmem:[%s15 + $0x4] sm:$0xf]
    %v2899 = vld [vmem:[%s15 + $0x8] sm:$0xf]
    %v2900 = vld [vmem:[%s15 + $0xc] sm:$0xf]
    %v2901 = vpack.c.bf16 %v2894, %v2893
    %v2902 = vpack.c.bf16 %v2896, %v2895
    %v2907 = vunpack.c.l.b16 %v2897
    %v2908 = vunpack.c.l.b16 %v2898
    %v2909 = vunpack.c.l.b16 %v2899
    %v2910 = vunpack.c.l.b16 %v2900
    %v2911 = vpack.c.b16 %v2908, %v2907
    %v2912 = vpack.c.b16 %v2910, %v2909
    %v2914 = vsel %vm1091, %v2911, 0
    %v2917 = vsel %vm1091, %v2912, 0
    %2919 = vmatprep.subr.bf16.mxu0 0
    %2920 = vmatpush1.bf16.msra.mxu0 0
    %2921 = vmatprep.subr.bf16.mxu0 0
    %2922 = vmatpush1.bf16.msra.mxu0 0
    %2923 = vmatprep.subr.bf16.mxu0 0
    %2924 = vmatpush1.bf16.msra.mxu0 0
    %2925 = vmatprep.subr.bf16.mxu0 0
    %2926 = vmatpush1.bf16.msra.mxu0 0
    %2927 = vmatprep.subr.bf16.mxu0 0
    %2928 = vmatpush1.bf16.msra.mxu0 0
    %2929 = vmatprep.subr.bf16.mxu0 0
    %2930 = vmatpush1.bf16.msra.mxu0 0
    %2931 = vmatprep.subr.bf16.mxu0 0
    %2932 = vmatpush1.bf16.msra.mxu0 %v2902
    %2933 = vmatprep.subr.bf16.mxu0 0
    %2934 = vmatpush1.bf16.msra.mxu0 %v2901
    %2935 = vmatprep.subr.bf16.mxu0 0
    %2936 = vmatpush2.bf16.msra.mxu0 0
    %2937 = vmatprep.subr.bf16.mxu0 0
    %2938 = vmatpush2.bf16.msra.mxu0 0
    %2939 = vmatprep.subr.bf16.mxu0 0
    %2940 = vmatpush2.bf16.msra.mxu0 0
    %2941 = vmatprep.subr.bf16.mxu0 0
    %2942 = vmatpush2.bf16.msra.mxu0 0
    %2943 = vmatprep.subr.bf16.mxu0 0
    %2944 = vmatpush2.bf16.msra.mxu0 0
    %2945 = vmatprep.subr.bf16.mxu0 0
    %2946 = vmatpush2.bf16.msra.mxu0 0
    %2947 = vmatprep.subr.bf16.mxu0 0
    %2948 = vmatpush2.bf16.msra.mxu0 0
    %2949 = vmatprep.subr.bf16.mxu0 0
    %2950 = vmatpush2.bf16.msra.mxu0 0
    %2951 = vmatprep.mubr.bf16.mxu0 0
    %2952 = vmatmul.mubr.bf16.gmra.mxu0 %v2914
    %v2953 = vpop.f32.mrf.mxu0
    %v2954 = vadd.f32 0.0, %v2953
    %v2955 = vpop.f32.mrf.mxu0
    %v2956 = vpop.f32.mrf.mxu0
    %v2957 = vadd.f32 0.0, %v2956
    %v2958 = vpop.f32.mrf.mxu0
    %2959 = vmatprep.mubr.bf16.mxu0 0
    %2960 = vmatmul.mubr.bf16.gmra.mxu0 %v2917
    %v2961 = vpop.f32.mrf.mxu0
    %v2962 = vadd.f32 0.0, %v2961
    %v2963 = vpop.f32.mrf.mxu0
    %v2964 = vpop.f32.mrf.mxu0
    %v2965 = vadd.f32 0.0, %v2964
    %v2966 = vpop.f32.mrf.mxu0
    %2967 = vdwg.mxu0
    %v2968 = vmax.f32 %v2954, %v2957
    %v2969 = vmax.f32 %v2962, %v2965
    %v2970 = vmax.f32 %v2968, %v2969
    %v2971 = vld [vmem:[%s16] sm:$0xf]
    %v2972 = vld [vmem:[%s16 + $0x4] sm:$0xf]
    %v2973 = vld [vmem:[%s16 + $0x8] sm:$0xf]
    %v2974 = vld [vmem:[%s16 + $0xc] sm:$0xf]
    %v2975 = vld [vmem:[%s16 + $0x10] sm:$0xf]
    %v2976 = vld [vmem:[%s16 + $0x14] sm:$0xf]
    %v2977 = vld [vmem:[%s16 + $0x18] sm:$0xf]
    %v2978 = vld [vmem:[%s16 + $0x1c] sm:$0xf]
    %v2979 = vld [vmem:[%s16 + $0x20] sm:$0xf]
    %v2980 = vld [vmem:[%s17] sm:$0xf]
    %v2981 = vld [vmem:[%s17 + $0x4] sm:$0xf]
    %v2982 = vld [vmem:[%s17 + $0x8] sm:$0xf]
    %v2983 = vld [vmem:[%s17 + $0xc] sm:$0xf]
    %v2984 = vld [vmem:[%s17 + $0x10] sm:$0xf]
    %v2985 = vld [vmem:[%s17 + $0x14] sm:$0xf]
    %v2986 = vld [vmem:[%s17 + $0x18] sm:$0xf]
    %v2987 = vld [vmem:[%s17 + $0x1c] sm:$0xf]
    %v2988 = vld [vmem:[%s17 + $0x20] sm:$0xf]
    %v2989 = vld [vmem:[%s17 + $0x24] sm:$0xf]
    %v2990 = vld [vmem:[%s17 + $0x28] sm:$0xf]
    %v2991 = vld [vmem:[%s17 + $0x2c] sm:$0xf]
    %v2992 = vld [vmem:[%s17 + $0x30] sm:$0xf]
    %v2993 = vld [vmem:[%s17 + $0x34] sm:$0xf]
    %v2994 = vld [vmem:[%s17 + $0x38] sm:$0xf]
    %v2995 = vld [vmem:[%s17 + $0x3c] sm:$0xf]
    %v2996 = vld [vmem:[%s17 + $0x40] sm:$0xf]
    %v2997 = vld [vmem:[%s17 + $0x44] sm:$0xf]
    %v2998 = vld [vmem:[%s17 + $0x48] sm:$0xf]
    %v2999 = vld [vmem:[%s17 + $0x4c] sm:$0xf]
    %v3000 = vld [vmem:[%s17 + $0x50] sm:$0xf]
    %v3001 = vld [vmem:[%s17 + $0x54] sm:$0xf]
    %v3002 = vld [vmem:[%s17 + $0x58] sm:$0xf]
    %v3003 = vld [vmem:[%s17 + $0x5c] sm:$0xf]
    %v3004 = vld [vmem:[%s17 + $0x60] sm:$0xf]
    %v3005 = vld [vmem:[%s17 + $0x64] sm:$0xf]
    %v3006 = vld [vmem:[%s17 + $0x68] sm:$0xf]
    %v3007 = vld [vmem:[%s17 + $0x6c] sm:$0xf]
    %v3008 = vld [vmem:[%s17 + $0x70] sm:$0xf]
    %v3009 = vld [vmem:[%s17 + $0x74] sm:$0xf]
    %v3010 = vld [vmem:[%s17 + $0x78] sm:$0xf]
    %v3011 = vld [vmem:[%s17 + $0x7c] sm:$0xf]
    %v3012 = vld [vmem:[%s17 + $0x80] sm:$0xf]
    %v3013 = vld [vmem:[%s17 + $0x84] sm:$0xf]
    %v3014 = vld [vmem:[%s17 + $0x88] sm:$0xf]
    %v3015 = vld [vmem:[%s17 + $0x8c] sm:$0xf]
    %v3016 = vld [vmem:[%s18] sm:$0x1]
    %v3017 = vpack.c.bf16 %v2970, %v2970
    %v3027 = vunpack.c.l.b16 %v2971
    %v3028 = vunpack.c.l.b16 %v2972
    %v3029 = vunpack.c.l.b16 %v2973
    %v3030 = vunpack.c.l.b16 %v2974
    %v3031 = vunpack.c.l.b16 %v2975
    %v3032 = vunpack.c.l.b16 %v2976
    %v3033 = vunpack.c.l.b16 %v2977
    %v3034 = vunpack.c.l.b16 %v2978
    %v3035 = vunpack.c.l.b16 %v2979
    %v3036 = vpack.c.b16 %v3028, %v3027
    %v3037 = vpack.c.b16 %v3030, %v3029
    %v3038 = vpack.c.b16 %v3032, %v3031
    %v3039 = vpack.c.b16 %v3034, %v3033
    %v3040 = vpack.c.b16 %v3035, %v3035
    %vm3041 = vcmask 64512
    %v3043 = vsel %vm3041, %v3036, 0
    %v3046 = vsel %vm3041, %v3037, 0
    %v3049 = vsel %vm3041, %v3038, 0
    %v3052 = vsel %vm3041, %v3039, 0
    %v3055 = vsel %vm3041, %v3040, 0
    %vm3057 = vcmask 1043456
    %v3059 = vsel %vm3057, %v3017, 0
    %3061 = vmatprep.subr.bf16.mxu0 0
    %3062 = vmatpush1.bf16.msra.mxu0 0
    %3063 = vmatprep.subr.bf16.mxu0 0
    %3064 = vmatpush1.bf16.msra.mxu0 0
    %3065 = vmatprep.subr.bf16.mxu0 0
    %3066 = vmatpush1.bf16.msra.mxu0 0
    %3067 = vmatprep.subr.bf16.mxu0 0
    %3068 = vmatpush1.bf16.msra.mxu0 0
    %3069 = vmatprep.subr.bf16.mxu0 0
    %3070 = vmatpush1.bf16.msra.mxu0 0
    %3071 = vmatprep.subr.bf16.mxu0 0
    %3072 = vmatpush1.bf16.msra.mxu0 0
    %3073 = vmatprep.subr.bf16.mxu0 0
    %3074 = vmatpush1.bf16.msra.mxu0 0
    %3075 = vmatprep.subr.bf16.mxu0 0
    %3076 = vmatpush1.bf16.msra.mxu0 %v3059
    %3077 = vmatprep.subr.bf16.mxu0 0
    %3078 = vmatpush2.bf16.msra.mxu0 0
    %3079 = vmatprep.subr.bf16.mxu0 0
    %3080 = vmatpush2.bf16.msra.mxu0 0
    %3081 = vmatprep.subr.bf16.mxu0 0
    %3082 = vmatpush2.bf16.msra.mxu0 0
    %3083 = vmatprep.subr.bf16.mxu0 0
    %3084 = vmatpush2.bf16.msra.mxu0 0
    %3085 = vmatprep.subr.bf16.mxu0 0
    %3086 = vmatpush2.bf16.msra.mxu0 0
    %3087 = vmatprep.subr.bf16.mxu0 0
    %3088 = vmatpush2.bf16.msra.mxu0 0
    %3089 = vmatprep.subr.bf16.mxu0 0
    %3090 = vmatpush2.bf16.msra.mxu0 0
    %3091 = vmatprep.subr.bf16.mxu0 0
    %3092 = vmatpush2.bf16.msra.mxu0 0
    %3093 = vmatprep.mubr.bf16.mxu0 0
    %3094 = vmatmul.mubr.bf16.gmra.mxu0 %v3043
    %v3095 = vpop.f32.mrf.mxu0
    %v3096 = vadd.f32 0.0, %v3095
    %v3097 = vpop.f32.mrf.mxu0
    %v3098 = vpop.f32.mrf.mxu0
    %v3099 = vadd.f32 0.0, %v3098
    %v3100 = vpop.f32.mrf.mxu0
    %3101 = vmatprep.mubr.bf16.mxu0 0
    %3102 = vmatmul.mubr.bf16.gmra.mxu0 %v3046
    %v3103 = vpop.f32.mrf.mxu0
    %v3104 = vadd.f32 0.0, %v3103
    %v3105 = vpop.f32.mrf.mxu0
    %v3106 = vpop.f32.mrf.mxu0
    %v3107 = vadd.f32 0.0, %v3106
    %v3108 = vpop.f32.mrf.mxu0
    %3109 = vmatprep.mubr.bf16.mxu0 0
    %3110 = vmatmul.mubr.bf16.gmra.mxu0 %v3049
    %v3111 = vpop.f32.mrf.mxu0
    %v3112 = vadd.f32 0.0, %v3111
    %v3113 = vpop.f32.mrf.mxu0
    %v3114 = vpop.f32.mrf.mxu0
    %v3115 = vadd.f32 0.0, %v3114
    %v3116 = vpop.f32.mrf.mxu0
    %3117 = vmatprep.mubr.bf16.mxu0 0
    %3118 = vmatmul.mubr.bf16.gmra.mxu0 %v3052
    %v3119 = vpop.f32.mrf.mxu0
    %v3120 = vadd.f32 0.0, %v3119
    %v3121 = vpop.f32.mrf.mxu0
    %v3122 = vpop.f32.mrf.mxu0
    %v3123 = vadd.f32 0.0, %v3122
    %v3124 = vpop.f32.mrf.mxu0
    %3125 = vmatprep.mubr.bf16.mxu0 0
    %3126 = vmatmul.mubr.bf16.gmra.mxu0 %v3055
    %v3127 = vpop.f32.mrf.mxu0
    %v3128 = vadd.f32 0.0, %v3127
    %v3129 = vpop.f32.mrf.mxu0
    %v3130 = vpop.f32.mrf.mxu0
    %v3131 = vpop.f32.mrf.mxu0
    %3132 = vdwg.mxu0
    %v3133 = vpack.c.bf16 %v3096, %v3096
    %v3138 = vunpack.c.l.b16 %v2980
    %v3139 = vunpack.c.l.b16 %v2981
    %v3140 = vunpack.c.l.b16 %v2982
    %v3141 = vunpack.c.l.b16 %v2983
    %v3142 = vpack.c.b16 %v3139, %v3138
    %v3143 = vpack.c.b16 %v3141, %v3140
    %v3147 = vsel %vm1091, %v3133, 0
    %3149 = vmatprep.subr.bf16.mxu0 0
    %3150 = vmatpush1.bf16.msra.mxu0 0
    %3151 = vmatprep.subr.bf16.mxu0 0
    %3152 = vmatpush1.bf16.msra.mxu0 0
    %3153 = vmatprep.subr.bf16.mxu0 0
    %3154 = vmatpush1.bf16.msra.mxu0 0
    %3155 = vmatprep.subr.bf16.mxu0 0
    %3156 = vmatpush1.bf16.msra.mxu0 0
    %3157 = vmatprep.subr.bf16.mxu0 0
    %3158 = vmatpush1.bf16.msra.mxu0 0
    %3159 = vmatprep.subr.bf16.mxu0 0
    %3160 = vmatpush1.bf16.msra.mxu0 0
    %3161 = vmatprep.subr.bf16.mxu0 0
    %3162 = vmatpush1.bf16.msra.mxu0 %v3143
    %3163 = vmatprep.subr.bf16.mxu0 0
    %3164 = vmatpush1.bf16.msra.mxu0 %v3142
    %3165 = vmatprep.subr.bf16.mxu0 0
    %3166 = vmatpush2.bf16.msra.mxu0 0
    %3167 = vmatprep.subr.bf16.mxu0 0
    %3168 = vmatpush2.bf16.msra.mxu0 0
    %3169 = vmatprep.subr.bf16.mxu0 0
    %3170 = vmatpush2.bf16.msra.mxu0 0
    %3171 = vmatprep.subr.bf16.mxu0 0
    %3172 = vmatpush2.bf16.msra.mxu0 0
    %3173 = vmatprep.subr.bf16.mxu0 0
    %3174 = vmatpush2.bf16.msra.mxu0 0
    %3175 = vmatprep.subr.bf16.mxu0 0
    %3176 = vmatpush2.bf16.msra.mxu0 0
    %3177 = vmatprep.subr.bf16.mxu0 0
    %3178 = vmatpush2.bf16.msra.mxu0 0
    %3179 = vmatprep.subr.bf16.mxu0 0
    %3180 = vmatpush2.bf16.msra.mxu0 0
    %3181 = vmatprep.mubr.bf16.mxu0 0
    %3182 = vmatmul.mubr.bf16.gmra.mxu0 %v3147
    %v3183 = vpop.f32.mrf.mxu0
    %v3184 = vadd.f32 0.0, %v3183
    %v3185 = vpop.f32.mrf.mxu0
    %v3186 = vpop.f32.mrf.mxu0
    %v3187 = vpop.f32.mrf.mxu0
    %3188 = vdwg.mxu0
    %v3190 = vlaneseq
    %v3191 = vshrl.u32 %v3190, 7
    %v3192 = vsub.s32 0, %v3191
    %v3193 = vrot.slane %v3016, %v3192
    %v3195 = vadd.f32 %v3193, %v3184
    %v3196 = vpack.c.bf16 %v3099, %v3099
    %v3201 = vunpack.c.l.b16 %v2984
    %v3202 = vunpack.c.l.b16 %v2985
    %v3203 = vunpack.c.l.b16 %v2986
    %v3204 = vunpack.c.l.b16 %v2987
    %v3205 = vpack.c.b16 %v3202, %v3201
    %v3206 = vpack.c.b16 %v3204, %v3203
    %v3210 = vsel %vm1091, %v3196, 0
    %3212 = vmatprep.subr.bf16.mxu0 0
    %3213 = vmatpush1.bf16.msra.mxu0 0
    %3214 = vmatprep.subr.bf16.mxu0 0
    %3215 = vmatpush1.bf16.msra.mxu0 0
    %3216 = vmatprep.subr.bf16.mxu0 0
    %3217 = vmatpush1.bf16.msra.mxu0 0
    %3218 = vmatprep.subr.bf16.mxu0 0
    %3219 = vmatpush1.bf16.msra.mxu0 0
    %3220 = vmatprep.subr.bf16.mxu0 0
    %3221 = vmatpush1.bf16.msra.mxu0 0
    %3222 = vmatprep.subr.bf16.mxu0 0
    %3223 = vmatpush1.bf16.msra.mxu0 0
    %3224 = vmatprep.subr.bf16.mxu0 0
    %3225 = vmatpush1.bf16.msra.mxu0 %v3206
    %3226 = vmatprep.subr.bf16.mxu0 0
    %3227 = vmatpush1.bf16.msra.mxu0 %v3205
    %3228 = vmatprep.subr.bf16.mxu0 0
    %3229 = vmatpush2.bf16.msra.mxu0 0
    %3230 = vmatprep.subr.bf16.mxu0 0
    %3231 = vmatpush2.bf16.msra.mxu0 0
    %3232 = vmatprep.subr.bf16.mxu0 0
    %3233 = vmatpush2.bf16.msra.mxu0 0
    %3234 = vmatprep.subr.bf16.mxu0 0
    %3235 = vmatpush2.bf16.msra.mxu0 0
    %3236 = vmatprep.subr.bf16.mxu0 0
    %3237 = vmatpush2.bf16.msra.mxu0 0
    %3238 = vmatprep.subr.bf16.mxu0 0
    %3239 = vmatpush2.bf16.msra.mxu0 0
    %3240 = vmatprep.subr.bf16.mxu0 0
    %3241 = vmatpush2.bf16.msra.mxu0 0
    %3242 = vmatprep.subr.bf16.mxu0 0
    %3243 = vmatpush2.bf16.msra.mxu0 0
    %3244 = vmatprep.mubr.bf16.mxu0 0
    %3245 = vmatmul.mubr.bf16.gmra.mxu0 %v3210
    %v3246 = vpop.f32.mrf.mxu0
    %v3247 = vadd.f32 0.0, %v3246
    %v3248 = vpop.f32.mrf.mxu0
    %v3249 = vpop.f32.mrf.mxu0
    %v3250 = vpop.f32.mrf.mxu0
    %3251 = vdwg.mxu0
    %v3252 = vadd.f32 %v3195, %v3247
    %v3253 = vpack.c.bf16 %v3104, %v3104
    %v3258 = vunpack.c.l.b16 %v2988
    %v3259 = vunpack.c.l.b16 %v2989
    %v3260 = vunpack.c.l.b16 %v2990
    %v3261 = vunpack.c.l.b16 %v2991
    %v3262 = vpack.c.b16 %v3259, %v3258
    %v3263 = vpack.c.b16 %v3261, %v3260
    %v3267 = vsel %vm1091, %v3253, 0
    %3269 = vmatprep.subr.bf16.mxu0 0
    %3270 = vmatpush1.bf16.msra.mxu0 0
    %3271 = vmatprep.subr.bf16.mxu0 0
    %3272 = vmatpush1.bf16.msra.mxu0 0
    %3273 = vmatprep.subr.bf16.mxu0 0
    %3274 = vmatpush1.bf16.msra.mxu0 0
    %3275 = vmatprep.subr.bf16.mxu0 0
    %3276 = vmatpush1.bf16.msra.mxu0 0
    %3277 = vmatprep.subr.bf16.mxu0 0
    %3278 = vmatpush1.bf16.msra.mxu0 0
    %3279 = vmatprep.subr.bf16.mxu0 0
    %3280 = vmatpush1.bf16.msra.mxu0 0
    %3281 = vmatprep.subr.bf16.mxu0 0
    %3282 = vmatpush1.bf16.msra.mxu0 %v3263
    %3283 = vmatprep.subr.bf16.mxu0 0
    %3284 = vmatpush1.bf16.msra.mxu0 %v3262
    %3285 = vmatprep.subr.bf16.mxu0 0
    %3286 = vmatpush2.bf16.msra.mxu0 0
    %3287 = vmatprep.subr.bf16.mxu0 0
    %3288 = vmatpush2.bf16.msra.mxu0 0
    %3289 = vmatprep.subr.bf16.mxu0 0
    %3290 = vmatpush2.bf16.msra.mxu0 0
    %3291 = vmatprep.subr.bf16.mxu0 0
    %3292 = vmatpush2.bf16.msra.mxu0 0
    %3293 = vmatprep.subr.bf16.mxu0 0
    %3294 = vmatpush2.bf16.msra.mxu0 0
    %3295 = vmatprep.subr.bf16.mxu0 0
    %3296 = vmatpush2.bf16.msra.mxu0 0
    %3297 = vmatprep.subr.bf16.mxu0 0
    %3298 = vmatpush2.bf16.msra.mxu0 0
    %3299 = vmatprep.subr.bf16.mxu0 0
    %3300 = vmatpush2.bf16.msra.mxu0 0
    %3301 = vmatprep.mubr.bf16.mxu0 0
    %3302 = vmatmul.mubr.bf16.gmra.mxu0 %v3267
    %v3303 = vpop.f32.mrf.mxu0
    %v3304 = vadd.f32 0.0, %v3303
    %v3305 = vpop.f32.mrf.mxu0
    %v3306 = vpop.f32.mrf.mxu0
    %v3307 = vpop.f32.mrf.mxu0
    %3308 = vdwg.mxu0
    %v3309 = vadd.f32 %v3252, %v3304
    %v3310 = vpack.c.bf16 %v3107, %v3107
    %v3315 = vunpack.c.l.b16 %v2992
    %v3316 = vunpack.c.l.b16 %v2993
    %v3317 = vunpack.c.l.b16 %v2994
    %v3318 = vunpack.c.l.b16 %v2995
    %v3319 = vpack.c.b16 %v3316, %v3315
    %v3320 = vpack.c.b16 %v3318, %v3317
    %v3324 = vsel %vm1091, %v3310, 0
    %3326 = vmatprep.subr.bf16.mxu0 0
    %3327 = vmatpush1.bf16.msra.mxu0 0
    %3328 = vmatprep.subr.bf16.mxu0 0
    %3329 = vmatpush1.bf16.msra.mxu0 0
    %3330 = vmatprep.subr.bf16.mxu0 0
    %3331 = vmatpush1.bf16.msra.mxu0 0
    %3332 = vmatprep.subr.bf16.mxu0 0
    %3333 = vmatpush1.bf16.msra.mxu0 0
    %3334 = vmatprep.subr.bf16.mxu0 0
    %3335 = vmatpush1.bf16.msra.mxu0 0
    %3336 = vmatprep.subr.bf16.mxu0 0
    %3337 = vmatpush1.bf16.msra.mxu0 0
    %3338 = vmatprep.subr.bf16.mxu0 0
    %3339 = vmatpush1.bf16.msra.mxu0 %v3320
    %3340 = vmatprep.subr.bf16.mxu0 0
    %3341 = vmatpush1.bf16.msra.mxu0 %v3319
    %3342 = vmatprep.subr.bf16.mxu0 0
    %3343 = vmatpush2.bf16.msra.mxu0 0
    %3344 = vmatprep.subr.bf16.mxu0 0
    %3345 = vmatpush2.bf16.msra.mxu0 0
    %3346 = vmatprep.subr.bf16.mxu0 0
    %3347 = vmatpush2.bf16.msra.mxu0 0
    %3348 = vmatprep.subr.bf16.mxu0 0
    %3349 = vmatpush2.bf16.msra.mxu0 0
    %3350 = vmatprep.subr.bf16.mxu0 0
    %3351 = vmatpush2.bf16.msra.mxu0 0
    %3352 = vmatprep.subr.bf16.mxu0 0
    %3353 = vmatpush2.bf16.msra.mxu0 0
    %3354 = vmatprep.subr.bf16.mxu0 0
    %3355 = vmatpush2.bf16.msra.mxu0 0
    %3356 = vmatprep.subr.bf16.mxu0 0
    %3357 = vmatpush2.bf16.msra.mxu0 0
    %3358 = vmatprep.mubr.bf16.mxu0 0
    %3359 = vmatmul.mubr.bf16.gmra.mxu0 %v3324
    %v3360 = vpop.f32.mrf.mxu0
    %v3361 = vadd.f32 0.0, %v3360
    %v3362 = vpop.f32.mrf.mxu0
    %v3363 = vpop.f32.mrf.mxu0
    %v3364 = vpop.f32.mrf.mxu0
    %3365 = vdwg.mxu0
    %v3366 = vadd.f32 %v3309, %v3361
    %v3367 = vpack.c.bf16 %v3112, %v3112
    %v3372 = vunpack.c.l.b16 %v2996
    %v3373 = vunpack.c.l.b16 %v2997
    %v3374 = vunpack.c.l.b16 %v2998
    %v3375 = vunpack.c.l.b16 %v2999
    %v3376 = vpack.c.b16 %v3373, %v3372
    %v3377 = vpack.c.b16 %v3375, %v3374
    %v3381 = vsel %vm1091, %v3367, 0
    %3383 = vmatprep.subr.bf16.mxu0 0
    %3384 = vmatpush1.bf16.msra.mxu0 0
    %3385 = vmatprep.subr.bf16.mxu0 0
    %3386 = vmatpush1.bf16.msra.mxu0 0
    %3387 = vmatprep.subr.bf16.mxu0 0
    %3388 = vmatpush1.bf16.msra.mxu0 0
    %3389 = vmatprep.subr.bf16.mxu0 0
    %3390 = vmatpush1.bf16.msra.mxu0 0
    %3391 = vmatprep.subr.bf16.mxu0 0
    %3392 = vmatpush1.bf16.msra.mxu0 0
    %3393 = vmatprep.subr.bf16.mxu0 0
    %3394 = vmatpush1.bf16.msra.mxu0 0
    %3395 = vmatprep.subr.bf16.mxu0 0
    %3396 = vmatpush1.bf16.msra.mxu0 %v3377
    %3397 = vmatprep.subr.bf16.mxu0 0
    %3398 = vmatpush1.bf16.msra.mxu0 %v3376
    %3399 = vmatprep.subr.bf16.mxu0 0
    %3400 = vmatpush2.bf16.msra.mxu0 0
    %3401 = vmatprep.subr.bf16.mxu0 0
    %3402 = vmatpush2.bf16.msra.mxu0 0
    %3403 = vmatprep.subr.bf16.mxu0 0
    %3404 = vmatpush2.bf16.msra.mxu0 0
    %3405 = vmatprep.subr.bf16.mxu0 0
    %3406 = vmatpush2.bf16.msra.mxu0 0
    %3407 = vmatprep.subr.bf16.mxu0 0
    %3408 = vmatpush2.bf16.msra.mxu0 0
    %3409 = vmatprep.subr.bf16.mxu0 0
    %3410 = vmatpush2.bf16.msra.mxu0 0
    %3411 = vmatprep.subr.bf16.mxu0 0
    %3412 = vmatpush2.bf16.msra.mxu0 0
    %3413 = vmatprep.subr.bf16.mxu0 0
    %3414 = vmatpush2.bf16.msra.mxu0 0
    %3415 = vmatprep.mubr.bf16.mxu0 0
    %3416 = vmatmul.mubr.bf16.gmra.mxu0 %v3381
    %v3417 = vpop.f32.mrf.mxu0
    %v3418 = vadd.f32 0.0, %v3417
    %v3419 = vpop.f32.mrf.mxu0
    %v3420 = vpop.f32.mrf.mxu0
    %v3421 = vpop.f32.mrf.mxu0
    %3422 = vdwg.mxu0
    %v3423 = vadd.f32 %v3366, %v3418
    %v3424 = vpack.c.bf16 %v3115, %v3115
    %v3429 = vunpack.c.l.b16 %v3000
    %v3430 = vunpack.c.l.b16 %v3001
    %v3431 = vunpack.c.l.b16 %v3002
    %v3432 = vunpack.c.l.b16 %v3003
    %v3433 = vpack.c.b16 %v3430, %v3429
    %v3434 = vpack.c.b16 %v3432, %v3431
    %v3438 = vsel %vm1091, %v3424, 0
    %3440 = vmatprep.subr.bf16.mxu0 0
    %3441 = vmatpush1.bf16.msra.mxu0 0
    %3442 = vmatprep.subr.bf16.mxu0 0
    %3443 = vmatpush1.bf16.msra.mxu0 0
    %3444 = vmatprep.subr.bf16.mxu0 0
    %3445 = vmatpush1.bf16.msra.mxu0 0
    %3446 = vmatprep.subr.bf16.mxu0 0
    %3447 = vmatpush1.bf16.msra.mxu0 0
    %3448 = vmatprep.subr.bf16.mxu0 0
    %3449 = vmatpush1.bf16.msra.mxu0 0
    %3450 = vmatprep.subr.bf16.mxu0 0
    %3451 = vmatpush1.bf16.msra.mxu0 0
    %3452 = vmatprep.subr.bf16.mxu0 0
    %3453 = vmatpush1.bf16.msra.mxu0 %v3434
    %3454 = vmatprep.subr.bf16.mxu0 0
    %3455 = vmatpush1.bf16.msra.mxu0 %v3433
    %3456 = vmatprep.subr.bf16.mxu0 0
    %3457 = vmatpush2.bf16.msra.mxu0 0
    %3458 = vmatprep.subr.bf16.mxu0 0
    %3459 = vmatpush2.bf16.msra.mxu0 0
    %3460 = vmatprep.subr.bf16.mxu0 0
    %3461 = vmatpush2.bf16.msra.mxu0 0
    %3462 = vmatprep.subr.bf16.mxu0 0
    %3463 = vmatpush2.bf16.msra.mxu0 0
    %3464 = vmatprep.subr.bf16.mxu0 0
    %3465 = vmatpush2.bf16.msra.mxu0 0
    %3466 = vmatprep.subr.bf16.mxu0 0
    %3467 = vmatpush2.bf16.msra.mxu0 0
    %3468 = vmatprep.subr.bf16.mxu0 0
    %3469 = vmatpush2.bf16.msra.mxu0 0
    %3470 = vmatprep.subr.bf16.mxu0 0
    %3471 = vmatpush2.bf16.msra.mxu0 0
    %3472 = vmatprep.mubr.bf16.mxu0 0
    %3473 = vmatmul.mubr.bf16.gmra.mxu0 %v3438
    %v3474 = vpop.f32.mrf.mxu0
    %v3475 = vadd.f32 0.0, %v3474
    %v3476 = vpop.f32.mrf.mxu0
    %v3477 = vpop.f32.mrf.mxu0
    %v3478 = vpop.f32.mrf.mxu0
    %3479 = vdwg.mxu0
    %v3480 = vadd.f32 %v3423, %v3475
    %v3481 = vpack.c.bf16 %v3120, %v3120
    %v3486 = vunpack.c.l.b16 %v3004
    %v3487 = vunpack.c.l.b16 %v3005
    %v3488 = vunpack.c.l.b16 %v3006
    %v3489 = vunpack.c.l.b16 %v3007
    %v3490 = vpack.c.b16 %v3487, %v3486
    %v3491 = vpack.c.b16 %v3489, %v3488
    %v3495 = vsel %vm1091, %v3481, 0
    %3497 = vmatprep.subr.bf16.mxu0 0
    %3498 = vmatpush1.bf16.msra.mxu0 0
    %3499 = vmatprep.subr.bf16.mxu0 0
    %3500 = vmatpush1.bf16.msra.mxu0 0
    %3501 = vmatprep.subr.bf16.mxu0 0
    %3502 = vmatpush1.bf16.msra.mxu0 0
    %3503 = vmatprep.subr.bf16.mxu0 0
    %3504 = vmatpush1.bf16.msra.mxu0 0
    %3505 = vmatprep.subr.bf16.mxu0 0
    %3506 = vmatpush1.bf16.msra.mxu0 0
    %3507 = vmatprep.subr.bf16.mxu0 0
    %3508 = vmatpush1.bf16.msra.mxu0 0
    %3509 = vmatprep.subr.bf16.mxu0 0
    %3510 = vmatpush1.bf16.msra.mxu0 %v3491
    %3511 = vmatprep.subr.bf16.mxu0 0
    %3512 = vmatpush1.bf16.msra.mxu0 %v3490
    %3513 = vmatprep.subr.bf16.mxu0 0
    %3514 = vmatpush2.bf16.msra.mxu0 0
    %3515 = vmatprep.subr.bf16.mxu0 0
    %3516 = vmatpush2.bf16.msra.mxu0 0
    %3517 = vmatprep.subr.bf16.mxu0 0
    %3518 = vmatpush2.bf16.msra.mxu0 0
    %3519 = vmatprep.subr.bf16.mxu0 0
    %3520 = vmatpush2.bf16.msra.mxu0 0
    %3521 = vmatprep.subr.bf16.mxu0 0
    %3522 = vmatpush2.bf16.msra.mxu0 0
    %3523 = vmatprep.subr.bf16.mxu0 0
    %3524 = vmatpush2.bf16.msra.mxu0 0
    %3525 = vmatprep.subr.bf16.mxu0 0
    %3526 = vmatpush2.bf16.msra.mxu0 0
    %3527 = vmatprep.subr.bf16.mxu0 0
    %3528 = vmatpush2.bf16.msra.mxu0 0
    %3529 = vmatprep.mubr.bf16.mxu0 0
    %3530 = vmatmul.mubr.bf16.gmra.mxu0 %v3495
    %v3531 = vpop.f32.mrf.mxu0
    %v3532 = vadd.f32 0.0, %v3531
    %v3533 = vpop.f32.mrf.mxu0
    %v3534 = vpop.f32.mrf.mxu0
    %v3535 = vpop.f32.mrf.mxu0
    %3536 = vdwg.mxu0
    %v3537 = vadd.f32 %v3480, %v3532
    %v3538 = vpack.c.bf16 %v3123, %v3123
    %v3543 = vunpack.c.l.b16 %v3008
    %v3544 = vunpack.c.l.b16 %v3009
    %v3545 = vunpack.c.l.b16 %v3010
    %v3546 = vunpack.c.l.b16 %v3011
    %v3547 = vpack.c.b16 %v3544, %v3543
    %v3548 = vpack.c.b16 %v3546, %v3545
    %v3552 = vsel %vm1091, %v3538, 0
    %3554 = vmatprep.subr.bf16.mxu0 0
    %3555 = vmatpush1.bf16.msra.mxu0 0
    %3556 = vmatprep.subr.bf16.mxu0 0
    %3557 = vmatpush1.bf16.msra.mxu0 0
    %3558 = vmatprep.subr.bf16.mxu0 0
    %3559 = vmatpush1.bf16.msra.mxu0 0
    %3560 = vmatprep.subr.bf16.mxu0 0
    %3561 = vmatpush1.bf16.msra.mxu0 0
    %3562 = vmatprep.subr.bf16.mxu0 0
    %3563 = vmatpush1.bf16.msra.mxu0 0
    %3564 = vmatprep.subr.bf16.mxu0 0
    %3565 = vmatpush1.bf16.msra.mxu0 0
    %3566 = vmatprep.subr.bf16.mxu0 0
    %3567 = vmatpush1.bf16.msra.mxu0 %v3548
    %3568 = vmatprep.subr.bf16.mxu0 0
    %3569 = vmatpush1.bf16.msra.mxu0 %v3547
    %3570 = vmatprep.subr.bf16.mxu0 0
    %3571 = vmatpush2.bf16.msra.mxu0 0
    %3572 = vmatprep.subr.bf16.mxu0 0
    %3573 = vmatpush2.bf16.msra.mxu0 0
    %3574 = vmatprep.subr.bf16.mxu0 0
    %3575 = vmatpush2.bf16.msra.mxu0 0
    %3576 = vmatprep.subr.bf16.mxu0 0
    %3577 = vmatpush2.bf16.msra.mxu0 0
    %3578 = vmatprep.subr.bf16.mxu0 0
    %3579 = vmatpush2.bf16.msra.mxu0 0
    %3580 = vmatprep.subr.bf16.mxu0 0
    %3581 = vmatpush2.bf16.msra.mxu0 0
    %3582 = vmatprep.subr.bf16.mxu0 0
    %3583 = vmatpush2.bf16.msra.mxu0 0
    %3584 = vmatprep.subr.bf16.mxu0 0
    %3585 = vmatpush2.bf16.msra.mxu0 0
    %3586 = vmatprep.mubr.bf16.mxu0 0
    %3587 = vmatmul.mubr.bf16.gmra.mxu0 %v3552
    %v3588 = vpop.f32.mrf.mxu0
    %v3589 = vadd.f32 0.0, %v3588
    %v3590 = vpop.f32.mrf.mxu0
    %v3591 = vpop.f32.mrf.mxu0
    %v3592 = vpop.f32.mrf.mxu0
    %3593 = vdwg.mxu0
    %v3594 = vadd.f32 %v3537, %v3589
    %v3595 = vpack.c.bf16 %v3128, %v3128
    %v3600 = vunpack.c.l.b16 %v3012
    %v3601 = vunpack.c.l.b16 %v3013
    %v3602 = vunpack.c.l.b16 %v3014
    %v3603 = vunpack.c.l.b16 %v3015
    %v3604 = vpack.c.b16 %v3601, %v3600
    %v3605 = vpack.c.b16 %v3603, %v3602
    %v3609 = vsel %vm1091, %v3595, 0
    %3611 = vmatprep.subr.bf16.mxu0 0
    %3612 = vmatpush1.bf16.msra.mxu0 0
    %3613 = vmatprep.subr.bf16.mxu0 0
    %3614 = vmatpush1.bf16.msra.mxu0 0
    %3615 = vmatprep.subr.bf16.mxu0 0
    %3616 = vmatpush1.bf16.msra.mxu0 0
    %3617 = vmatprep.subr.bf16.mxu0 0
    %3618 = vmatpush1.bf16.msra.mxu0 0
    %3619 = vmatprep.subr.bf16.mxu0 0
    %3620 = vmatpush1.bf16.msra.mxu0 0
    %3621 = vmatprep.subr.bf16.mxu0 0
    %3622 = vmatpush1.bf16.msra.mxu0 0
    %3623 = vmatprep.subr.bf16.mxu0 0
    %3624 = vmatpush1.bf16.msra.mxu0 %v3605
    %3625 = vmatprep.subr.bf16.mxu0 0
    %3626 = vmatpush1.bf16.msra.mxu0 %v3604
    %3627 = vmatprep.subr.bf16.mxu0 0
    %3628 = vmatpush2.bf16.msra.mxu0 0
    %3629 = vmatprep.subr.bf16.mxu0 0
    %3630 = vmatpush2.bf16.msra.mxu0 0
    %3631 = vmatprep.subr.bf16.mxu0 0
    %3632 = vmatpush2.bf16.msra.mxu0 0
    %3633 = vmatprep.subr.bf16.mxu0 0
    %3634 = vmatpush2.bf16.msra.mxu0 0
    %3635 = vmatprep.subr.bf16.mxu0 0
    %3636 = vmatpush2.bf16.msra.mxu0 0
    %3637 = vmatprep.subr.bf16.mxu0 0
    %3638 = vmatpush2.bf16.msra.mxu0 0
    %3639 = vmatprep.subr.bf16.mxu0 0
    %3640 = vmatpush2.bf16.msra.mxu0 0
    %3641 = vmatprep.subr.bf16.mxu0 0
    %3642 = vmatpush2.bf16.msra.mxu0 0
    %3643 = vmatprep.mubr.bf16.mxu0 0
    %3644 = vmatmul.mubr.bf16.gmra.mxu0 %v3609
    %v3645 = vpop.f32.mrf.mxu0
    %v3646 = vadd.f32 0.0, %v3645
    %v3647 = vpop.f32.mrf.mxu0
    %v3648 = vpop.f32.mrf.mxu0
    %v3649 = vpop.f32.mrf.mxu0
    %3650 = vdwg.mxu0
    %v3651 = vadd.f32 %v3594, %v3646
    %v3652 = vmax.f32 %v3651, 0.0
    %v3653 = vld [vmem:[%s19] sm:$0xf]
    %v3654 = vld [vmem:[%s19 + $0x4] sm:$0xf]
    %v3655 = vld [vmem:[%s19 + $0x8] sm:$0xf]
    %v3656 = vld [vmem:[%s19 + $0xc] sm:$0xf]
    %v3657 = vld [vmem:[%s19 + $0x10] sm:$0xf]
    %v3658 = vld [vmem:[%s19 + $0x14] sm:$0xf]
    %v3659 = vld [vmem:[%s19 + $0x18] sm:$0xf]
    %v3660 = vld [vmem:[%s19 + $0x1c] sm:$0xf]
    %v3661 = vld [vmem:[%s19 + $0x20] sm:$0xf]
    %v3662 = vld [vmem:[%s19 + $0x24] sm:$0xf]
    %v3663 = vld [vmem:[%s19 + $0x28] sm:$0xf]
    %v3664 = vld [vmem:[%s19 + $0x2c] sm:$0xf]
    %v3665 = vld [vmem:[%s19 + $0x30] sm:$0xf]
    %v3666 = vld [vmem:[%s19 + $0x34] sm:$0xf]
    %v3667 = vld [vmem:[%s19 + $0x38] sm:$0xf]
    %v3668 = vld [vmem:[%s19 + $0x3c] sm:$0xf]
    %v3669 = vld [vmem:[%s19 + $0x40] sm:$0xf]
    %v3670 = vld [vmem:[%s19 + $0x44] sm:$0xf]
    %v3671 = vld [vmem:[%s19 + $0x48] sm:$0xf]
    %v3672 = vld [vmem:[%s19 + $0x4c] sm:$0xf]
    %v3673 = vld [vmem:[%s19 + $0x50] sm:$0xf]
    %v3674 = vld [vmem:[%s19 + $0x54] sm:$0xf]
    %v3675 = vld [vmem:[%s19 + $0x58] sm:$0xf]
    %v3676 = vld [vmem:[%s19 + $0x5c] sm:$0xf]
    %v3677 = vld [vmem:[%s19 + $0x60] sm:$0xf]
    %v3678 = vld [vmem:[%s19 + $0x64] sm:$0xf]
    %v3679 = vld [vmem:[%s19 + $0x68] sm:$0xf]
    %v3680 = vld [vmem:[%s19 + $0x6c] sm:$0xf]
    %v3681 = vld [vmem:[%s19 + $0x70] sm:$0xf]
    %v3682 = vld [vmem:[%s19 + $0x74] sm:$0xf]
    %v3683 = vld [vmem:[%s19 + $0x78] sm:$0xf]
    %v3684 = vld [vmem:[%s19 + $0x7c] sm:$0xf]
    %v3685 = vld [vmem:[%s19 + $0x80] sm:$0xf]
    %v3686 = vld [vmem:[%s19 + $0x84] sm:$0xf]
    %v3687 = vld [vmem:[%s19 + $0x88] sm:$0xf]
    %v3688 = vld [vmem:[%s19 + $0x8c] sm:$0xf]
    %v3689 = vld [vmem:[%s19 + $0x90] sm:$0xf]
    %v3690 = vld [vmem:[%s19 + $0x94] sm:$0xf]
    %v3691 = vld [vmem:[%s19 + $0x98] sm:$0xf]
    %v3692 = vld [vmem:[%s19 + $0x9c] sm:$0xf]
    %v3693 = vld [vmem:[%s19 + $0xa0] sm:$0xf]
    %v3694 = vld [vmem:[%s19 + $0xa4] sm:$0xf]
    %v3695 = vld [vmem:[%s19 + $0xa8] sm:$0xf]
    %v3696 = vld [vmem:[%s19 + $0xac] sm:$0xf]
    %v3697 = vld [vmem:[%s19 + $0xb0] sm:$0xf]
    %v3698 = vld [vmem:[%s19 + $0xb4] sm:$0xf]
    %v3699 = vld [vmem:[%s19 + $0xb8] sm:$0xf]
    %v3700 = vld [vmem:[%s19 + $0xbc] sm:$0xf]
    %v3701 = vld [vmem:[%s19 + $0xc0] sm:$0xf]
    %v3702 = vld [vmem:[%s19 + $0xc4] sm:$0xf]
    %v3703 = vld [vmem:[%s19 + $0xc8] sm:$0xf]
    %v3704 = vld [vmem:[%s19 + $0xcc] sm:$0xf]
    %v3705 = vld [vmem:[%s19 + $0xd0] sm:$0xf]
    %v3706 = vld [vmem:[%s19 + $0xd4] sm:$0xf]
    %v3707 = vld [vmem:[%s19 + $0xd8] sm:$0xf]
    %v3708 = vld [vmem:[%s19 + $0xdc] sm:$0xf]
    %v3709 = vld [vmem:[%s19 + $0xe0] sm:$0xf]
    %v3710 = vld [vmem:[%s19 + $0xe4] sm:$0xf]
    %v3711 = vld [vmem:[%s19 + $0xe8] sm:$0xf]
    %v3712 = vld [vmem:[%s19 + $0xec] sm:$0xf]
    %v3713 = vld [vmem:[%s19 + $0xf0] sm:$0xf]
    %v3714 = vld [vmem:[%s19 + $0xf4] sm:$0xf]
    %v3715 = vld [vmem:[%s19 + $0xf8] sm:$0xf]
    %v3716 = vld [vmem:[%s19 + $0xfc] sm:$0xf]
    %v3717 = vld [vmem:[%s19 + $0x100] sm:$0xf]
    %v3718 = vld [vmem:[%s19 + $0x104] sm:$0xf]
    %v3719 = vld [vmem:[%s19 + $0x108] sm:$0xf]
    %v3720 = vld [vmem:[%s19 + $0x10c] sm:$0xf]
    %v3721 = vld [vmem:[%s19 + $0x110] sm:$0xf]
    %v3722 = vld [vmem:[%s19 + $0x114] sm:$0xf]
    %v3723 = vld [vmem:[%s19 + $0x118] sm:$0xf]
    %v3724 = vld [vmem:[%s19 + $0x11c] sm:$0xf]
    %v3725 = vld [vmem:[%s20] sm:$0x1]
    %v3726 = vpack.c.bf16 %v3652, %v3652
    %v3728 = vsel %vm3057, %v3726, 0
    %3730 = vmatprep.subr.bf16.mxu0 0
    %3731 = vmatpush1.bf16.msra.mxu0 0
    %3732 = vmatprep.subr.bf16.mxu0 0
    %3733 = vmatpush1.bf16.msra.mxu0 0
    %3734 = vmatprep.subr.bf16.mxu0 0
    %3735 = vmatpush1.bf16.msra.mxu0 0
    %3736 = vmatprep.subr.bf16.mxu0 0
    %3737 = vmatpush1.bf16.msra.mxu0 0
    %3738 = vmatprep.subr.bf16.mxu0 0
    %3739 = vmatpush1.bf16.msra.mxu0 0
    %3740 = vmatprep.subr.bf16.mxu0 0
    %3741 = vmatpush1.bf16.msra.mxu0 0
    %3742 = vmatprep.subr.bf16.mxu0 0
    %3743 = vmatpush1.bf16.msra.mxu0 0
    %3744 = vmatprep.subr.bf16.mxu0 0
    %3745 = vmatpush1.bf16.msra.mxu0 %v3728
    %3746 = vmatprep.subr.bf16.mxu0 0
    %3747 = vmatpush2.bf16.msra.mxu0 0
    %3748 = vmatprep.subr.bf16.mxu0 0
    %3749 = vmatpush2.bf16.msra.mxu0 0
    %3750 = vmatprep.subr.bf16.mxu0 0
    %3751 = vmatpush2.bf16.msra.mxu0 0
    %3752 = vmatprep.subr.bf16.mxu0 0
    %3753 = vmatpush2.bf16.msra.mxu0 0
    %3754 = vmatprep.subr.bf16.mxu0 0
    %3755 = vmatpush2.bf16.msra.mxu0 0
    %3756 = vmatprep.subr.bf16.mxu0 0
    %3757 = vmatpush2.bf16.msra.mxu0 0
    %3758 = vmatprep.subr.bf16.mxu0 0
    %3759 = vmatpush2.bf16.msra.mxu0 0
    %3760 = vmatprep.subr.bf16.mxu0 0
    %3761 = vmatpush2.bf16.msra.mxu0 0
    %3762 = vmatprep.mubr.bf16.mxu0 0
    %3763 = vmatmul.mubr.bf16.gmra.mxu0 %v3043
    %v3764 = vpop.f32.mrf.mxu0
    %v3765 = vadd.f32 0.0, %v3764
    %v3766 = vpop.f32.mrf.mxu0
    %v3767 = vpop.f32.mrf.mxu0
    %v3768 = vadd.f32 0.0, %v3767
    %v3769 = vpop.f32.mrf.mxu0
    %3770 = vmatprep.mubr.bf16.mxu0 0
    %3771 = vmatmul.mubr.bf16.gmra.mxu0 %v3046
    %v3772 = vpop.f32.mrf.mxu0
    %v3773 = vadd.f32 0.0, %v3772
    %v3774 = vpop.f32.mrf.mxu0
    %v3775 = vpop.f32.mrf.mxu0
    %v3776 = vadd.f32 0.0, %v3775
    %v3777 = vpop.f32.mrf.mxu0
    %3778 = vmatprep.mubr.bf16.mxu0 0
    %3779 = vmatmul.mubr.bf16.gmra.mxu0 %v3049
    %v3780 = vpop.f32.mrf.mxu0
    %v3781 = vadd.f32 0.0, %v3780
    %v3782 = vpop.f32.mrf.mxu0
    %v3783 = vpop.f32.mrf.mxu0
    %v3784 = vadd.f32 0.0, %v3783
    %v3785 = vpop.f32.mrf.mxu0
    %3786 = vmatprep.mubr.bf16.mxu0 0
    %3787 = vmatmul.mubr.bf16.gmra.mxu0 %v3052
    %v3788 = vpop.f32.mrf.mxu0
    %v3789 = vadd.f32 0.0, %v3788
    %v3790 = vpop.f32.mrf.mxu0
    %v3791 = vpop.f32.mrf.mxu0
    %v3792 = vadd.f32 0.0, %v3791
    %v3793 = vpop.f32.mrf.mxu0
    %3794 = vmatprep.mubr.bf16.mxu0 0
    %3795 = vmatmul.mubr.bf16.gmra.mxu0 %v3055
    %v3796 = vpop.f32.mrf.mxu0
    %v3797 = vadd.f32 0.0, %v3796
    %v3798 = vpop.f32.mrf.mxu0
    %v3799 = vpop.f32.mrf.mxu0
    %v3800 = vpop.f32.mrf.mxu0
    %3801 = vdwg.mxu0
    %v3802 = vpack.c.bf16 %v3765, %v3765
    %v3811 = vunpack.c.l.b16 %v3653
    %v3812 = vunpack.c.l.b16 %v3654
    %v3813 = vunpack.c.l.b16 %v3655
    %v3814 = vunpack.c.l.b16 %v3656
    %v3815 = vunpack.c.l.b16 %v3657
    %v3816 = vunpack.c.l.b16 %v3658
    %v3817 = vunpack.c.l.b16 %v3659
    %v3818 = vunpack.c.l.b16 %v3660
    %v3819 = vpack.c.b16 %v3812, %v3811
    %v3820 = vpack.c.b16 %v3814, %v3813
    %v3821 = vpack.c.b16 %v3816, %v3815
    %v3822 = vpack.c.b16 %v3818, %v3817
    %vm3827 = vcmask 523264
    %v3829 = vsel %vm3827, %v3802, 0
    %3831 = vmatprep.subr.bf16.mxu0 0
    %3832 = vmatpush1.bf16.msra.mxu0 0
    %3833 = vmatprep.subr.bf16.mxu0 0
    %3834 = vmatpush1.bf16.msra.mxu0 0
    %3835 = vmatprep.subr.bf16.mxu0 0
    %3836 = vmatpush1.bf16.msra.mxu0 0
    %3837 = vmatprep.subr.bf16.mxu0 0
    %3838 = vmatpush1.bf16.msra.mxu0 0
    %3839 = vmatprep.subr.bf16.mxu0 0
    %3840 = vmatpush1.bf16.msra.mxu0 %v3822
    %3841 = vmatprep.subr.bf16.mxu0 0
    %3842 = vmatpush1.bf16.msra.mxu0 %v3821
    %3843 = vmatprep.subr.bf16.mxu0 0
    %3844 = vmatpush1.bf16.msra.mxu0 %v3820
    %3845 = vmatprep.subr.bf16.mxu0 0
    %3846 = vmatpush1.bf16.msra.mxu0 %v3819
    %3847 = vmatprep.subr.bf16.mxu0 0
    %3848 = vmatpush2.bf16.msra.mxu0 0
    %3849 = vmatprep.subr.bf16.mxu0 0
    %3850 = vmatpush2.bf16.msra.mxu0 0
    %3851 = vmatprep.subr.bf16.mxu0 0
    %3852 = vmatpush2.bf16.msra.mxu0 0
    %3853 = vmatprep.subr.bf16.mxu0 0
    %3854 = vmatpush2.bf16.msra.mxu0 0
    %3855 = vmatprep.subr.bf16.mxu0 0
    %3856 = vmatpush2.bf16.msra.mxu0 0
    %3857 = vmatprep.subr.bf16.mxu0 0
    %3858 = vmatpush2.bf16.msra.mxu0 0
    %3859 = vmatprep.subr.bf16.mxu0 0
    %3860 = vmatpush2.bf16.msra.mxu0 0
    %3861 = vmatprep.subr.bf16.mxu0 0
    %3862 = vmatpush2.bf16.msra.mxu0 0
    %3863 = vmatprep.mubr.bf16.mxu0 0
    %3864 = vmatmul.mubr.bf16.gmra.mxu0 %v3829
    %v3865 = vpop.f32.mrf.mxu0
    %v3866 = vadd.f32 0.0, %v3865
    %v3867 = vpop.f32.mrf.mxu0
    %v3868 = vpop.f32.mrf.mxu0
    %v3869 = vpop.f32.mrf.mxu0
    %3870 = vdwg.mxu0
    %v3872 = vlaneseq
    %v3873 = vshrl.u32 %v3872, 7
    %v3874 = vsub.s32 0, %v3873
    %v3875 = vrot.slane %v3725, %v3874
    %v3877 = vadd.f32 %v3875, %v3866
    %v3878 = vpack.c.bf16 %v3768, %v3768
    %v3887 = vunpack.c.l.b16 %v3661
    %v3888 = vunpack.c.l.b16 %v3662
    %v3889 = vunpack.c.l.b16 %v3663
    %v3890 = vunpack.c.l.b16 %v3664
    %v3891 = vunpack.c.l.b16 %v3665
    %v3892 = vunpack.c.l.b16 %v3666
    %v3893 = vunpack.c.l.b16 %v3667
    %v3894 = vunpack.c.l.b16 %v3668
    %v3895 = vpack.c.b16 %v3888, %v3887
    %v3896 = vpack.c.b16 %v3890, %v3889
    %v3897 = vpack.c.b16 %v3892, %v3891
    %v3898 = vpack.c.b16 %v3894, %v3893
    %v3904 = vsel %vm3827, %v3878, 0
    %3906 = vmatprep.subr.bf16.mxu0 0
    %3907 = vmatpush1.bf16.msra.mxu0 0
    %3908 = vmatprep.subr.bf16.mxu0 0
    %3909 = vmatpush1.bf16.msra.mxu0 0
    %3910 = vmatprep.subr.bf16.mxu0 0
    %3911 = vmatpush1.bf16.msra.mxu0 0
    %3912 = vmatprep.subr.bf16.mxu0 0
    %3913 = vmatpush1.bf16.msra.mxu0 0
    %3914 = vmatprep.subr.bf16.mxu0 0
    %3915 = vmatpush1.bf16.msra.mxu0 %v3898
    %3916 = vmatprep.subr.bf16.mxu0 0
    %3917 = vmatpush1.bf16.msra.mxu0 %v3897
    %3918 = vmatprep.subr.bf16.mxu0 0
    %3919 = vmatpush1.bf16.msra.mxu0 %v3896
    %3920 = vmatprep.subr.bf16.mxu0 0
    %3921 = vmatpush1.bf16.msra.mxu0 %v3895
    %3922 = vmatprep.subr.bf16.mxu0 0
    %3923 = vmatpush2.bf16.msra.mxu0 0
    %3924 = vmatprep.subr.bf16.mxu0 0
    %3925 = vmatpush2.bf16.msra.mxu0 0
    %3926 = vmatprep.subr.bf16.mxu0 0
    %3927 = vmatpush2.bf16.msra.mxu0 0
    %3928 = vmatprep.subr.bf16.mxu0 0
    %3929 = vmatpush2.bf16.msra.mxu0 0
    %3930 = vmatprep.subr.bf16.mxu0 0
    %3931 = vmatpush2.bf16.msra.mxu0 0
    %3932 = vmatprep.subr.bf16.mxu0 0
    %3933 = vmatpush2.bf16.msra.mxu0 0
    %3934 = vmatprep.subr.bf16.mxu0 0
    %3935 = vmatpush2.bf16.msra.mxu0 0
    %3936 = vmatprep.subr.bf16.mxu0 0
    %3937 = vmatpush2.bf16.msra.mxu0 0
    %3938 = vmatprep.mubr.bf16.mxu0 0
    %3939 = vmatmul.mubr.bf16.gmra.mxu0 %v3904
    %v3940 = vpop.f32.mrf.mxu0
    %v3941 = vadd.f32 0.0, %v3940
    %v3942 = vpop.f32.mrf.mxu0
    %v3943 = vpop.f32.mrf.mxu0
    %v3944 = vpop.f32.mrf.mxu0
    %3945 = vdwg.mxu0
    %v3946 = vadd.f32 %v3877, %v3941
    %v3947 = vpack.c.bf16 %v3773, %v3773
    %v3956 = vunpack.c.l.b16 %v3669
    %v3957 = vunpack.c.l.b16 %v3670
    %v3958 = vunpack.c.l.b16 %v3671
    %v3959 = vunpack.c.l.b16 %v3672
    %v3960 = vunpack.c.l.b16 %v3673
    %v3961 = vunpack.c.l.b16 %v3674
    %v3962 = vunpack.c.l.b16 %v3675
    %v3963 = vunpack.c.l.b16 %v3676
    %v3964 = vpack.c.b16 %v3957, %v3956
    %v3965 = vpack.c.b16 %v3959, %v3958
    %v3966 = vpack.c.b16 %v3961, %v3960
    %v3967 = vpack.c.b16 %v3963, %v3962
    %v3973 = vsel %vm3827, %v3947, 0
    %3975 = vmatprep.subr.bf16.mxu0 0
    %3976 = vmatpush1.bf16.msra.mxu0 0
    %3977 = vmatprep.subr.bf16.mxu0 0
    %3978 = vmatpush1.bf16.msra.mxu0 0
    %3979 = vmatprep.subr.bf16.mxu0 0
    %3980 = vmatpush1.bf16.msra.mxu0 0
    %3981 = vmatprep.subr.bf16.mxu0 0
    %3982 = vmatpush1.bf16.msra.mxu0 0
    %3983 = vmatprep.subr.bf16.mxu0 0
    %3984 = vmatpush1.bf16.msra.mxu0 %v3967
    %3985 = vmatprep.subr.bf16.mxu0 0
    %3986 = vmatpush1.bf16.msra.mxu0 %v3966
    %3987 = vmatprep.subr.bf16.mxu0 0
    %3988 = vmatpush1.bf16.msra.mxu0 %v3965
    %3989 = vmatprep.subr.bf16.mxu0 0
    %3990 = vmatpush1.bf16.msra.mxu0 %v3964
    %3991 = vmatprep.subr.bf16.mxu0 0
    %3992 = vmatpush2.bf16.msra.mxu0 0
    %3993 = vmatprep.subr.bf16.mxu0 0
    %3994 = vmatpush2.bf16.msra.mxu0 0
    %3995 = vmatprep.subr.bf16.mxu0 0
    %3996 = vmatpush2.bf16.msra.mxu0 0
    %3997 = vmatprep.subr.bf16.mxu0 0
    %3998 = vmatpush2.bf16.msra.mxu0 0
    %3999 = vmatprep.subr.bf16.mxu0 0
    %4000 = vmatpush2.bf16.msra.mxu0 0
    %4001 = vmatprep.subr.bf16.mxu0 0
    %4002 = vmatpush2.bf16.msra.mxu0 0
    %4003 = vmatprep.subr.bf16.mxu0 0
    %4004 = vmatpush2.bf16.msra.mxu0 0
    %4005 = vmatprep.subr.bf16.mxu0 0
    %4006 = vmatpush2.bf16.msra.mxu0 0
    %4007 = vmatprep.mubr.bf16.mxu0 0
    %4008 = vmatmul.mubr.bf16.gmra.mxu0 %v3973
    %v4009 = vpop.f32.mrf.mxu0
    %v4010 = vadd.f32 0.0, %v4009
    %v4011 = vpop.f32.mrf.mxu0
    %v4012 = vpop.f32.mrf.mxu0
    %v4013 = vpop.f32.mrf.mxu0
    %4014 = vdwg.mxu0
    %v4015 = vadd.f32 %v3946, %v4010
    %v4016 = vpack.c.bf16 %v3776, %v3776
    %v4025 = vunpack.c.l.b16 %v3677
    %v4026 = vunpack.c.l.b16 %v3678
    %v4027 = vunpack.c.l.b16 %v3679
    %v4028 = vunpack.c.l.b16 %v3680
    %v4029 = vunpack.c.l.b16 %v3681
    %v4030 = vunpack.c.l.b16 %v3682
    %v4031 = vunpack.c.l.b16 %v3683
    %v4032 = vunpack.c.l.b16 %v3684
    %v4033 = vpack.c.b16 %v4026, %v4025
    %v4034 = vpack.c.b16 %v4028, %v4027
    %v4035 = vpack.c.b16 %v4030, %v4029
    %v4036 = vpack.c.b16 %v4032, %v4031
    %v4042 = vsel %vm3827, %v4016, 0
    %4044 = vmatprep.subr.bf16.mxu0 0
    %4045 = vmatpush1.bf16.msra.mxu0 0
    %4046 = vmatprep.subr.bf16.mxu0 0
    %4047 = vmatpush1.bf16.msra.mxu0 0
    %4048 = vmatprep.subr.bf16.mxu0 0
    %4049 = vmatpush1.bf16.msra.mxu0 0
    %4050 = vmatprep.subr.bf16.mxu0 0
    %4051 = vmatpush1.bf16.msra.mxu0 0
    %4052 = vmatprep.subr.bf16.mxu0 0
    %4053 = vmatpush1.bf16.msra.mxu0 %v4036
    %4054 = vmatprep.subr.bf16.mxu0 0
    %4055 = vmatpush1.bf16.msra.mxu0 %v4035
    %4056 = vmatprep.subr.bf16.mxu0 0
    %4057 = vmatpush1.bf16.msra.mxu0 %v4034
    %4058 = vmatprep.subr.bf16.mxu0 0
    %4059 = vmatpush1.bf16.msra.mxu0 %v4033
    %4060 = vmatprep.subr.bf16.mxu0 0
    %4061 = vmatpush2.bf16.msra.mxu0 0
    %4062 = vmatprep.subr.bf16.mxu0 0
    %4063 = vmatpush2.bf16.msra.mxu0 0
    %4064 = vmatprep.subr.bf16.mxu0 0
    %4065 = vmatpush2.bf16.msra.mxu0 0
    %4066 = vmatprep.subr.bf16.mxu0 0
    %4067 = vmatpush2.bf16.msra.mxu0 0
    %4068 = vmatprep.subr.bf16.mxu0 0
    %4069 = vmatpush2.bf16.msra.mxu0 0
    %4070 = vmatprep.subr.bf16.mxu0 0
    %4071 = vmatpush2.bf16.msra.mxu0 0
    %4072 = vmatprep.subr.bf16.mxu0 0
    %4073 = vmatpush2.bf16.msra.mxu0 0
    %4074 = vmatprep.subr.bf16.mxu0 0
    %4075 = vmatpush2.bf16.msra.mxu0 0
    %4076 = vmatprep.mubr.bf16.mxu0 0
    %4077 = vmatmul.mubr.bf16.gmra.mxu0 %v4042
    %v4078 = vpop.f32.mrf.mxu0
    %v4079 = vadd.f32 0.0, %v4078
    %v4080 = vpop.f32.mrf.mxu0
    %v4081 = vpop.f32.mrf.mxu0
    %v4082 = vpop.f32.mrf.mxu0
    %4083 = vdwg.mxu0
    %v4084 = vadd.f32 %v4015, %v4079
    %v4085 = vpack.c.bf16 %v3781, %v3781
    %v4094 = vunpack.c.l.b16 %v3685
    %v4095 = vunpack.c.l.b16 %v3686
    %v4096 = vunpack.c.l.b16 %v3687
    %v4097 = vunpack.c.l.b16 %v3688
    %v4098 = vunpack.c.l.b16 %v3689
    %v4099 = vunpack.c.l.b16 %v3690
    %v4100 = vunpack.c.l.b16 %v3691
    %v4101 = vunpack.c.l.b16 %v3692
    %v4102 = vpack.c.b16 %v4095, %v4094
    %v4103 = vpack.c.b16 %v4097, %v4096
    %v4104 = vpack.c.b16 %v4099, %v4098
    %v4105 = vpack.c.b16 %v4101, %v4100
    %v4111 = vsel %vm3827, %v4085, 0
    %4113 = vmatprep.subr.bf16.mxu0 0
    %4114 = vmatpush1.bf16.msra.mxu0 0
    %4115 = vmatprep.subr.bf16.mxu0 0
    %4116 = vmatpush1.bf16.msra.mxu0 0
    %4117 = vmatprep.subr.bf16.mxu0 0
    %4118 = vmatpush1.bf16.msra.mxu0 0
    %4119 = vmatprep.subr.bf16.mxu0 0
    %4120 = vmatpush1.bf16.msra.mxu0 0
    %4121 = vmatprep.subr.bf16.mxu0 0
    %4122 = vmatpush1.bf16.msra.mxu0 %v4105
    %4123 = vmatprep.subr.bf16.mxu0 0
    %4124 = vmatpush1.bf16.msra.mxu0 %v4104
    %4125 = vmatprep.subr.bf16.mxu0 0
    %4126 = vmatpush1.bf16.msra.mxu0 %v4103
    %4127 = vmatprep.subr.bf16.mxu0 0
    %4128 = vmatpush1.bf16.msra.mxu0 %v4102
    %4129 = vmatprep.subr.bf16.mxu0 0
    %4130 = vmatpush2.bf16.msra.mxu0 0
    %4131 = vmatprep.subr.bf16.mxu0 0
    %4132 = vmatpush2.bf16.msra.mxu0 0
    %4133 = vmatprep.subr.bf16.mxu0 0
    %4134 = vmatpush2.bf16.msra.mxu0 0
    %4135 = vmatprep.subr.bf16.mxu0 0
    %4136 = vmatpush2.bf16.msra.mxu0 0
    %4137 = vmatprep.subr.bf16.mxu0 0
    %4138 = vmatpush2.bf16.msra.mxu0 0
    %4139 = vmatprep.subr.bf16.mxu0 0
    %4140 = vmatpush2.bf16.msra.mxu0 0
    %4141 = vmatprep.subr.bf16.mxu0 0
    %4142 = vmatpush2.bf16.msra.mxu0 0
    %4143 = vmatprep.subr.bf16.mxu0 0
    %4144 = vmatpush2.bf16.msra.mxu0 0
    %4145 = vmatprep.mubr.bf16.mxu0 0
    %4146 = vmatmul.mubr.bf16.gmra.mxu0 %v4111
    %v4147 = vpop.f32.mrf.mxu0
    %v4148 = vadd.f32 0.0, %v4147
    %v4149 = vpop.f32.mrf.mxu0
    %v4150 = vpop.f32.mrf.mxu0
    %v4151 = vpop.f32.mrf.mxu0
    %4152 = vdwg.mxu0
    %v4153 = vadd.f32 %v4084, %v4148
    %v4154 = vpack.c.bf16 %v3784, %v3784
    %v4163 = vunpack.c.l.b16 %v3693
    %v4164 = vunpack.c.l.b16 %v3694
    %v4165 = vunpack.c.l.b16 %v3695
    %v4166 = vunpack.c.l.b16 %v3696
    %v4167 = vunpack.c.l.b16 %v3697
    %v4168 = vunpack.c.l.b16 %v3698
    %v4169 = vunpack.c.l.b16 %v3699
    %v4170 = vunpack.c.l.b16 %v3700
    %v4171 = vpack.c.b16 %v4164, %v4163
    %v4172 = vpack.c.b16 %v4166, %v4165
    %v4173 = vpack.c.b16 %v4168, %v4167
    %v4174 = vpack.c.b16 %v4170, %v4169
    %v4180 = vsel %vm3827, %v4154, 0
    %4182 = vmatprep.subr.bf16.mxu0 0
    %4183 = vmatpush1.bf16.msra.mxu0 0
    %4184 = vmatprep.subr.bf16.mxu0 0
    %4185 = vmatpush1.bf16.msra.mxu0 0
    %4186 = vmatprep.subr.bf16.mxu0 0
    %4187 = vmatpush1.bf16.msra.mxu0 0
    %4188 = vmatprep.subr.bf16.mxu0 0
    %4189 = vmatpush1.bf16.msra.mxu0 0
    %4190 = vmatprep.subr.bf16.mxu0 0
    %4191 = vmatpush1.bf16.msra.mxu0 %v4174
    %4192 = vmatprep.subr.bf16.mxu0 0
    %4193 = vmatpush1.bf16.msra.mxu0 %v4173
    %4194 = vmatprep.subr.bf16.mxu0 0
    %4195 = vmatpush1.bf16.msra.mxu0 %v4172
    %4196 = vmatprep.subr.bf16.mxu0 0
    %4197 = vmatpush1.bf16.msra.mxu0 %v4171
    %4198 = vmatprep.subr.bf16.mxu0 0
    %4199 = vmatpush2.bf16.msra.mxu0 0
    %4200 = vmatprep.subr.bf16.mxu0 0
    %4201 = vmatpush2.bf16.msra.mxu0 0
    %4202 = vmatprep.subr.bf16.mxu0 0
    %4203 = vmatpush2.bf16.msra.mxu0 0
    %4204 = vmatprep.subr.bf16.mxu0 0
    %4205 = vmatpush2.bf16.msra.mxu0 0
    %4206 = vmatprep.subr.bf16.mxu0 0
    %4207 = vmatpush2.bf16.msra.mxu0 0
    %4208 = vmatprep.subr.bf16.mxu0 0
    %4209 = vmatpush2.bf16.msra.mxu0 0
    %4210 = vmatprep.subr.bf16.mxu0 0
    %4211 = vmatpush2.bf16.msra.mxu0 0
    %4212 = vmatprep.subr.bf16.mxu0 0
    %4213 = vmatpush2.bf16.msra.mxu0 0
    %4214 = vmatprep.mubr.bf16.mxu0 0
    %4215 = vmatmul.mubr.bf16.gmra.mxu0 %v4180
    %v4216 = vpop.f32.mrf.mxu0
    %v4217 = vadd.f32 0.0, %v4216
    %v4218 = vpop.f32.mrf.mxu0
    %v4219 = vpop.f32.mrf.mxu0
    %v4220 = vpop.f32.mrf.mxu0
    %4221 = vdwg.mxu0
    %v4222 = vadd.f32 %v4153, %v4217
    %v4223 = vpack.c.bf16 %v3789, %v3789
    %v4232 = vunpack.c.l.b16 %v3701
    %v4233 = vunpack.c.l.b16 %v3702
    %v4234 = vunpack.c.l.b16 %v3703
    %v4235 = vunpack.c.l.b16 %v3704
    %v4236 = vunpack.c.l.b16 %v3705
    %v4237 = vunpack.c.l.b16 %v3706
    %v4238 = vunpack.c.l.b16 %v3707
    %v4239 = vunpack.c.l.b16 %v3708
    %v4240 = vpack.c.b16 %v4233, %v4232
    %v4241 = vpack.c.b16 %v4235, %v4234
    %v4242 = vpack.c.b16 %v4237, %v4236
    %v4243 = vpack.c.b16 %v4239, %v4238
    %v4249 = vsel %vm3827, %v4223, 0
    %4251 = vmatprep.subr.bf16.mxu0 0
    %4252 = vmatpush1.bf16.msra.mxu0 0
    %4253 = vmatprep.subr.bf16.mxu0 0
    %4254 = vmatpush1.bf16.msra.mxu0 0
    %4255 = vmatprep.subr.bf16.mxu0 0
    %4256 = vmatpush1.bf16.msra.mxu0 0
    %4257 = vmatprep.subr.bf16.mxu0 0
    %4258 = vmatpush1.bf16.msra.mxu0 0
    %4259 = vmatprep.subr.bf16.mxu0 0
    %4260 = vmatpush1.bf16.msra.mxu0 %v4243
    %4261 = vmatprep.subr.bf16.mxu0 0
    %4262 = vmatpush1.bf16.msra.mxu0 %v4242
    %4263 = vmatprep.subr.bf16.mxu0 0
    %4264 = vmatpush1.bf16.msra.mxu0 %v4241
    %4265 = vmatprep.subr.bf16.mxu0 0
    %4266 = vmatpush1.bf16.msra.mxu0 %v4240
    %4267 = vmatprep.subr.bf16.mxu0 0
    %4268 = vmatpush2.bf16.msra.mxu0 0
    %4269 = vmatprep.subr.bf16.mxu0 0
    %4270 = vmatpush2.bf16.msra.mxu0 0
    %4271 = vmatprep.subr.bf16.mxu0 0
    %4272 = vmatpush2.bf16.msra.mxu0 0
    %4273 = vmatprep.subr.bf16.mxu0 0
    %4274 = vmatpush2.bf16.msra.mxu0 0
    %4275 = vmatprep.subr.bf16.mxu0 0
    %4276 = vmatpush2.bf16.msra.mxu0 0
    %4277 = vmatprep.subr.bf16.mxu0 0
    %4278 = vmatpush2.bf16.msra.mxu0 0
    %4279 = vmatprep.subr.bf16.mxu0 0
    %4280 = vmatpush2.bf16.msra.mxu0 0
    %4281 = vmatprep.subr.bf16.mxu0 0
    %4282 = vmatpush2.bf16.msra.mxu0 0
    %4283 = vmatprep.mubr.bf16.mxu0 0
    %4284 = vmatmul.mubr.bf16.gmra.mxu0 %v4249
    %v4285 = vpop.f32.mrf.mxu0
    %v4286 = vadd.f32 0.0, %v4285
    %v4287 = vpop.f32.mrf.mxu0
    %v4288 = vpop.f32.mrf.mxu0
    %v4289 = vpop.f32.mrf.mxu0
    %4290 = vdwg.mxu0
    %v4291 = vadd.f32 %v4222, %v4286
    %v4292 = vpack.c.bf16 %v3792, %v3792
    %v4301 = vunpack.c.l.b16 %v3709
    %v4302 = vunpack.c.l.b16 %v3710
    %v4303 = vunpack.c.l.b16 %v3711
    %v4304 = vunpack.c.l.b16 %v3712
    %v4305 = vunpack.c.l.b16 %v3713
    %v4306 = vunpack.c.l.b16 %v3714
    %v4307 = vunpack.c.l.b16 %v3715
    %v4308 = vunpack.c.l.b16 %v3716
    %v4309 = vpack.c.b16 %v4302, %v4301
    %v4310 = vpack.c.b16 %v4304, %v4303
    %v4311 = vpack.c.b16 %v4306, %v4305
    %v4312 = vpack.c.b16 %v4308, %v4307
    %v4318 = vsel %vm3827, %v4292, 0
    %4320 = vmatprep.subr.bf16.mxu0 0
    %4321 = vmatpush1.bf16.msra.mxu0 0
    %4322 = vmatprep.subr.bf16.mxu0 0
    %4323 = vmatpush1.bf16.msra.mxu0 0
    %4324 = vmatprep.subr.bf16.mxu0 0
    %4325 = vmatpush1.bf16.msra.mxu0 0
    %4326 = vmatprep.subr.bf16.mxu0 0
    %4327 = vmatpush1.bf16.msra.mxu0 0
    %4328 = vmatprep.subr.bf16.mxu0 0
    %4329 = vmatpush1.bf16.msra.mxu0 %v4312
    %4330 = vmatprep.subr.bf16.mxu0 0
    %4331 = vmatpush1.bf16.msra.mxu0 %v4311
    %4332 = vmatprep.subr.bf16.mxu0 0
    %4333 = vmatpush1.bf16.msra.mxu0 %v4310
    %4334 = vmatprep.subr.bf16.mxu0 0
    %4335 = vmatpush1.bf16.msra.mxu0 %v4309
    %4336 = vmatprep.subr.bf16.mxu0 0
    %4337 = vmatpush2.bf16.msra.mxu0 0
    %4338 = vmatprep.subr.bf16.mxu0 0
    %4339 = vmatpush2.bf16.msra.mxu0 0
    %4340 = vmatprep.subr.bf16.mxu0 0
    %4341 = vmatpush2.bf16.msra.mxu0 0
    %4342 = vmatprep.subr.bf16.mxu0 0
    %4343 = vmatpush2.bf16.msra.mxu0 0
    %4344 = vmatprep.subr.bf16.mxu0 0
    %4345 = vmatpush2.bf16.msra.mxu0 0
    %4346 = vmatprep.subr.bf16.mxu0 0
    %4347 = vmatpush2.bf16.msra.mxu0 0
    %4348 = vmatprep.subr.bf16.mxu0 0
    %4349 = vmatpush2.bf16.msra.mxu0 0
    %4350 = vmatprep.subr.bf16.mxu0 0
    %4351 = vmatpush2.bf16.msra.mxu0 0
    %4352 = vmatprep.mubr.bf16.mxu0 0
    %4353 = vmatmul.mubr.bf16.gmra.mxu0 %v4318
    %v4354 = vpop.f32.mrf.mxu0
    %v4355 = vadd.f32 0.0, %v4354
    %v4356 = vpop.f32.mrf.mxu0
    %v4357 = vpop.f32.mrf.mxu0
    %v4358 = vpop.f32.mrf.mxu0
    %4359 = vdwg.mxu0
    %v4360 = vadd.f32 %v4291, %v4355
    %v4361 = vpack.c.bf16 %v3797, %v3797
    %v4370 = vunpack.c.l.b16 %v3717
    %v4371 = vunpack.c.l.b16 %v3718
    %v4372 = vunpack.c.l.b16 %v3719
    %v4373 = vunpack.c.l.b16 %v3720
    %v4374 = vunpack.c.l.b16 %v3721
    %v4375 = vunpack.c.l.b16 %v3722
    %v4376 = vunpack.c.l.b16 %v3723
    %v4377 = vunpack.c.l.b16 %v3724
    %v4378 = vpack.c.b16 %v4371, %v4370
    %v4379 = vpack.c.b16 %v4373, %v4372
    %v4380 = vpack.c.b16 %v4375, %v4374
    %v4381 = vpack.c.b16 %v4377, %v4376
    %v4387 = vsel %vm3827, %v4361, 0
    %4389 = vmatprep.subr.bf16.mxu0 0
    %4390 = vmatpush1.bf16.msra.mxu0 0
    %4391 = vmatprep.subr.bf16.mxu0 0
    %4392 = vmatpush1.bf16.msra.mxu0 0
    %4393 = vmatprep.subr.bf16.mxu0 0
    %4394 = vmatpush1.bf16.msra.mxu0 0
    %4395 = vmatprep.subr.bf16.mxu0 0
    %4396 = vmatpush1.bf16.msra.mxu0 0
    %4397 = vmatprep.subr.bf16.mxu0 0
    %4398 = vmatpush1.bf16.msra.mxu0 %v4381
    %4399 = vmatprep.subr.bf16.mxu0 0
    %4400 = vmatpush1.bf16.msra.mxu0 %v4380
    %4401 = vmatprep.subr.bf16.mxu0 0
    %4402 = vmatpush1.bf16.msra.mxu0 %v4379
    %4403 = vmatprep.subr.bf16.mxu0 0
    %4404 = vmatpush1.bf16.msra.mxu0 %v4378
    %4405 = vmatprep.subr.bf16.mxu0 0
    %4406 = vmatpush2.bf16.msra.mxu0 0
    %4407 = vmatprep.subr.bf16.mxu0 0
    %4408 = vmatpush2.bf16.msra.mxu0 0
    %4409 = vmatprep.subr.bf16.mxu0 0
    %4410 = vmatpush2.bf16.msra.mxu0 0
    %4411 = vmatprep.subr.bf16.mxu0 0
    %4412 = vmatpush2.bf16.msra.mxu0 0
    %4413 = vmatprep.subr.bf16.mxu0 0
    %4414 = vmatpush2.bf16.msra.mxu0 0
    %4415 = vmatprep.subr.bf16.mxu0 0
    %4416 = vmatpush2.bf16.msra.mxu0 0
    %4417 = vmatprep.subr.bf16.mxu0 0
    %4418 = vmatpush2.bf16.msra.mxu0 0
    %4419 = vmatprep.subr.bf16.mxu0 0
    %4420 = vmatpush2.bf16.msra.mxu0 0
    %4421 = vmatprep.mubr.bf16.mxu0 0
    %4422 = vmatmul.mubr.bf16.gmra.mxu0 %v4387
    %v4423 = vpop.f32.mrf.mxu0
    %v4424 = vadd.f32 0.0, %v4423
    %v4425 = vpop.f32.mrf.mxu0
    %v4426 = vpop.f32.mrf.mxu0
    %v4427 = vpop.f32.mrf.mxu0
    %4428 = vdwg.mxu0
    %v4429 = vadd.f32 %v4360, %v4424
    %v4430 = vmax.f32 %v4429, 0.0
    %v4431 = vld [vmem:[%s21] sm:$0xf]
    %v4432 = vld [vmem:[%s21 + $0x4] sm:$0xf]
    %v4433 = vld [vmem:[%s21 + $0x8] sm:$0xf]
    %v4434 = vld [vmem:[%s21 + $0xc] sm:$0xf]
    %v4435 = vld [vmem:[%s22] sm:$0x1]
    %v4437 = vlaneseq
    %v4438 = vshrl.u32 %v4437, 7
    %v4439 = vsub.s32 0, %v4438
    %v4440 = vrot.slane %v4435, %v4439
    %v4446 = vunpack.c.l.b16 %v4431
    %v4447 = vunpack.c.l.b16 %v4432
    %v4448 = vunpack.c.l.b16 %v4433
    %v4449 = vunpack.c.l.b16 %v4434
    %v4450 = vpack.c.b16 %v4447, %v4446
    %v4451 = vpack.c.b16 %v4449, %v4448
    %v4454 = vsel %vm1091, %v3017, 0
    %4456 = vmatprep.subr.bf16.mxu0 0
    %4457 = vmatpush1.bf16.msra.mxu0 0
    %4458 = vmatprep.subr.bf16.mxu0 0
    %4459 = vmatpush1.bf16.msra.mxu0 0
    %4460 = vmatprep.subr.bf16.mxu0 0
    %4461 = vmatpush1.bf16.msra.mxu0 0
    %4462 = vmatprep.subr.bf16.mxu0 0
    %4463 = vmatpush1.bf16.msra.mxu0 0
    %4464 = vmatprep.subr.bf16.mxu0 0
    %4465 = vmatpush1.bf16.msra.mxu0 0
    %4466 = vmatprep.subr.bf16.mxu0 0
    %4467 = vmatpush1.bf16.msra.mxu0 0
    %4468 = vmatprep.subr.bf16.mxu0 0
    %4469 = vmatpush1.bf16.msra.mxu0 %v4451
    %4470 = vmatprep.subr.bf16.mxu0 0
    %4471 = vmatpush1.bf16.msra.mxu0 %v4450
    %4472 = vmatprep.subr.bf16.mxu0 0
    %4473 = vmatpush2.bf16.msra.mxu0 0
    %4474 = vmatprep.subr.bf16.mxu0 0
    %4475 = vmatpush2.bf16.msra.mxu0 0
    %4476 = vmatprep.subr.bf16.mxu0 0
    %4477 = vmatpush2.bf16.msra.mxu0 0
    %4478 = vmatprep.subr.bf16.mxu0 0
    %4479 = vmatpush2.bf16.msra.mxu0 0
    %4480 = vmatprep.subr.bf16.mxu0 0
    %4481 = vmatpush2.bf16.msra.mxu0 0
    %4482 = vmatprep.subr.bf16.mxu0 0
    %4483 = vmatpush2.bf16.msra.mxu0 0
    %4484 = vmatprep.subr.bf16.mxu0 0
    %4485 = vmatpush2.bf16.msra.mxu0 0
    %4486 = vmatprep.subr.bf16.mxu0 0
    %4487 = vmatpush2.bf16.msra.mxu0 0
    %4488 = vmatprep.mubr.bf16.mxu0 0
    %4489 = vmatmul.mubr.bf16.gmra.mxu0 %v4454
    %v4490 = vpop.f32.mrf.mxu0
    %v4491 = vadd.f32 %v4440, %v4490
    %v4492 = vpop.f32.mrf.mxu0
    %v4493 = vpop.f32.mrf.mxu0
    %v4494 = vpop.f32.mrf.mxu0
    %4495 = vdwg.mxu0
    %v4496 = vmax.f32 %v4491, 0.0
    %v4497 = vadd.f32 %v4430, %v4496
    %v4498 = vld [vmem:[%s23] sm:$0x1]
    %v4499 = vpack.c.bf16 %v4497, %v4497
    %v4501 = vsel %vm3041, %v4498, 0
    %v4504 = vsel %vm3057, %v4499, 0
    %4506 = vmatprep.subr.bf16.mxu0 0
    %4507 = vmatpush1.bf16.msra.mxu0 0
    %4508 = vmatprep.subr.bf16.mxu0 0
    %4509 = vmatpush1.bf16.msra.mxu0 0
    %4510 = vmatprep.subr.bf16.mxu0 0
    %4511 = vmatpush1.bf16.msra.mxu0 0
    %4512 = vmatprep.subr.bf16.mxu0 0
    %4513 = vmatpush1.bf16.msra.mxu0 0
    %4514 = vmatprep.subr.bf16.mxu0 0
    %4515 = vmatpush1.bf16.msra.mxu0 0
    %4516 = vmatprep.subr.bf16.mxu0 0
    %4517 = vmatpush1.bf16.msra.mxu0 0
    %4518 = vmatprep.subr.bf16.mxu0 0
    %4519 = vmatpush1.bf16.msra.mxu0 0
    %4520 = vmatprep.subr.bf16.mxu0 0
    %4521 = vmatpush1.bf16.msra.mxu0 %v4504
    %4522 = vmatprep.subr.bf16.mxu0 0
    %4523 = vmatpush2.bf16.msra.mxu0 0
    %4524 = vmatprep.subr.bf16.mxu0 0
    %4525 = vmatpush2.bf16.msra.mxu0 0
    %4526 = vmatprep.subr.bf16.mxu0 0
    %4527 = vmatpush2.bf16.msra.mxu0 0
    %4528 = vmatprep.subr.bf16.mxu0 0
    %4529 = vmatpush2.bf16.msra.mxu0 0
    %4530 = vmatprep.subr.bf16.mxu0 0
    %4531 = vmatpush2.bf16.msra.mxu0 0
    %4532 = vmatprep.subr.bf16.mxu0 0
    %4533 = vmatpush2.bf16.msra.mxu0 0
    %4534 = vmatprep.subr.bf16.mxu0 0
    %4535 = vmatpush2.bf16.msra.mxu0 0
    %4536 = vmatprep.subr.bf16.mxu0 0
    %4537 = vmatpush2.bf16.msra.mxu0 0
    %4538 = vmatprep.mubr.bf16.mxu0 0
    %4539 = vmatmul.mubr.bf16.gmra.mxu0 %v4501
    %v4540 = vpop.f32.mrf.mxu0
    %v4541 = vadd.f32 0.0, %v4540
    %v4542 = vpop.f32.mrf.mxu0
    %v4543 = vpop.f32.mrf.mxu0
    %v4544 = vpop.f32.mrf.mxu0
    %4545 = vdwg.mxu0
    %v4546 = vld [vmem:[%s24] sm:$0xf]
    %v4547 = vld [vmem:[%s24 + $0x4] sm:$0xf]
    %v4548 = vld [vmem:[%s24 + $0x8] sm:$0xf]
    %v4549 = vld [vmem:[%s24 + $0xc] sm:$0xf]
    %v4550 = vld [vmem:[%s24 + $0x10] sm:$0xf]
    %v4551 = vld [vmem:[%s24 + $0x14] sm:$0xf]
    %v4552 = vld [vmem:[%s24 + $0x18] sm:$0xf]
    %v4553 = vld [vmem:[%s24 + $0x1c] sm:$0xf]
    %v4554 = vpack.c.bf16 %v4541, %v4541
    %v4555 = vld [vmem:[%s25] sm:$0x1]
    %v4557 = vlaneseq
    %v4558 = vshrl.u32 %v4557, 7
    %v4559 = vsub.s32 0, %v4558
    %v4560 = vrot.slane %v4555, %v4559
    %v4570 = vunpack.c.l.b16 %v4546
    %v4571 = vunpack.c.l.b16 %v4547
    %v4572 = vunpack.c.l.b16 %v4548
    %v4573 = vunpack.c.l.b16 %v4549
    %v4574 = vunpack.c.l.b16 %v4550
    %v4575 = vunpack.c.l.b16 %v4551
    %v4576 = vunpack.c.l.b16 %v4552
    %v4577 = vunpack.c.l.b16 %v4553
    %v4578 = vpack.c.b16 %v4571, %v4570
    %v4579 = vpack.c.b16 %v4573, %v4572
    %v4580 = vpack.c.b16 %v4575, %v4574
    %v4581 = vpack.c.b16 %v4577, %v4576
    %v4587 = vsel %vm3827, %v4554, 0
    %4589 = vmatprep.subr.bf16.mxu0 0
    %4590 = vmatpush1.bf16.msra.mxu0 0
    %4591 = vmatprep.subr.bf16.mxu0 0
    %4592 = vmatpush1.bf16.msra.mxu0 0
    %4593 = vmatprep.subr.bf16.mxu0 0
    %4594 = vmatpush1.bf16.msra.mxu0 0
    %4595 = vmatprep.subr.bf16.mxu0 0
    %4596 = vmatpush1.bf16.msra.mxu0 0
    %4597 = vmatprep.subr.bf16.mxu0 0
    %4598 = vmatpush1.bf16.msra.mxu0 %v4581
    %4599 = vmatprep.subr.bf16.mxu0 0
    %4600 = vmatpush1.bf16.msra.mxu0 %v4580
    %4601 = vmatprep.subr.bf16.mxu0 0
    %4602 = vmatpush1.bf16.msra.mxu0 %v4579
    %4603 = vmatprep.subr.bf16.mxu0 0
    %4604 = vmatpush1.bf16.msra.mxu0 %v4578
    %4605 = vmatprep.subr.bf16.mxu0 0
    %4606 = vmatpush2.bf16.msra.mxu0 0
    %4607 = vmatprep.subr.bf16.mxu0 0
    %4608 = vmatpush2.bf16.msra.mxu0 0
    %4609 = vmatprep.subr.bf16.mxu0 0
    %4610 = vmatpush2.bf16.msra.mxu0 0
    %4611 = vmatprep.subr.bf16.mxu0 0
    %4612 = vmatpush2.bf16.msra.mxu0 0
    %4613 = vmatprep.subr.bf16.mxu0 0
    %4614 = vmatpush2.bf16.msra.mxu0 0
    %4615 = vmatprep.subr.bf16.mxu0 0
    %4616 = vmatpush2.bf16.msra.mxu0 0
    %4617 = vmatprep.subr.bf16.mxu0 0
    %4618 = vmatpush2.bf16.msra.mxu0 0
    %4619 = vmatprep.subr.bf16.mxu0 0
    %4620 = vmatpush2.bf16.msra.mxu0 0
    %4621 = vmatprep.mubr.bf16.mxu0 0
    %4622 = vmatmul.mubr.bf16.gmra.mxu0 %v4587
    %v4623 = vpop.f32.mrf.mxu0
    %v4624 = vadd.f32 %v4560, %v4623
    %v4625 = vpop.f32.mrf.mxu0
    %v4626 = vpop.f32.mrf.mxu0
    %v4627 = vpop.f32.mrf.mxu0
    %4628 = vdwg.mxu0
    %vm4629 = vcmask 9216
    %v4630 = vsel %vm4629, %v4624, -inf
    %4631 = vmax.xlane.f32.xlu0 %v4630
    %v4632 = vpop.xlane.xlu0 %4631
    %v4633 = vsub.f32 %v4624, %v4632
    %v4634 = vmul.f32 %v4633, 1.442695
    %v4635 = vpow.pop %v4634
    %v4636 = vsel %vm4629, %v4635, 0.0
    %4637 = vadd.xlane.f32.xlu0 %v4636
    %v4638 = vpop.xlane.xlu0 %4637
    %v4639 = vlog2.pop %v4638
    %v4640 = vmul.f32 %v4639, 0.6931472
    %v4641 = vsub.f32 %v4633, %v4640
    %4642 = vst.msk [vmem:[#allocation2] sm:$0x3] %vm4629, %v4641
    // Predicated region
    $region106: #{_forward_impl.1} parent=1 // pred_check
      _
    $region107: #{_forward_impl.1} parent=1 // pred_check_branch
      %4644 = sbr.rel (0) target = $region109
    $region108: #{_forward_impl.1} parent=1 // pred_region
      %s4646 = ssub.s32 32, 32
      %4647 = vsyncadd [#allocation3], %s4646
      %s4649 = sshll.u32 [#allocation2], 4
      %s4650 = int_to_ptr.vmem [resolvable:$true] %s4649
      %4652 = dma.vmem_to_hbm [thread:$0]  %s4650, 32, %s26, [#allocation3]
    $region109: #{_forward_impl.1} parent=1 // pred_fallthru
      _
    // Predicated region
    $region110: #{_forward_impl.1} parent=1 // pred_check
      _
    $region111: #{_forward_impl.1} parent=1 // pred_check_branch
      %4654 = sbr.rel (0) target = $region113
    $region112: #{_forward_impl.1} parent=1 // pred_region
      %4655 = dma.done [#allocation3], 32
    $region113: #{_forward_impl.1} parent=1 // pred_fallthru
      _
    %4656 = vsyncpa [#allocation3], 1

</llo_original>
